<compile_context>
chip_gen: v7x
topology: tpu7x:2x2x1
jax: 0.10.0
libtpu: 0.0.40
codegen_flags: <defaults>
</compile_context>

<pallas_src>
import functools

import numpy as np

import jax
import jax.numpy as jnp
from jax.experimental import pallas as pl
from jax.experimental.pallas import tpu as pltpu

NEG_SLOPE = 0.01  # nn.LeakyReLU() default negative_slope


def _leaky_relu(x):
    return jnp.where(x >= 0, x, NEG_SLOPE * x)


# ----------------------------------------------------------------------------
# The single fused kernel.
# refs layout: [x_slab,
#               (conv_w, conv_b) * n_conv,
#               pool_mat,
#               (mlp_w, mlp_b) * n_mlp,
#               out]
# ----------------------------------------------------------------------------
def _fused_cnn_kernel(*refs, n_conv, n_mlp):
    x_ref = refs[0]
    conv_refs = refs[1:1 + 2 * n_conv]
    pool_ref = refs[1 + 2 * n_conv]
    mlp_refs = refs[2 + 2 * n_conv:2 + 2 * n_conv + 2 * n_mlp]
    o_ref = refs[-1]

    act = x_ref[...]                         # (C_in_pad, R): channels x positions
    R = act.shape[-1]

    # Conv stack: per layer = K lane-rolls (XLU) -> sublane concat (im2col)
    # -> ONE MXU matmul -> bias -> LeakyReLU.  Everything static/unrolled.
    for i in range(n_conv):
        w = conv_refs[2 * i][...]            # (C_out, K*C_in)
        b = conv_refs[2 * i + 1][...]        # (C_out, 1)
        c_in = act.shape[0]                  # always a multiple of 8
        k_taps = w.shape[1] // c_in
        # tap k holds act[:, (r + k) mod R]; the wrap only touches the garbage
        # tail of each batch block, never a valid output position.
        taps = [act if k == 0 else pltpu.roll(act, shift=R - k, axis=1)
                for k in range(k_taps)]
        x_win = jnp.concatenate(taps, axis=0)                 # (K*C_in, R)
        z = jnp.dot(w, x_win, preferred_element_type=jnp.float32) + b
        act = _leaky_relu(z)                                  # (C_out, R)

    # AdaptiveAvgPool1d(1): mean over each batch block's valid positions,
    # expressed as one matmul with the precomputed averaging matrix.
    h = jnp.dot(act, pool_ref[...], preferred_element_type=jnp.float32)   # (C, N)

    # MLP: Linear + LeakyReLU per layer (activation follows every Linear,
    # matching the PyTorch module), transposed (features, batch) orientation.
    for j in range(n_mlp):
        w = mlp_refs[2 * j][...]             # (out, in)  — PyTorch-native
        b = mlp_refs[2 * j + 1][...]         # (out, 1)
        h = _leaky_relu(jnp.dot(w, h, preferred_element_type=jnp.float32) + b)

    o_ref[...] = h.astype(o_ref.dtype)       # (out_dim, N)


# ----------------------------------------------------------------------------
# Wrapper-side parameter prep (one-time layout plumbing, plain JAX).
# ----------------------------------------------------------------------------
def _prep_conv_params(conv_params, c_in_kernel):
    """PyTorch-native (C_out, C_in, K) conv weights -> (C_out, K*C_in) matmul
    layout matching the tap-major / channel-minor im2col built in the kernel."""
    prepped = []
    for w, b in conv_params:
        c_out, c_in, k = w.shape
        if c_in < c_in_kernel:               # zero-pad input channels (layer 1)
            w = jnp.pad(w, ((0, 0), (0, c_in_kernel - c_in), (0, 0)))
        # (C_out, C_in_pad, K) -> (C_out, K, C_in_pad) -> (C_out, K*C_in_pad)
        w_mat = jnp.transpose(w, (0, 2, 1)).reshape(c_out, k * c_in_kernel)
        prepped.append((w_mat, b.reshape(c_out, 1)))
        c_in_kernel = c_out                  # multiple of 8 for every later layer
    return prepped


def cnn_forward(x_ncl, conv_params, mlp_params):
    """x_ncl: (N, C_in, L) PyTorch layout.
    conv_params: [(w (C_out, C_in, K), b (C_out,)), ...]   (PyTorch-native)
    mlp_params:  [(w (out, in),        b (out,)),  ...]    (PyTorch-native)
    """
    N, C_in, L = x_ncl.shape
    receptive = sum(int(w.shape[2]) - 1 for w, _ in conv_params)
    L_valid = L - receptive
    if L_valid <= 0:
        raise ValueError(f"sequence length {L} too short for the conv stack")
    R = N * L   # nicest when a multiple of 128 (here 2*64=128), but not required

    # channels-on-sublanes / positions-on-lanes slab; batch folded onto lanes.
    x_slab = jnp.transpose(x_ncl, (1, 0, 2)).reshape(C_in, R)
    c_in_pad = (-C_in) % 8                   # keep in-kernel concats sublane-aligned
    if c_in_pad:
        x_slab = jnp.pad(x_slab, ((0, c_in_pad), (0, 0)))

    conv_prepped = _prep_conv_params(conv_params, C_in + c_in_pad)

    # Averaging matrix: mean over the L_valid leading (valid) positions of each
    # batch block.  Folds AdaptiveAvgPool1d(1) into a single MXU matmul and
    # drops every garbage-tail position.
    pool = np.zeros((R, N), np.float32)
    for n in range(N):
        pool[n * L:n * L + L_valid, n] = 1.0 / L_valid
    pool = jnp.asarray(pool)

    mlp_prepped = [(w, b.reshape(-1, 1)) for w, b in mlp_params]

    inputs = [x_slab]
    for w, b in conv_prepped:
        inputs += [w, b]
    inputs.append(pool)
    for w, b in mlp_prepped:
        inputs += [w, b]

    out_dim = mlp_params[-1][0].shape[0]
    out_t = pl.pallas_call(
        functools.partial(_fused_cnn_kernel,
                          n_conv=len(conv_params), n_mlp=len(mlp_params)),
        out_shape=jax.ShapeDtypeStruct((out_dim, N), jnp.float32),
    )(*inputs)
    return out_t.T                           # (N, out_dim)


# ----------------------------------------------------------------------------
# Deterministic parameter init (PyTorch-native layouts, PyTorch-style bounds).
# ----------------------------------------------------------------------------
def init_params(key,
                input_channels=3,
                conv_channels=(8, 16, 16, 32, 32, 64, 64, 128, 128),
                kernel_sizes=(11, 9, 7, 7, 5, 5, 3, 3, 3),
                mlp_layers=(128, 64, 32, 2)):
    chans = [input_channels] + list(conv_channels)
    conv_params = []
    for cin, cout, ks in zip(chans[:-1], chans[1:], kernel_sizes):
        key, kw, kb = jax.random.split(key, 3)
        bound = 1.0 / (cin * ks) ** 0.5
        w = jax.random.uniform(kw, (cout, cin, ks), jnp.float32, -bound, bound)
        b = jax.random.uniform(kb, (cout,), jnp.float32, -bound, bound)
        conv_params.append((w, b))

    sizes = [conv_channels[-1]] + list(mlp_layers)
    mlp_params = []
    for fin, fout in zip(sizes[:-1], sizes[1:]):
        key, kw, kb = jax.random.split(key, 3)
        bound = 1.0 / fin ** 0.5
        w = jax.random.uniform(kw, (fout, fin), jnp.float32, -bound, bound)
        b = jax.random.uniform(kb, (fout,), jnp.float32, -bound, bound)
        mlp_params.append((w, b))
    return conv_params, mlp_params


# ----------------------------------------------------------------------------
# Pure-JAX reference (independent formulation) for a correctness check.
# ----------------------------------------------------------------------------
def cnn_reference(x_ncl, conv_params, mlp_params):
    hi = jax.lax.Precision.HIGHEST
    y = x_ncl.astype(jnp.float32)
    for w, b in conv_params:                 # w: (C_out, C_in, K), b: (C_out,)
        K = w.shape[2]
        L_out = y.shape[2] - K + 1
        z = sum(jnp.einsum("ncl,oc->nol", y[:, :, k:k + L_out], w[:, :, k],
                           precision=hi) for k in range(K))
        y = _leaky_relu(z + b[None, :, None])
    y = jnp.mean(y, axis=2)                  # AdaptiveAvgPool1d(1) + flatten
    for w, b in mlp_params:                  # w: (out, in), b: (out,)
        y = _leaky_relu(jnp.einsum("ni,oi->no", y, w, precision=hi) + b)
    return y


if __name__ == "__main__":
    key = jax.random.PRNGKey(0)
    pkey, xkey = jax.random.split(key)
    conv_params, mlp_params = init_params(pkey)

    # L=64 -> N*L = 128 lanes exactly (one native lane tile); the 44 positions
    # consumed by the valid convs still leave 20 valid outputs per example.
    N, C_in, L = 2, 3, 64
    x = jax.random.normal(xkey, (N, C_in, L), jnp.float32)

    fwd = jax.jit(lambda x: cnn_forward(x, conv_params, mlp_params))
    out = fwd(x)
    jax.block_until_ready(out)
    assert out.shape == (N, 2), out.shape

    # Correctness check against an independent pure-JAX reference.  Tolerance
    # accommodates MXU accumulation-order / pass-precision differences.
    ref = cnn_reference(x, conv_params, mlp_params)
    np.testing.assert_allclose(np.asarray(out), np.asarray(ref),
                               rtol=2e-2, atol=1e-3)
    print("KERNEL_OK")
</pallas_src>

<mosaic_0001>
module attributes {stable_mosaic.version = 11 : i64} {
  func.func @_fused_cnn_kernel(%arg0: memref<8x128xf32, #tpu.memory_space<vmem>>, %arg1: memref<8x88xf32, #tpu.memory_space<vmem>>, %arg2: memref<8x1xf32, #tpu.memory_space<vmem>>, %arg3: memref<16x72xf32, #tpu.memory_space<vmem>>, %arg4: memref<16x1xf32, #tpu.memory_space<vmem>>, %arg5: memref<16x112xf32, #tpu.memory_space<vmem>>, %arg6: memref<16x1xf32, #tpu.memory_space<vmem>>, %arg7: memref<32x112xf32, #tpu.memory_space<vmem>>, %arg8: memref<32x1xf32, #tpu.memory_space<vmem>>, %arg9: memref<32x160xf32, #tpu.memory_space<vmem>>, %arg10: memref<32x1xf32, #tpu.memory_space<vmem>>, %arg11: memref<64x160xf32, #tpu.memory_space<vmem>>, %arg12: memref<64x1xf32, #tpu.memory_space<vmem>>, %arg13: memref<64x192xf32, #tpu.memory_space<vmem>>, %arg14: memref<64x1xf32, #tpu.memory_space<vmem>>, %arg15: memref<128x192xf32, #tpu.memory_space<vmem>>, %arg16: memref<128x1xf32, #tpu.memory_space<vmem>>, %arg17: memref<128x384xf32, #tpu.memory_space<vmem>>, %arg18: memref<128x1xf32, #tpu.memory_space<vmem>>, %arg19: memref<128x2xf32, #tpu.memory_space<vmem>>, %arg20: memref<128x128xf32, #tpu.memory_space<vmem>>, %arg21: memref<128x1xf32, #tpu.memory_space<vmem>>, %arg22: memref<64x128xf32, #tpu.memory_space<vmem>>, %arg23: memref<64x1xf32, #tpu.memory_space<vmem>>, %arg24: memref<32x64xf32, #tpu.memory_space<vmem>>, %arg25: memref<32x1xf32, #tpu.memory_space<vmem>>, %arg26: memref<2x32xf32, #tpu.memory_space<vmem>>, %arg27: memref<2x1xf32, #tpu.memory_space<vmem>>, %arg28: memref<2x2xf32, #tpu.memory_space<vmem>>) attributes {dimension_semantics = [], scalar_prefetch = 0 : i64, scratch_operands = 0 : i64, tpu.core_type = #tpu.core_type<tc>} {
    %c0 = arith.constant 0 : index
    %c0_0 = arith.constant 0 : index
    %0 = vector.load %arg0[%c0, %c0_0] : memref<8x128xf32, #tpu.memory_space<vmem>>, vector<8x128xf32>
    %c0_1 = arith.constant 0 : index
    %c0_2 = arith.constant 0 : index
    %1 = vector.load %arg1[%c0_1, %c0_2] : memref<8x88xf32, #tpu.memory_space<vmem>>, vector<8x88xf32>
    %c0_3 = arith.constant 0 : index
    %c0_4 = arith.constant 0 : index
    %2 = vector.load %arg2[%c0_3, %c0_4] : memref<8x1xf32, #tpu.memory_space<vmem>>, vector<8x1xf32>
    %c127_i32 = arith.constant 127 : i32
    %3 = tpu.dynamic_rotate %0 by %c127_i32 dim 1 : vector<8x128xf32>, i32 -> vector<8x128xf32>
    %c126_i32 = arith.constant 126 : i32
    %4 = tpu.dynamic_rotate %0 by %c126_i32 dim 1 : vector<8x128xf32>, i32 -> vector<8x128xf32>
    %c125_i32 = arith.constant 125 : i32
    %5 = tpu.dynamic_rotate %0 by %c125_i32 dim 1 : vector<8x128xf32>, i32 -> vector<8x128xf32>
    %c124_i32 = arith.constant 124 : i32
    %6 = tpu.dynamic_rotate %0 by %c124_i32 dim 1 : vector<8x128xf32>, i32 -> vector<8x128xf32>
    %c123_i32 = arith.constant 123 : i32
    %7 = tpu.dynamic_rotate %0 by %c123_i32 dim 1 : vector<8x128xf32>, i32 -> vector<8x128xf32>
    %c122_i32 = arith.constant 122 : i32
    %8 = tpu.dynamic_rotate %0 by %c122_i32 dim 1 : vector<8x128xf32>, i32 -> vector<8x128xf32>
    %c121_i32 = arith.constant 121 : i32
    %9 = tpu.dynamic_rotate %0 by %c121_i32 dim 1 : vector<8x128xf32>, i32 -> vector<8x128xf32>
    %c120_i32 = arith.constant 120 : i32
    %10 = tpu.dynamic_rotate %0 by %c120_i32 dim 1 : vector<8x128xf32>, i32 -> vector<8x128xf32>
    %c119_i32 = arith.constant 119 : i32
    %11 = tpu.dynamic_rotate %0 by %c119_i32 dim 1 : vector<8x128xf32>, i32 -> vector<8x128xf32>
    %c118_i32 = arith.constant 118 : i32
    %12 = tpu.dynamic_rotate %0 by %c118_i32 dim 1 : vector<8x128xf32>, i32 -> vector<8x128xf32>
    %13 = tpu.concatenate %0, %3, %4, %5, %6, %7, %8, %9, %10, %11, %12 in 0 : vector<8x128xf32>, vector<8x128xf32>, vector<8x128xf32>, vector<8x128xf32>, vector<8x128xf32>, vector<8x128xf32>, vector<8x128xf32>, vector<8x128xf32>, vector<8x128xf32>, vector<8x128xf32>, vector<8x128xf32> -> vector<88x128xf32>
    %cst = arith.constant dense<0.000000e+00> : vector<8x128xf32>
    %14 = tpu.matmul %1, %13, %cst {dimension_numbers = #tpu.dot_dimension_numbers<[1], [0], [0], [1], [0, 0, 1, 1], [], []>} : vector<8x88xf32>, vector<88x128xf32>, vector<8x128xf32> -> vector<8x128xf32>
    %15 = vector.broadcast %2 : vector<8x1xf32> to vector<8x128xf32>
    %16 = arith.addf %14, %15 : vector<8x128xf32>
    %cst_5 = arith.constant 0.000000e+00 : f32
    %17 = vector.broadcast %cst_5 : f32 to vector<8x128xf32>
    %18 = arith.cmpf oge, %16, %17 : vector<8x128xf32>
    %cst_6 = arith.constant 0.00999999977 : f32
    %19 = vector.broadcast %cst_6 : f32 to vector<8x128xf32>
    %20 = arith.mulf %19, %16 : vector<8x128xf32>
    %21 = arith.select %18, %16, %20 : vector<8x128xi1>, vector<8x128xf32>
    %c0_7 = arith.constant 0 : index
    %c0_8 = arith.constant 0 : index
    %22 = vector.load %arg3[%c0_7, %c0_8] : memref<16x72xf32, #tpu.memory_space<vmem>>, vector<16x72xf32>
    %c0_9 = arith.constant 0 : index
    %c0_10 = arith.constant 0 : index
    %23 = vector.load %arg4[%c0_9, %c0_10] : memref<16x1xf32, #tpu.memory_space<vmem>>, vector<16x1xf32>
    %c127_i32_11 = arith.constant 127 : i32
    %24 = tpu.dynamic_rotate %21 by %c127_i32_11 dim 1 : vector<8x128xf32>, i32 -> vector<8x128xf32>
    %c126_i32_12 = arith.constant 126 : i32
    %25 = tpu.dynamic_rotate %21 by %c126_i32_12 dim 1 : vector<8x128xf32>, i32 -> vector<8x128xf32>
    %c125_i32_13 = arith.constant 125 : i32
    %26 = tpu.dynamic_rotate %21 by %c125_i32_13 dim 1 : vector<8x128xf32>, i32 -> vector<8x128xf32>
    %c124_i32_14 = arith.constant 124 : i32
    %27 = tpu.dynamic_rotate %21 by %c124_i32_14 dim 1 : vector<8x128xf32>, i32 -> vector<8x128xf32>
    %c123_i32_15 = arith.constant 123 : i32
    %28 = tpu.dynamic_rotate %21 by %c123_i32_15 dim 1 : vector<8x128xf32>, i32 -> vector<8x128xf32>
    %c122_i32_16 = arith.constant 122 : i32
    %29 = tpu.dynamic_rotate %21 by %c122_i32_16 dim 1 : vector<8x128xf32>, i32 -> vector<8x128xf32>
    %c121_i32_17 = arith.constant 121 : i32
    %30 = tpu.dynamic_rotate %21 by %c121_i32_17 dim 1 : vector<8x128xf32>, i32 -> vector<8x128xf32>
    %c120_i32_18 = arith.constant 120 : i32
    %31 = tpu.dynamic_rotate %21 by %c120_i32_18 dim 1 : vector<8x128xf32>, i32 -> vector<8x128xf32>
    %32 = tpu.concatenate %21, %24, %25, %26, %27, %28, %29, %30, %31 in 0 : vector<8x128xf32>, vector<8x128xf32>, vector<8x128xf32>, vector<8x128xf32>, vector<8x128xf32>, vector<8x128xf32>, vector<8x128xf32>, vector<8x128xf32>, vector<8x128xf32> -> vector<72x128xf32>
    %cst_19 = arith.constant dense<0.000000e+00> : vector<16x128xf32>
    %33 = tpu.matmul %22, %32, %cst_19 {dimension_numbers = #tpu.dot_dimension_numbers<[1], [0], [0], [1], [0, 0, 1, 1], [], []>} : vector<16x72xf32>, vector<72x128xf32>, vector<16x128xf32> -> vector<16x128xf32>
    %34 = vector.broadcast %23 : vector<16x1xf32> to vector<16x128xf32>
    %35 = arith.addf %33, %34 : vector<16x128xf32>
    %cst_20 = arith.constant 0.000000e+00 : f32
    %36 = vector.broadcast %cst_20 : f32 to vector<16x128xf32>
    %37 = arith.cmpf oge, %35, %36 : vector<16x128xf32>
    %cst_21 = arith.constant 0.00999999977 : f32
    %38 = vector.broadcast %cst_21 : f32 to vector<16x128xf32>
    %39 = arith.mulf %38, %35 : vector<16x128xf32>
    %40 = arith.select %37, %35, %39 : vector<16x128xi1>, vector<16x128xf32>
    %c0_22 = arith.constant 0 : index
    %c0_23 = arith.constant 0 : index
    %41 = vector.load %arg5[%c0_22, %c0_23] : memref<16x112xf32, #tpu.memory_space<vmem>>, vector<16x112xf32>
    %c0_24 = arith.constant 0 : index
    %c0_25 = arith.constant 0 : index
    %42 = vector.load %arg6[%c0_24, %c0_25] : memref<16x1xf32, #tpu.memory_space<vmem>>, vector<16x1xf32>
    %c127_i32_26 = arith.constant 127 : i32
    %43 = tpu.dynamic_rotate %40 by %c127_i32_26 dim 1 : vector<16x128xf32>, i32 -> vector<16x128xf32>
    %c126_i32_27 = arith.constant 126 : i32
    %44 = tpu.dynamic_rotate %40 by %c126_i32_27 dim 1 : vector<16x128xf32>, i32 -> vector<16x128xf32>
    %c125_i32_28 = arith.constant 125 : i32
    %45 = tpu.dynamic_rotate %40 by %c125_i32_28 dim 1 : vector<16x128xf32>, i32 -> vector<16x128xf32>
    %c124_i32_29 = arith.constant 124 : i32
    %46 = tpu.dynamic_rotate %40 by %c124_i32_29 dim 1 : vector<16x128xf32>, i32 -> vector<16x128xf32>
    %c123_i32_30 = arith.constant 123 : i32
    %47 = tpu.dynamic_rotate %40 by %c123_i32_30 dim 1 : vector<16x128xf32>, i32 -> vector<16x128xf32>
    %c122_i32_31 = arith.constant 122 : i32
    %48 = tpu.dynamic_rotate %40 by %c122_i32_31 dim 1 : vector<16x128xf32>, i32 -> vector<16x128xf32>
    %49 = tpu.concatenate %40, %43, %44, %45, %46, %47, %48 in 0 : vector<16x128xf32>, vector<16x128xf32>, vector<16x128xf32>, vector<16x128xf32>, vector<16x128xf32>, vector<16x128xf32>, vector<16x128xf32> -> vector<112x128xf32>
    %cst_32 = arith.constant dense<0.000000e+00> : vector<16x128xf32>
    %50 = tpu.matmul %41, %49, %cst_32 {dimension_numbers = #tpu.dot_dimension_numbers<[1], [0], [0], [1], [0, 0, 1, 1], [], []>} : vector<16x112xf32>, vector<112x128xf32>, vector<16x128xf32> -> vector<16x128xf32>
    %51 = vector.broadcast %42 : vector<16x1xf32> to vector<16x128xf32>
    %52 = arith.addf %50, %51 : vector<16x128xf32>
    %cst_33 = arith.constant 0.000000e+00 : f32
    %53 = vector.broadcast %cst_33 : f32 to vector<16x128xf32>
    %54 = arith.cmpf oge, %52, %53 : vector<16x128xf32>
    %cst_34 = arith.constant 0.00999999977 : f32
    %55 = vector.broadcast %cst_34 : f32 to vector<16x128xf32>
    %56 = arith.mulf %55, %52 : vector<16x128xf32>
    %57 = arith.select %54, %52, %56 : vector<16x128xi1>, vector<16x128xf32>
    %c0_35 = arith.constant 0 : index
    %c0_36 = arith.constant 0 : index
    %58 = vector.load %arg7[%c0_35, %c0_36] : memref<32x112xf32, #tpu.memory_space<vmem>>, vector<32x112xf32>
    %c0_37 = arith.constant 0 : index
    %c0_38 = arith.constant 0 : index
    %59 = vector.load %arg8[%c0_37, %c0_38] : memref<32x1xf32, #tpu.memory_space<vmem>>, vector<32x1xf32>
    %c127_i32_39 = arith.constant 127 : i32
    %60 = tpu.dynamic_rotate %57 by %c127_i32_39 dim 1 : vector<16x128xf32>, i32 -> vector<16x128xf32>
    %c126_i32_40 = arith.constant 126 : i32
    %61 = tpu.dynamic_rotate %57 by %c126_i32_40 dim 1 : vector<16x128xf32>, i32 -> vector<16x128xf32>
    %c125_i32_41 = arith.constant 125 : i32
    %62 = tpu.dynamic_rotate %57 by %c125_i32_41 dim 1 : vector<16x128xf32>, i32 -> vector<16x128xf32>
    %c124_i32_42 = arith.constant 124 : i32
    %63 = tpu.dynamic_rotate %57 by %c124_i32_42 dim 1 : vector<16x128xf32>, i32 -> vector<16x128xf32>
    %c123_i32_43 = arith.constant 123 : i32
    %64 = tpu.dynamic_rotate %57 by %c123_i32_43 dim 1 : vector<16x128xf32>, i32 -> vector<16x128xf32>
    %c122_i32_44 = arith.constant 122 : i32
    %65 = tpu.dynamic_rotate %57 by %c122_i32_44 dim 1 : vector<16x128xf32>, i32 -> vector<16x128xf32>
    %66 = tpu.concatenate %57, %60, %61, %62, %63, %64, %65 in 0 : vector<16x128xf32>, vector<16x128xf32>, vector<16x128xf32>, vector<16x128xf32>, vector<16x128xf32>, vector<16x128xf32>, vector<16x128xf32> -> vector<112x128xf32>
    %cst_45 = arith.constant dense<0.000000e+00> : vector<32x128xf32>
    %67 = tpu.matmul %58, %66, %cst_45 {dimension_numbers = #tpu.dot_dimension_numbers<[1], [0], [0], [1], [0, 0, 1, 1], [], []>} : vector<32x112xf32>, vector<112x128xf32>, vector<32x128xf32> -> vector<32x128xf32>
    %68 = vector.broadcast %59 : vector<32x1xf32> to vector<32x128xf32>
    %69 = arith.addf %67, %68 : vector<32x128xf32>
    %cst_46 = arith.constant 0.000000e+00 : f32
    %70 = vector.broadcast %cst_46 : f32 to vector<32x128xf32>
    %71 = arith.cmpf oge, %69, %70 : vector<32x128xf32>
    %cst_47 = arith.constant 0.00999999977 : f32
    %72 = vector.broadcast %cst_47 : f32 to vector<32x128xf32>
    %73 = arith.mulf %72, %69 : vector<32x128xf32>
    %74 = arith.select %71, %69, %73 : vector<32x128xi1>, vector<32x128xf32>
    %c0_48 = arith.constant 0 : index
    %c0_49 = arith.constant 0 : index
    %75 = vector.load %arg9[%c0_48, %c0_49] : memref<32x160xf32, #tpu.memory_space<vmem>>, vector<32x160xf32>
    %c0_50 = arith.constant 0 : index
    %c0_51 = arith.constant 0 : index
    %76 = vector.load %arg10[%c0_50, %c0_51] : memref<32x1xf32, #tpu.memory_space<vmem>>, vector<32x1xf32>
    %c127_i32_52 = arith.constant 127 : i32
    %77 = tpu.dynamic_rotate %74 by %c127_i32_52 dim 1 : vector<32x128xf32>, i32 -> vector<32x128xf32>
    %c126_i32_53 = arith.constant 126 : i32
    %78 = tpu.dynamic_rotate %74 by %c126_i32_53 dim 1 : vector<32x128xf32>, i32 -> vector<32x128xf32>
    %c125_i32_54 = arith.constant 125 : i32
    %79 = tpu.dynamic_rotate %74 by %c125_i32_54 dim 1 : vector<32x128xf32>, i32 -> vector<32x128xf32>
    %c124_i32_55 = arith.constant 124 : i32
    %80 = tpu.dynamic_rotate %74 by %c124_i32_55 dim 1 : vector<32x128xf32>, i32 -> vector<32x128xf32>
    %81 = tpu.concatenate %74, %77, %78, %79, %80 in 0 : vector<32x128xf32>, vector<32x128xf32>, vector<32x128xf32>, vector<32x128xf32>, vector<32x128xf32> -> vector<160x128xf32>
    %cst_56 = arith.constant dense<0.000000e+00> : vector<32x128xf32>
    %82 = tpu.matmul %75, %81, %cst_56 {dimension_numbers = #tpu.dot_dimension_numbers<[1], [0], [0], [1], [0, 0, 1, 1], [], []>} : vector<32x160xf32>, vector<160x128xf32>, vector<32x128xf32> -> vector<32x128xf32>
    %83 = vector.broadcast %76 : vector<32x1xf32> to vector<32x128xf32>
    %84 = arith.addf %82, %83 : vector<32x128xf32>
    %cst_57 = arith.constant 0.000000e+00 : f32
    %85 = vector.broadcast %cst_57 : f32 to vector<32x128xf32>
    %86 = arith.cmpf oge, %84, %85 : vector<32x128xf32>
    %cst_58 = arith.constant 0.00999999977 : f32
    %87 = vector.broadcast %cst_58 : f32 to vector<32x128xf32>
    %88 = arith.mulf %87, %84 : vector<32x128xf32>
    %89 = arith.select %86, %84, %88 : vector<32x128xi1>, vector<32x128xf32>
    %c0_59 = arith.constant 0 : index
    %c0_60 = arith.constant 0 : index
    %90 = vector.load %arg11[%c0_59, %c0_60] : memref<64x160xf32, #tpu.memory_space<vmem>>, vector<64x160xf32>
    %c0_61 = arith.constant 0 : index
    %c0_62 = arith.constant 0 : index
    %91 = vector.load %arg12[%c0_61, %c0_62] : memref<64x1xf32, #tpu.memory_space<vmem>>, vector<64x1xf32>
    %c127_i32_63 = arith.constant 127 : i32
    %92 = tpu.dynamic_rotate %89 by %c127_i32_63 dim 1 : vector<32x128xf32>, i32 -> vector<32x128xf32>
    %c126_i32_64 = arith.constant 126 : i32
    %93 = tpu.dynamic_rotate %89 by %c126_i32_64 dim 1 : vector<32x128xf32>, i32 -> vector<32x128xf32>
    %c125_i32_65 = arith.constant 125 : i32
    %94 = tpu.dynamic_rotate %89 by %c125_i32_65 dim 1 : vector<32x128xf32>, i32 -> vector<32x128xf32>
    %c124_i32_66 = arith.constant 124 : i32
    %95 = tpu.dynamic_rotate %89 by %c124_i32_66 dim 1 : vector<32x128xf32>, i32 -> vector<32x128xf32>
    %96 = tpu.concatenate %89, %92, %93, %94, %95 in 0 : vector<32x128xf32>, vector<32x128xf32>, vector<32x128xf32>, vector<32x128xf32>, vector<32x128xf32> -> vector<160x128xf32>
    %cst_67 = arith.constant dense<0.000000e+00> : vector<64x128xf32>
    %97 = tpu.matmul %90, %96, %cst_67 {dimension_numbers = #tpu.dot_dimension_numbers<[1], [0], [0], [1], [0, 0, 1, 1], [], []>} : vector<64x160xf32>, vector<160x128xf32>, vector<64x128xf32> -> vector<64x128xf32>
    %98 = vector.broadcast %91 : vector<64x1xf32> to vector<64x128xf32>
    %99 = arith.addf %97, %98 : vector<64x128xf32>
    %cst_68 = arith.constant 0.000000e+00 : f32
    %100 = vector.broadcast %cst_68 : f32 to vector<64x128xf32>
    %101 = arith.cmpf oge, %99, %100 : vector<64x128xf32>
    %cst_69 = arith.constant 0.00999999977 : f32
    %102 = vector.broadcast %cst_69 : f32 to vector<64x128xf32>
    %103 = arith.mulf %102, %99 : vector<64x128xf32>
    %104 = arith.select %101, %99, %103 : vector<64x128xi1>, vector<64x128xf32>
    %c0_70 = arith.constant 0 : index
    %c0_71 = arith.constant 0 : index
    %105 = vector.load %arg13[%c0_70, %c0_71] : memref<64x192xf32, #tpu.memory_space<vmem>>, vector<64x192xf32>
    %c0_72 = arith.constant 0 : index
    %c0_73 = arith.constant 0 : index
    %106 = vector.load %arg14[%c0_72, %c0_73] : memref<64x1xf32, #tpu.memory_space<vmem>>, vector<64x1xf32>
    %c127_i32_74 = arith.constant 127 : i32
    %107 = tpu.dynamic_rotate %104 by %c127_i32_74 dim 1 : vector<64x128xf32>, i32 -> vector<64x128xf32>
    %c126_i32_75 = arith.constant 126 : i32
    %108 = tpu.dynamic_rotate %104 by %c126_i32_75 dim 1 : vector<64x128xf32>, i32 -> vector<64x128xf32>
    %109 = tpu.concatenate %104, %107, %108 in 0 : vector<64x128xf32>, vector<64x128xf32>, vector<64x128xf32> -> vector<192x128xf32>
    %cst_76 = arith.constant dense<0.000000e+00> : vector<64x128xf32>
    %110 = tpu.matmul %105, %109, %cst_76 {dimension_numbers = #tpu.dot_dimension_numbers<[1], [0], [0], [1], [0, 0, 1, 1], [], []>} : vector<64x192xf32>, vector<192x128xf32>, vector<64x128xf32> -> vector<64x128xf32>
    %111 = vector.broadcast %106 : vector<64x1xf32> to vector<64x128xf32>
    %112 = arith.addf %110, %111 : vector<64x128xf32>
    %cst_77 = arith.constant 0.000000e+00 : f32
    %113 = vector.broadcast %cst_77 : f32 to vector<64x128xf32>
    %114 = arith.cmpf oge, %112, %113 : vector<64x128xf32>
    %cst_78 = arith.constant 0.00999999977 : f32
    %115 = vector.broadcast %cst_78 : f32 to vector<64x128xf32>
    %116 = arith.mulf %115, %112 : vector<64x128xf32>
    %117 = arith.select %114, %112, %116 : vector<64x128xi1>, vector<64x128xf32>
    %c0_79 = arith.constant 0 : index
    %c0_80 = arith.constant 0 : index
    %118 = vector.load %arg15[%c0_79, %c0_80] : memref<128x192xf32, #tpu.memory_space<vmem>>, vector<128x192xf32>
    %c0_81 = arith.constant 0 : index
    %c0_82 = arith.constant 0 : index
    %119 = vector.load %arg16[%c0_81, %c0_82] : memref<128x1xf32, #tpu.memory_space<vmem>>, vector<128x1xf32>
    %c127_i32_83 = arith.constant 127 : i32
    %120 = tpu.dynamic_rotate %117 by %c127_i32_83 dim 1 : vector<64x128xf32>, i32 -> vector<64x128xf32>
    %c126_i32_84 = arith.constant 126 : i32
    %121 = tpu.dynamic_rotate %117 by %c126_i32_84 dim 1 : vector<64x128xf32>, i32 -> vector<64x128xf32>
    %122 = tpu.concatenate %117, %120, %121 in 0 : vector<64x128xf32>, vector<64x128xf32>, vector<64x128xf32> -> vector<192x128xf32>
    %cst_85 = arith.constant dense<0.000000e+00> : vector<128x128xf32>
    %123 = tpu.matmul %118, %122, %cst_85 {dimension_numbers = #tpu.dot_dimension_numbers<[1], [0], [0], [1], [0, 0, 1, 1], [], []>} : vector<128x192xf32>, vector<192x128xf32>, vector<128x128xf32> -> vector<128x128xf32>
    %124 = vector.broadcast %119 : vector<128x1xf32> to vector<128x128xf32>
    %125 = arith.addf %123, %124 : vector<128x128xf32>
    %cst_86 = arith.constant 0.000000e+00 : f32
    %126 = vector.broadcast %cst_86 : f32 to vector<128x128xf32>
    %127 = arith.cmpf oge, %125, %126 : vector<128x128xf32>
    %cst_87 = arith.constant 0.00999999977 : f32
    %128 = vector.broadcast %cst_87 : f32 to vector<128x128xf32>
    %129 = arith.mulf %128, %125 : vector<128x128xf32>
    %130 = arith.select %127, %125, %129 : vector<128x128xi1>, vector<128x128xf32>
    %c0_88 = arith.constant 0 : index
    %c0_89 = arith.constant 0 : index
    %131 = vector.load %arg17[%c0_88, %c0_89] : memref<128x384xf32, #tpu.memory_space<vmem>>, vector<128x384xf32>
    %c0_90 = arith.constant 0 : index
    %c0_91 = arith.constant 0 : index
    %132 = vector.load %arg18[%c0_90, %c0_91] : memref<128x1xf32, #tpu.memory_space<vmem>>, vector<128x1xf32>
    %c127_i32_92 = arith.constant 127 : i32
    %133 = tpu.dynamic_rotate %130 by %c127_i32_92 dim 1 : vector<128x128xf32>, i32 -> vector<128x128xf32>
    %c126_i32_93 = arith.constant 126 : i32
    %134 = tpu.dynamic_rotate %130 by %c126_i32_93 dim 1 : vector<128x128xf32>, i32 -> vector<128x128xf32>
    %135 = tpu.concatenate %130, %133, %134 in 0 : vector<128x128xf32>, vector<128x128xf32>, vector<128x128xf32> -> vector<384x128xf32>
    %cst_94 = arith.constant dense<0.000000e+00> : vector<128x128xf32>
    %136 = tpu.matmul %131, %135, %cst_94 {dimension_numbers = #tpu.dot_dimension_numbers<[1], [0], [0], [1], [0, 0, 1, 1], [], []>} : vector<128x384xf32>, vector<384x128xf32>, vector<128x128xf32> -> vector<128x128xf32>
    %137 = vector.broadcast %132 : vector<128x1xf32> to vector<128x128xf32>
    %138 = arith.addf %136, %137 : vector<128x128xf32>
    %cst_95 = arith.constant 0.000000e+00 : f32
    %139 = vector.broadcast %cst_95 : f32 to vector<128x128xf32>
    %140 = arith.cmpf oge, %138, %139 : vector<128x128xf32>
    %cst_96 = arith.constant 0.00999999977 : f32
    %141 = vector.broadcast %cst_96 : f32 to vector<128x128xf32>
    %142 = arith.mulf %141, %138 : vector<128x128xf32>
    %143 = arith.select %140, %138, %142 : vector<128x128xi1>, vector<128x128xf32>
    %c0_97 = arith.constant 0 : index
    %c0_98 = arith.constant 0 : index
    %144 = vector.load %arg19[%c0_97, %c0_98] : memref<128x2xf32, #tpu.memory_space<vmem>>, vector<128x2xf32>
    %cst_99 = arith.constant dense<0.000000e+00> : vector<128x2xf32>
    %145 = tpu.matmul %143, %144, %cst_99 {dimension_numbers = #tpu.dot_dimension_numbers<[1], [0], [0], [1], [0, 0, 1, 1], [], []>} : vector<128x128xf32>, vector<128x2xf32>, vector<128x2xf32> -> vector<128x2xf32>
    %c0_100 = arith.constant 0 : index
    %c0_101 = arith.constant 0 : index
    %146 = vector.load %arg20[%c0_100, %c0_101] : memref<128x128xf32, #tpu.memory_space<vmem>>, vector<128x128xf32>
    %c0_102 = arith.constant 0 : index
    %c0_103 = arith.constant 0 : index
    %147 = vector.load %arg21[%c0_102, %c0_103] : memref<128x1xf32, #tpu.memory_space<vmem>>, vector<128x1xf32>
    %cst_104 = arith.constant dense<0.000000e+00> : vector<128x2xf32>
    %148 = tpu.matmul %146, %145, %cst_104 {dimension_numbers = #tpu.dot_dimension_numbers<[1], [0], [0], [1], [0, 0, 1, 1], [], []>} : vector<128x128xf32>, vector<128x2xf32>, vector<128x2xf32> -> vector<128x2xf32>
    %149 = vector.broadcast %147 : vector<128x1xf32> to vector<128x2xf32>
    %150 = arith.addf %148, %149 : vector<128x2xf32>
    %cst_105 = arith.constant 0.000000e+00 : f32
    %151 = vector.broadcast %cst_105 : f32 to vector<128x2xf32>
    %152 = arith.cmpf oge, %150, %151 : vector<128x2xf32>
    %cst_106 = arith.constant 0.00999999977 : f32
    %153 = vector.broadcast %cst_106 : f32 to vector<128x2xf32>
    %154 = arith.mulf %153, %150 : vector<128x2xf32>
    %155 = arith.select %152, %150, %154 : vector<128x2xi1>, vector<128x2xf32>
    %c0_107 = arith.constant 0 : index
    %c0_108 = arith.constant 0 : index
    %156 = vector.load %arg22[%c0_107, %c0_108] : memref<64x128xf32, #tpu.memory_space<vmem>>, vector<64x128xf32>
    %c0_109 = arith.constant 0 : index
    %c0_110 = arith.constant 0 : index
    %157 = vector.load %arg23[%c0_109, %c0_110] : memref<64x1xf32, #tpu.memory_space<vmem>>, vector<64x1xf32>
    %cst_111 = arith.constant dense<0.000000e+00> : vector<64x2xf32>
    %158 = tpu.matmul %156, %155, %cst_111 {dimension_numbers = #tpu.dot_dimension_numbers<[1], [0], [0], [1], [0, 0, 1, 1], [], []>} : vector<64x128xf32>, vector<128x2xf32>, vector<64x2xf32> -> vector<64x2xf32>
    %159 = vector.broadcast %157 : vector<64x1xf32> to vector<64x2xf32>
    %160 = arith.addf %158, %159 : vector<64x2xf32>
    %cst_112 = arith.constant 0.000000e+00 : f32
    %161 = vector.broadcast %cst_112 : f32 to vector<64x2xf32>
    %162 = arith.cmpf oge, %160, %161 : vector<64x2xf32>
    %cst_113 = arith.constant 0.00999999977 : f32
    %163 = vector.broadcast %cst_113 : f32 to vector<64x2xf32>
    %164 = arith.mulf %163, %160 : vector<64x2xf32>
    %165 = arith.select %162, %160, %164 : vector<64x2xi1>, vector<64x2xf32>
    %c0_114 = arith.constant 0 : index
    %c0_115 = arith.constant 0 : index
    %166 = vector.load %arg24[%c0_114, %c0_115] : memref<32x64xf32, #tpu.memory_space<vmem>>, vector<32x64xf32>
    %c0_116 = arith.constant 0 : index
    %c0_117 = arith.constant 0 : index
    %167 = vector.load %arg25[%c0_116, %c0_117] : memref<32x1xf32, #tpu.memory_space<vmem>>, vector<32x1xf32>
    %cst_118 = arith.constant dense<0.000000e+00> : vector<32x2xf32>
    %168 = tpu.matmul %166, %165, %cst_118 {dimension_numbers = #tpu.dot_dimension_numbers<[1], [0], [0], [1], [0, 0, 1, 1], [], []>} : vector<32x64xf32>, vector<64x2xf32>, vector<32x2xf32> -> vector<32x2xf32>
    %169 = vector.broadcast %167 : vector<32x1xf32> to vector<32x2xf32>
    %170 = arith.addf %168, %169 : vector<32x2xf32>
    %cst_119 = arith.constant 0.000000e+00 : f32
    %171 = vector.broadcast %cst_119 : f32 to vector<32x2xf32>
    %172 = arith.cmpf oge, %170, %171 : vector<32x2xf32>
    %cst_120 = arith.constant 0.00999999977 : f32
    %173 = vector.broadcast %cst_120 : f32 to vector<32x2xf32>
    %174 = arith.mulf %173, %170 : vector<32x2xf32>
    %175 = arith.select %172, %170, %174 : vector<32x2xi1>, vector<32x2xf32>
    %c0_121 = arith.constant 0 : index
    %c0_122 = arith.constant 0 : index
    %176 = vector.load %arg26[%c0_121, %c0_122] : memref<2x32xf32, #tpu.memory_space<vmem>>, vector<2x32xf32>
    %c0_123 = arith.constant 0 : index
    %c0_124 = arith.constant 0 : index
    %177 = vector.load %arg27[%c0_123, %c0_124] : memref<2x1xf32, #tpu.memory_space<vmem>>, vector<2x1xf32>
    %cst_125 = arith.constant dense<0.000000e+00> : vector<2x2xf32>
    %178 = tpu.matmul %176, %175, %cst_125 {dimension_numbers = #tpu.dot_dimension_numbers<[1], [0], [0], [1], [0, 0, 1, 1], [], []>} : vector<2x32xf32>, vector<32x2xf32>, vector<2x2xf32> -> vector<2x2xf32>
    %179 = vector.broadcast %177 : vector<2x1xf32> to vector<2x2xf32>
    %180 = arith.addf %178, %179 : vector<2x2xf32>
    %cst_126 = arith.constant 0.000000e+00 : f32
    %181 = vector.broadcast %cst_126 : f32 to vector<2x2xf32>
    %182 = arith.cmpf oge, %180, %181 : vector<2x2xf32>
    %cst_127 = arith.constant 0.00999999977 : f32
    %183 = vector.broadcast %cst_127 : f32 to vector<2x2xf32>
    %184 = arith.mulf %183, %180 : vector<2x2xf32>
    %185 = arith.select %182, %180, %184 : vector<2x2xi1>, vector<2x2xf32>
    %c0_128 = arith.constant 0 : index
    %c0_129 = arith.constant 0 : index
    %186 = vector.load %arg28[%c0_128, %c0_129] : memref<2x2xf32, #tpu.memory_space<vmem>>, vector<2x2xf32>
    tpu.vector_store %arg28[%c0_128, %c0_129], %185 {strides = array<i32>} : memref<2x2xf32, #tpu.memory_space<vmem>>, vector<2x2xf32>,
    return
  }
}

</mosaic_0001>

<llo_original>
// kernel: _lambda_.1
$region0: #{_lambda_.1}
  #allocation0 [shape = 'u32[]', space=smem, size = 0x4, offset = 0x4, fixed_abs, tag = 'smem constant byte address 0x4 - core index']
  #allocation1 [shape = 'u32[144,128]{1,0:T(1,128)}', space=vmem, size = 0x12000, scoped, tag = 'internal scratch']
  %s0 = inlined_call_operand.vmem [shape: f32[8,128], index: 0, kind: input, shape index: {}]
  %s1 = inlined_call_operand.vmem [shape: f32[8,88], index: 1, kind: input, shape index: {}]
  %s2 = inlined_call_operand.hbm [shape: f32[8,1], index: 2, kind: input, shape index: {}]
  %s3 = inlined_call_operand.vmem [shape: f32[16,72], index: 3, kind: input, shape index: {}]
  %s4 = inlined_call_operand.hbm [shape: f32[16,1], index: 4, kind: input, shape index: {}]
  %s5 = inlined_call_operand.hbm [shape: f32[16,112], index: 5, kind: input, shape index: {}]
  %s6 = inlined_call_operand.hbm [shape: f32[16,1], index: 6, kind: input, shape index: {}]
  %s7 = inlined_call_operand.hbm [shape: f32[32,112], index: 7, kind: input, shape index: {}]
  %s8 = inlined_call_operand.hbm [shape: f32[32,1], index: 8, kind: input, shape index: {}]
  %s9 = inlined_call_operand.hbm [shape: f32[32,160], index: 9, kind: input, shape index: {}]
  %s10 = inlined_call_operand.hbm [shape: f32[32,1], index: 10, kind: input, shape index: {}]
  %s11 = inlined_call_operand.hbm [shape: f32[64,160], index: 11, kind: input, shape index: {}]
  %s12 = inlined_call_operand.hbm [shape: f32[64,1], index: 12, kind: input, shape index: {}]
  %s13 = inlined_call_operand.hbm [shape: f32[64,192], index: 13, kind: input, shape index: {}]
  %s14 = inlined_call_operand.hbm [shape: f32[64,1], index: 14, kind: input, shape index: {}]
  %s15 = inlined_call_operand.hbm [shape: f32[128,192], index: 15, kind: input, shape index: {}]
  %s16 = inlined_call_operand.hbm [shape: f32[128,1], index: 16, kind: input, shape index: {}]
  %s17 = inlined_call_operand.hbm [shape: f32[128,384], index: 17, kind: input, shape index: {}]
  %s18 = inlined_call_operand.hbm [shape: f32[128,1], index: 18, kind: input, shape index: {}]
  %s19 = inlined_call_operand.hbm [shape: f32[128,2], index: 19, kind: input, shape index: {}]
  %s20 = inlined_call_operand.hbm [shape: f32[128,128], index: 20, kind: input, shape index: {}]
  %s21 = inlined_call_operand.hbm [shape: f32[128,1], index: 21, kind: input, shape index: {}]
  %s22 = inlined_call_operand.vmem [shape: f32[64,128], index: 22, kind: input, shape index: {}]
  %s23 = inlined_call_operand.hbm [shape: f32[64,1], index: 23, kind: input, shape index: {}]
  %s24 = inlined_call_operand.vmem [shape: f32[32,64], index: 24, kind: input, shape index: {}]
  %s25 = inlined_call_operand.hbm [shape: f32[32,1], index: 25, kind: input, shape index: {}]
  %s26 = inlined_call_operand.vmem [shape: f32[2,32], index: 26, kind: input, shape index: {}]
  %s27 = inlined_call_operand.hbm [shape: f32[2,1], index: 27, kind: input, shape index: {}]
  %s28 = inlined_call_operand.vmem [shape: f32[2,2], index: 28, kind: output, shape index: {}]
  %s29 = sld [smem:[#allocation0]]
  $region210: #{_lambda_.1} parent=0
    _
  %s31 = ssub.s32 1, %s29
  %s32 = scalar_select 0, %s31, %s29
  $region1: #{_lambda_.1} parent=0
    #allocation2 [shape = 'u8[4096]{0}', space=vmem, size = 0x1000, scoped, tag = 'input window, operand 2, single buffered']
    #allocation3 [shape = 's32[1]{0}', space=sflag, size = 0x4, scoped, tag = 'scoped memory for _lambda_.1']
    #allocation4 [shape = 'u8[8192]{0}', space=vmem, size = 0x2000, scoped, tag = 'input window, operand 4, single buffered']
    #allocation5 [shape = 's32[1]{0}', space=sflag, size = 0x4, scoped, tag = 'scoped memory for _lambda_.1']
    #allocation6 [shape = 'u8[8192]{0}', space=vmem, size = 0x2000, scoped, tag = 'input window, operand 5, single buffered']
    #allocation7 [shape = 'u8[8192]{0}', space=vmem, size = 0x2000, scoped, tag = 'input window, operand 6, single buffered']
    #allocation8 [shape = 's32[1]{0}', space=sflag, size = 0x4, scoped, tag = 'scoped memory for _lambda_.1']
    #allocation9 [shape = 'u8[16384]{0}', space=vmem, size = 0x4000, scoped, tag = 'input window, operand 7, single buffered']
    #allocation10 [shape = 'u8[16384]{0}', space=vmem, size = 0x4000, scoped, tag = 'input window, operand 8, single buffered']
    #allocation11 [shape = 's32[1]{0}', space=sflag, size = 0x4, scoped, tag = 'scoped memory for _lambda_.1']
    #allocation12 [shape = 'u8[32768]{0}', space=vmem, size = 0x8000, scoped, tag = 'input window, operand 9, single buffered']
    #allocation13 [shape = 'u8[16384]{0}', space=vmem, size = 0x4000, scoped, tag = 'input window, operand 10, single buffered']
    #allocation14 [shape = 's32[1]{0}', space=sflag, size = 0x4, scoped, tag = 'scoped memory for _lambda_.1']
    #allocation15 [shape = 'u8[65536]{0}', space=vmem, size = 0x10000, scoped, tag = 'input window, operand 11, single buffered']
    #allocation16 [shape = 'u8[32768]{0}', space=vmem, size = 0x8000, scoped, tag = 'input window, operand 12, single buffered']
    #allocation17 [shape = 's32[1]{0}', space=sflag, size = 0x4, scoped, tag = 'scoped memory for _lambda_.1']
    #allocation18 [shape = 'u8[65536]{0}', space=vmem, size = 0x10000, scoped, tag = 'input window, operand 13, single buffered']
    #allocation19 [shape = 'u8[32768]{0}', space=vmem, size = 0x8000, scoped, tag = 'input window, operand 14, single buffered']
    #allocation20 [shape = 's32[1]{0}', space=sflag, size = 0x4, scoped, tag = 'scoped memory for _lambda_.1']
    #allocation21 [shape = 'u8[131072]{0}', space=vmem, size = 0x20000, scoped, tag = 'input window, operand 15, single buffered']
    #allocation22 [shape = 'u8[65536]{0}', space=vmem, size = 0x10000, scoped, tag = 'input window, operand 16, single buffered']
    #allocation23 [shape = 's32[1]{0}', space=sflag, size = 0x4, scoped, tag = 'scoped memory for _lambda_.1']
    #allocation24 [shape = 'u8[196608]{0}', space=vmem, size = 0x30000, scoped, tag = 'input window, operand 17, single buffered']
    #allocation25 [shape = 'u8[65536]{0}', space=vmem, size = 0x10000, scoped, tag = 'input window, operand 18, single buffered']
    #allocation26 [shape = 's32[1]{0}', space=sflag, size = 0x4, scoped, tag = 'scoped memory for _lambda_.1']
    #allocation27 [shape = 'u8[65536]{0}', space=vmem, size = 0x10000, scoped, tag = 'input window, operand 19, single buffered']
    #allocation28 [shape = 'u8[65536]{0}', space=vmem, size = 0x10000, scoped, tag = 'input window, operand 20, single buffered']
    #allocation29 [shape = 's32[1]{0}', space=sflag, size = 0x4, scoped, tag = 'scoped memory for _lambda_.1']
    #allocation30 [shape = 'u8[65536]{0}', space=vmem, size = 0x10000, scoped, tag = 'input window, operand 21, single buffered']
    #allocation31 [shape = 'u8[32768]{0}', space=vmem, size = 0x8000, scoped, tag = 'input window, operand 23, single buffered']
    #allocation32 [shape = 's32[1]{0}', space=sflag, size = 0x4, scoped, tag = 'scoped memory for _lambda_.1']
    #allocation33 [shape = 'u8[16384]{0}', space=vmem, size = 0x4000, scoped, tag = 'input window, operand 25, single buffered']
    #allocation34 [shape = 'u8[1024]{0}', space=vmem, size = 0x400, scoped, tag = 'input window, operand 27, single buffered']
    #allocation35 [shape = 's32[1]{0}', space=sflag, size = 0x4, scoped, tag = 'scoped memory for _lambda_.1']
    %33 = vsyncpa [#allocation3], 0
    %34 = vsyncpa [#allocation5], 0
    %35 = vsyncpa [#allocation8], 0
    %36 = vsyncpa [#allocation11], 0
    %37 = vsyncpa [#allocation14], 0
    %38 = vsyncpa [#allocation17], 0
    %39 = vsyncpa [#allocation20], 0
    %40 = vsyncpa [#allocation23], 0
    %41 = vsyncpa [#allocation26], 0
    %42 = vsyncpa [#allocation29], 0
    %43 = vsyncpa [#allocation32], 0
    %44 = vsyncpa [#allocation35], 0
    // Predicated region
    $region2: #{_lambda_.1} parent=1 // pred_check
      _
    $region3: #{_lambda_.1} parent=1 // pred_check_branch
      %46 = sbr.rel (0) target = $region5
    $region4: #{_lambda_.1} parent=1 // pred_region
      _
    $region5: #{_lambda_.1} parent=1 // pred_fallthru
      _
    // Predicated region
    $region6: #{_lambda_.1} parent=1 // pred_check
      _
    $region7: #{_lambda_.1} parent=1 // pred_check_branch
      %48 = sbr.rel (0) target = $region9
    $region8: #{_lambda_.1} parent=1 // pred_region
      _
    $region9: #{_lambda_.1} parent=1 // pred_fallthru
      _
    // Predicated region
    $region10: #{_lambda_.1} parent=1 // pred_check
      _
    $region11: #{_lambda_.1} parent=1 // pred_check_branch
      %50 = sbr.rel (0) target = $region13
    $region12: #{_lambda_.1} parent=1 // pred_region
      %s52 = ssub.s32 128, 128
      %53 = vsyncadd [#allocation3], %s52
      %s55 = sshll.u32 [#allocation2], 4
      %s56 = int_to_ptr.vmem [resolvable:$true] %s55
      %58 = dma.hbm_to_vmem [thread:$0]  %s2, 128, %s56, [#allocation3]
    $region13: #{_lambda_.1} parent=1 // pred_fallthru
      _
    // Predicated region
    $region14: #{_lambda_.1} parent=1 // pred_check
      _
    $region15: #{_lambda_.1} parent=1 // pred_check_branch
      %60 = sbr.rel (0) target = $region17
    $region16: #{_lambda_.1} parent=1 // pred_region
      _
    $region17: #{_lambda_.1} parent=1 // pred_fallthru
      _
    // Predicated region
    $region18: #{_lambda_.1} parent=1 // pred_check
      _
    $region19: #{_lambda_.1} parent=1 // pred_check_branch
      %62 = sbr.rel (0) target = $region21
    $region20: #{_lambda_.1} parent=1 // pred_region
      %s64 = ssub.s32 256, 256
      %65 = vsyncadd [#allocation5], %s64
      %s66 = sshll.u32 [#allocation4], 4
      %s67 = int_to_ptr.vmem [resolvable:$true] %s66
      %72 = dma.hbm_to_vmem [thread:$0]  %s4, 256, %s67, [#allocation5], 128, 128, 8
    $region21: #{_lambda_.1} parent=1 // pred_fallthru
      _
    // Predicated region
    $region22: #{_lambda_.1} parent=1 // pred_check
      _
    $region23: #{_lambda_.1} parent=1 // pred_check_branch
      %74 = sbr.rel (0) target = $region25
    $region24: #{_lambda_.1} parent=1 // pred_region
      %s76 = ssub.s32 256, 256
      %77 = vsyncadd [#allocation5], %s76
      %s78 = sshll.u32 [#allocation6], 4
      %s79 = int_to_ptr.vmem [resolvable:$true] %s78
      %84 = dma.hbm_to_vmem [thread:$0]  %s5, 256, %s79, [#allocation5], 128, 128, 8
    $region25: #{_lambda_.1} parent=1 // pred_fallthru
      _
    // Predicated region
    $region26: #{_lambda_.1} parent=1 // pred_check
      _
    $region27: #{_lambda_.1} parent=1 // pred_check_branch
      %86 = sbr.rel (0) target = $region29
    $region28: #{_lambda_.1} parent=1 // pred_region
      %s88 = ssub.s32 256, 256
      %89 = vsyncadd [#allocation8], %s88
      %s90 = sshll.u32 [#allocation7], 4
      %s91 = int_to_ptr.vmem [resolvable:$true] %s90
      %96 = dma.hbm_to_vmem [thread:$0]  %s6, 256, %s91, [#allocation8], 128, 128, 8
    $region29: #{_lambda_.1} parent=1 // pred_fallthru
      _
    // Predicated region
    $region30: #{_lambda_.1} parent=1 // pred_check
      _
    $region31: #{_lambda_.1} parent=1 // pred_check_branch
      %98 = sbr.rel (0) target = $region33
    $region32: #{_lambda_.1} parent=1 // pred_region
      %s100 = ssub.s32 512, 512
      %101 = vsyncadd [#allocation8], %s100
      %s102 = sshll.u32 [#allocation9], 4
      %s103 = int_to_ptr.vmem [resolvable:$true] %s102
      %108 = dma.hbm_to_vmem [thread:$0]  %s7, 512, %s103, [#allocation8], 128, 128, 8
    $region33: #{_lambda_.1} parent=1 // pred_fallthru
      _
    // Predicated region
    $region34: #{_lambda_.1} parent=1 // pred_check
      _
    $region35: #{_lambda_.1} parent=1 // pred_check_branch
      %110 = sbr.rel (0) target = $region37
    $region36: #{_lambda_.1} parent=1 // pred_region
      %s112 = ssub.s32 512, 512
      %113 = vsyncadd [#allocation11], %s112
      %s114 = sshll.u32 [#allocation10], 4
      %s115 = int_to_ptr.vmem [resolvable:$true] %s114
      %120 = dma.hbm_to_vmem [thread:$0]  %s8, 512, %s115, [#allocation11], 128, 128, 8
    $region37: #{_lambda_.1} parent=1 // pred_fallthru
      _
    // Predicated region
    $region38: #{_lambda_.1} parent=1 // pred_check
      _
    $region39: #{_lambda_.1} parent=1 // pred_check_branch
      %122 = sbr.rel (0) target = $region41
    $region40: #{_lambda_.1} parent=1 // pred_region
      %s124 = ssub.s32 1024, 1024
      %125 = vsyncadd [#allocation11], %s124
      %s126 = sshll.u32 [#allocation12], 4
      %s127 = int_to_ptr.vmem [resolvable:$true] %s126
      %132 = dma.hbm_to_vmem [thread:$0]  %s9, 1024, %s127, [#allocation11], 256, 256, 16
    $region41: #{_lambda_.1} parent=1 // pred_fallthru
      _
    // Predicated region
    $region42: #{_lambda_.1} parent=1 // pred_check
      _
    $region43: #{_lambda_.1} parent=1 // pred_check_branch
      %134 = sbr.rel (0) target = $region45
    $region44: #{_lambda_.1} parent=1 // pred_region
      %s136 = ssub.s32 512, 512
      %137 = vsyncadd [#allocation14], %s136
      %s138 = sshll.u32 [#allocation13], 4
      %s139 = int_to_ptr.vmem [resolvable:$true] %s138
      %144 = dma.hbm_to_vmem [thread:$0]  %s10, 512, %s139, [#allocation14], 128, 128, 8
    $region45: #{_lambda_.1} parent=1 // pred_fallthru
      _
    // Predicated region
    $region46: #{_lambda_.1} parent=1 // pred_check
      _
    $region47: #{_lambda_.1} parent=1 // pred_check_branch
      %146 = sbr.rel (0) target = $region49
    $region48: #{_lambda_.1} parent=1 // pred_region
      %s148 = ssub.s32 2048, 2048
      %149 = vsyncadd [#allocation14], %s148
      %s150 = sshll.u32 [#allocation15], 4
      %s151 = int_to_ptr.vmem [resolvable:$true] %s150
      %156 = dma.hbm_to_vmem [thread:$0]  %s11, 2048, %s151, [#allocation14], 256, 256, 16
    $region49: #{_lambda_.1} parent=1 // pred_fallthru
      _
    // Predicated region
    $region50: #{_lambda_.1} parent=1 // pred_check
      _
    $region51: #{_lambda_.1} parent=1 // pred_check_branch
      %158 = sbr.rel (0) target = $region53
    $region52: #{_lambda_.1} parent=1 // pred_region
      %s160 = ssub.s32 1024, 1024
      %161 = vsyncadd [#allocation17], %s160
      %s162 = sshll.u32 [#allocation16], 4
      %s163 = int_to_ptr.vmem [resolvable:$true] %s162
      %168 = dma.hbm_to_vmem [thread:$0]  %s12, 1024, %s163, [#allocation17], 128, 128, 8
    $region53: #{_lambda_.1} parent=1 // pred_fallthru
      _
    // Predicated region
    $region54: #{_lambda_.1} parent=1 // pred_check
      _
    $region55: #{_lambda_.1} parent=1 // pred_check_branch
      %170 = sbr.rel (0) target = $region57
    $region56: #{_lambda_.1} parent=1 // pred_region
      %s172 = ssub.s32 2048, 2048
      %173 = vsyncadd [#allocation17], %s172
      %s174 = sshll.u32 [#allocation18], 4
      %s175 = int_to_ptr.vmem [resolvable:$true] %s174
      %180 = dma.hbm_to_vmem [thread:$0]  %s13, 2048, %s175, [#allocation17], 256, 256, 16
    $region57: #{_lambda_.1} parent=1 // pred_fallthru
      _
    // Predicated region
    $region58: #{_lambda_.1} parent=1 // pred_check
      _
    $region59: #{_lambda_.1} parent=1 // pred_check_branch
      %182 = sbr.rel (0) target = $region61
    $region60: #{_lambda_.1} parent=1 // pred_region
      %s184 = ssub.s32 1024, 1024
      %185 = vsyncadd [#allocation20], %s184
      %s186 = sshll.u32 [#allocation19], 4
      %s187 = int_to_ptr.vmem [resolvable:$true] %s186
      %192 = dma.hbm_to_vmem [thread:$0]  %s14, 1024, %s187, [#allocation20], 128, 128, 8
    $region61: #{_lambda_.1} parent=1 // pred_fallthru
      _
    // Predicated region
    $region62: #{_lambda_.1} parent=1 // pred_check
      _
    $region63: #{_lambda_.1} parent=1 // pred_check_branch
      %194 = sbr.rel (0) target = $region65
    $region64: #{_lambda_.1} parent=1 // pred_region
      %s196 = ssub.s32 4096, 4096
      %197 = vsyncadd [#allocation20], %s196
      %s198 = sshll.u32 [#allocation21], 4
      %s199 = int_to_ptr.vmem [resolvable:$true] %s198
      %204 = dma.hbm_to_vmem [thread:$0]  %s15, 4096, %s199, [#allocation20], 256, 256, 16
    $region65: #{_lambda_.1} parent=1 // pred_fallthru
      _
    // Predicated region
    $region66: #{_lambda_.1} parent=1 // pred_check
      _
    $region67: #{_lambda_.1} parent=1 // pred_check_branch
      %206 = sbr.rel (0) target = $region69
    $region68: #{_lambda_.1} parent=1 // pred_region
      %s208 = ssub.s32 2048, 2048
      %209 = vsyncadd [#allocation23], %s208
      %s210 = sshll.u32 [#allocation22], 4
      %s211 = int_to_ptr.vmem [resolvable:$true] %s210
      %216 = dma.hbm_to_vmem [thread:$0]  %s16, 2048, %s211, [#allocation23], 128, 128, 8
    $region69: #{_lambda_.1} parent=1 // pred_fallthru
      _
    // Predicated region
    $region70: #{_lambda_.1} parent=1 // pred_check
      _
    $region71: #{_lambda_.1} parent=1 // pred_check_branch
      %218 = sbr.rel (0) target = $region73
    $region72: #{_lambda_.1} parent=1 // pred_region
      %s220 = ssub.s32 6144, 6144
      %221 = vsyncadd [#allocation23], %s220
      %s222 = sshll.u32 [#allocation24], 4
      %s223 = int_to_ptr.vmem [resolvable:$true] %s222
      %228 = dma.hbm_to_vmem [thread:$0]  %s17, 6144, %s223, [#allocation23], 384, 384, 24
    $region73: #{_lambda_.1} parent=1 // pred_fallthru
      _
    // Predicated region
    $region74: #{_lambda_.1} parent=1 // pred_check
      _
    $region75: #{_lambda_.1} parent=1 // pred_check_branch
      %230 = sbr.rel (0) target = $region77
    $region76: #{_lambda_.1} parent=1 // pred_region
      %s232 = ssub.s32 2048, 2048
      %233 = vsyncadd [#allocation26], %s232
      %s234 = sshll.u32 [#allocation25], 4
      %s235 = int_to_ptr.vmem [resolvable:$true] %s234
      %240 = dma.hbm_to_vmem [thread:$0]  %s18, 2048, %s235, [#allocation26], 128, 128, 8
    $region77: #{_lambda_.1} parent=1 // pred_fallthru
      _
    // Predicated region
    $region78: #{_lambda_.1} parent=1 // pred_check
      _
    $region79: #{_lambda_.1} parent=1 // pred_check_branch
      %242 = sbr.rel (0) target = $region81
    $region80: #{_lambda_.1} parent=1 // pred_region
      %s244 = ssub.s32 2048, 2048
      %245 = vsyncadd [#allocation26], %s244
      %s246 = sshll.u32 [#allocation27], 4
      %s247 = int_to_ptr.vmem [resolvable:$true] %s246
      %252 = dma.hbm_to_vmem [thread:$0]  %s19, 2048, %s247, [#allocation26], 128, 128, 8
    $region81: #{_lambda_.1} parent=1 // pred_fallthru
      _
    // Predicated region
    $region82: #{_lambda_.1} parent=1 // pred_check
      _
    $region83: #{_lambda_.1} parent=1 // pred_check_branch
      %254 = sbr.rel (0) target = $region85
    $region84: #{_lambda_.1} parent=1 // pred_region
      %s256 = ssub.s32 2048, 2048
      %257 = vsyncadd [#allocation29], %s256
      %s258 = sshll.u32 [#allocation28], 4
      %s259 = int_to_ptr.vmem [resolvable:$true] %s258
      %264 = dma.hbm_to_vmem [thread:$0]  %s20, 2048, %s259, [#allocation29], 128, 128, 8
    $region85: #{_lambda_.1} parent=1 // pred_fallthru
      _
    // Predicated region
    $region86: #{_lambda_.1} parent=1 // pred_check
      _
    $region87: #{_lambda_.1} parent=1 // pred_check_branch
      %266 = sbr.rel (0) target = $region89
    $region88: #{_lambda_.1} parent=1 // pred_region
      %s268 = ssub.s32 2048, 2048
      %269 = vsyncadd [#allocation29], %s268
      %s270 = sshll.u32 [#allocation30], 4
      %s271 = int_to_ptr.vmem [resolvable:$true] %s270
      %276 = dma.hbm_to_vmem [thread:$0]  %s21, 2048, %s271, [#allocation29], 128, 128, 8
    $region89: #{_lambda_.1} parent=1 // pred_fallthru
      _
    // Predicated region
    $region90: #{_lambda_.1} parent=1 // pred_check
      _
    $region91: #{_lambda_.1} parent=1 // pred_check_branch
      %278 = sbr.rel (0) target = $region93
    $region92: #{_lambda_.1} parent=1 // pred_region
      _
    $region93: #{_lambda_.1} parent=1 // pred_fallthru
      _
    // Predicated region
    $region94: #{_lambda_.1} parent=1 // pred_check
      _
    $region95: #{_lambda_.1} parent=1 // pred_check_branch
      %280 = sbr.rel (0) target = $region97
    $region96: #{_lambda_.1} parent=1 // pred_region
      %s282 = ssub.s32 1024, 1024
      %283 = vsyncadd [#allocation32], %s282
      %s284 = sshll.u32 [#allocation31], 4
      %s285 = int_to_ptr.vmem [resolvable:$true] %s284
      %290 = dma.hbm_to_vmem [thread:$0]  %s23, 1024, %s285, [#allocation32], 128, 128, 8
    $region97: #{_lambda_.1} parent=1 // pred_fallthru
      _
    // Predicated region
    $region98: #{_lambda_.1} parent=1 // pred_check
      _
    $region99: #{_lambda_.1} parent=1 // pred_check_branch
      %292 = sbr.rel (0) target = $region101
    $region100: #{_lambda_.1} parent=1 // pred_region
      _
    $region101: #{_lambda_.1} parent=1 // pred_fallthru
      _
    // Predicated region
    $region102: #{_lambda_.1} parent=1 // pred_check
      _
    $region103: #{_lambda_.1} parent=1 // pred_check_branch
      %294 = sbr.rel (0) target = $region105
    $region104: #{_lambda_.1} parent=1 // pred_region
      %s296 = ssub.s32 512, 512
      %297 = vsyncadd [#allocation32], %s296
      %s298 = sshll.u32 [#allocation33], 4
      %s299 = int_to_ptr.vmem [resolvable:$true] %s298
      %304 = dma.hbm_to_vmem [thread:$0]  %s25, 512, %s299, [#allocation32], 128, 128, 8
    $region105: #{_lambda_.1} parent=1 // pred_fallthru
      _
    // Predicated region
    $region106: #{_lambda_.1} parent=1 // pred_check
      _
    $region107: #{_lambda_.1} parent=1 // pred_check_branch
      %306 = sbr.rel (0) target = $region109
    $region108: #{_lambda_.1} parent=1 // pred_region
      _
    $region109: #{_lambda_.1} parent=1 // pred_fallthru
      _
    // Predicated region
    $region110: #{_lambda_.1} parent=1 // pred_check
      _
    $region111: #{_lambda_.1} parent=1 // pred_check_branch
      %308 = sbr.rel (0) target = $region113
    $region112: #{_lambda_.1} parent=1 // pred_region
      %s310 = ssub.s32 32, 32
      %311 = vsyncadd [#allocation35], %s310
      %s313 = sshll.u32 [#allocation34], 4
      %s314 = int_to_ptr.vmem [resolvable:$true] %s313
      %316 = dma.hbm_to_vmem [thread:$0]  %s27, 32, %s314, [#allocation35]
    $region113: #{_lambda_.1} parent=1 // pred_fallthru
      _
    // Predicated region
    $region114: #{_lambda_.1} parent=1 // pred_check
      _
    $region115: #{_lambda_.1} parent=1 // pred_check_branch
      %318 = sbr.rel (0) target = $region117
    $region116: #{_lambda_.1} parent=1 // pred_region
      %319 = dma.done [#allocation3], 128
    $region117: #{_lambda_.1} parent=1 // pred_fallthru
      _
    // Predicated region
    $region118: #{_lambda_.1} parent=1 // pred_check
      _
    $region119: #{_lambda_.1} parent=1 // pred_check_branch
      %321 = sbr.rel (0) target = $region121
    $region120: #{_lambda_.1} parent=1 // pred_region
      %322 = dma.done [#allocation5], 256
    $region121: #{_lambda_.1} parent=1 // pred_fallthru
      _
    // Predicated region
    $region122: #{_lambda_.1} parent=1 // pred_check
      _
    $region123: #{_lambda_.1} parent=1 // pred_check_branch
      %324 = sbr.rel (0) target = $region125
    $region124: #{_lambda_.1} parent=1 // pred_region
      %325 = dma.done [#allocation5], 256
    $region125: #{_lambda_.1} parent=1 // pred_fallthru
      _
    // Predicated region
    $region126: #{_lambda_.1} parent=1 // pred_check
      _
    $region127: #{_lambda_.1} parent=1 // pred_check_branch
      %327 = sbr.rel (0) target = $region129
    $region128: #{_lambda_.1} parent=1 // pred_region
      %328 = dma.done [#allocation8], 256
    $region129: #{_lambda_.1} parent=1 // pred_fallthru
      _
    // Predicated region
    $region130: #{_lambda_.1} parent=1 // pred_check
      _
    $region131: #{_lambda_.1} parent=1 // pred_check_branch
      %330 = sbr.rel (0) target = $region133
    $region132: #{_lambda_.1} parent=1 // pred_region
      %331 = dma.done [#allocation8], 512
    $region133: #{_lambda_.1} parent=1 // pred_fallthru
      _
    // Predicated region
    $region134: #{_lambda_.1} parent=1 // pred_check
      _
    $region135: #{_lambda_.1} parent=1 // pred_check_branch
      %333 = sbr.rel (0) target = $region137
    $region136: #{_lambda_.1} parent=1 // pred_region
      %334 = dma.done [#allocation11], 512
    $region137: #{_lambda_.1} parent=1 // pred_fallthru
      _
    // Predicated region
    $region138: #{_lambda_.1} parent=1 // pred_check
      _
    $region139: #{_lambda_.1} parent=1 // pred_check_branch
      %336 = sbr.rel (0) target = $region141
    $region140: #{_lambda_.1} parent=1 // pred_region
      %337 = dma.done [#allocation11], 1024
    $region141: #{_lambda_.1} parent=1 // pred_fallthru
      _
    // Predicated region
    $region142: #{_lambda_.1} parent=1 // pred_check
      _
    $region143: #{_lambda_.1} parent=1 // pred_check_branch
      %339 = sbr.rel (0) target = $region145
    $region144: #{_lambda_.1} parent=1 // pred_region
      %340 = dma.done [#allocation14], 512
    $region145: #{_lambda_.1} parent=1 // pred_fallthru
      _
    // Predicated region
    $region146: #{_lambda_.1} parent=1 // pred_check
      _
    $region147: #{_lambda_.1} parent=1 // pred_check_branch
      %342 = sbr.rel (0) target = $region149
    $region148: #{_lambda_.1} parent=1 // pred_region
      %343 = dma.done [#allocation14], 2048
    $region149: #{_lambda_.1} parent=1 // pred_fallthru
      _
    // Predicated region
    $region150: #{_lambda_.1} parent=1 // pred_check
      _
    $region151: #{_lambda_.1} parent=1 // pred_check_branch
      %345 = sbr.rel (0) target = $region153
    $region152: #{_lambda_.1} parent=1 // pred_region
      %346 = dma.done [#allocation17], 1024
    $region153: #{_lambda_.1} parent=1 // pred_fallthru
      _
    // Predicated region
    $region154: #{_lambda_.1} parent=1 // pred_check
      _
    $region155: #{_lambda_.1} parent=1 // pred_check_branch
      %348 = sbr.rel (0) target = $region157
    $region156: #{_lambda_.1} parent=1 // pred_region
      %349 = dma.done [#allocation17], 2048
    $region157: #{_lambda_.1} parent=1 // pred_fallthru
      _
    // Predicated region
    $region158: #{_lambda_.1} parent=1 // pred_check
      _
    $region159: #{_lambda_.1} parent=1 // pred_check_branch
      %351 = sbr.rel (0) target = $region161
    $region160: #{_lambda_.1} parent=1 // pred_region
      %352 = dma.done [#allocation20], 1024
    $region161: #{_lambda_.1} parent=1 // pred_fallthru
      _
    // Predicated region
    $region162: #{_lambda_.1} parent=1 // pred_check
      _
    $region163: #{_lambda_.1} parent=1 // pred_check_branch
      %354 = sbr.rel (0) target = $region165
    $region164: #{_lambda_.1} parent=1 // pred_region
      %355 = dma.done [#allocation20], 4096
    $region165: #{_lambda_.1} parent=1 // pred_fallthru
      _
    // Predicated region
    $region166: #{_lambda_.1} parent=1 // pred_check
      _
    $region167: #{_lambda_.1} parent=1 // pred_check_branch
      %357 = sbr.rel (0) target = $region169
    $region168: #{_lambda_.1} parent=1 // pred_region
      %358 = dma.done [#allocation23], 2048
    $region169: #{_lambda_.1} parent=1 // pred_fallthru
      _
    // Predicated region
    $region170: #{_lambda_.1} parent=1 // pred_check
      _
    $region171: #{_lambda_.1} parent=1 // pred_check_branch
      %360 = sbr.rel (0) target = $region173
    $region172: #{_lambda_.1} parent=1 // pred_region
      %361 = dma.done [#allocation23], 6144
    $region173: #{_lambda_.1} parent=1 // pred_fallthru
      _
    // Predicated region
    $region174: #{_lambda_.1} parent=1 // pred_check
      _
    $region175: #{_lambda_.1} parent=1 // pred_check_branch
      %363 = sbr.rel (0) target = $region177
    $region176: #{_lambda_.1} parent=1 // pred_region
      %364 = dma.done [#allocation26], 2048
    $region177: #{_lambda_.1} parent=1 // pred_fallthru
      _
    // Predicated region
    $region178: #{_lambda_.1} parent=1 // pred_check
      _
    $region179: #{_lambda_.1} parent=1 // pred_check_branch
      %366 = sbr.rel (0) target = $region181
    $region180: #{_lambda_.1} parent=1 // pred_region
      %367 = dma.done [#allocation26], 2048
    $region181: #{_lambda_.1} parent=1 // pred_fallthru
      _
    // Predicated region
    $region182: #{_lambda_.1} parent=1 // pred_check
      _
    $region183: #{_lambda_.1} parent=1 // pred_check_branch
      %369 = sbr.rel (0) target = $region185
    $region184: #{_lambda_.1} parent=1 // pred_region
      %370 = dma.done [#allocation29], 2048
    $region185: #{_lambda_.1} parent=1 // pred_fallthru
      _
    // Predicated region
    $region186: #{_lambda_.1} parent=1 // pred_check
      _
    $region187: #{_lambda_.1} parent=1 // pred_check_branch
      %372 = sbr.rel (0) target = $region189
    $region188: #{_lambda_.1} parent=1 // pred_region
      %373 = dma.done [#allocation29], 2048
    $region189: #{_lambda_.1} parent=1 // pred_fallthru
      _
    // Predicated region
    $region190: #{_lambda_.1} parent=1 // pred_check
      _
    $region191: #{_lambda_.1} parent=1 // pred_check_branch
      %375 = sbr.rel (0) target = $region193
    $region192: #{_lambda_.1} parent=1 // pred_region
      %376 = dma.done [#allocation32], 1024
    $region193: #{_lambda_.1} parent=1 // pred_fallthru
      _
    // Predicated region
    $region194: #{_lambda_.1} parent=1 // pred_check
      _
    $region195: #{_lambda_.1} parent=1 // pred_check_branch
      %378 = sbr.rel (0) target = $region197
    $region196: #{_lambda_.1} parent=1 // pred_region
      %379 = dma.done [#allocation32], 512
    $region197: #{_lambda_.1} parent=1 // pred_fallthru
      _
    // Predicated region
    $region198: #{_lambda_.1} parent=1 // pred_check
      _
    $region199: #{_lambda_.1} parent=1 // pred_check_branch
      %381 = sbr.rel (0) target = $region201
    $region200: #{_lambda_.1} parent=1 // pred_region
      %382 = dma.done [#allocation35], 32
    $region201: #{_lambda_.1} parent=1 // pred_fallthru
      _
    %v383 = vld [vmem:[%s0] sm:$0xff]
    %v384 = vld [vmem:[%s1] sm:$0xff]
    %v385 = vld [vmem:[#allocation2] sm:$0xff]
    %386 = vrot.lane.b32.xlu0 %v383, 127
    %v387 = vpop.permute.xlu0 %386
    %388 = vrot.lane.b32.xlu0 %v383, 126
    %v389 = vpop.permute.xlu0 %388
    %390 = vrot.lane.b32.xlu0 %v383, 125
    %v391 = vpop.permute.xlu0 %390
    %392 = vrot.lane.b32.xlu0 %v383, 124
    %v393 = vpop.permute.xlu0 %392
    %394 = vrot.lane.b32.xlu0 %v383, 123
    %v395 = vpop.permute.xlu0 %394
    %396 = vrot.lane.b32.xlu0 %v383, 122
    %v397 = vpop.permute.xlu0 %396
    %398 = vrot.lane.b32.xlu0 %v383, 121
    %v399 = vpop.permute.xlu0 %398
    %400 = vrot.lane.b32.xlu0 %v383, 120
    %v401 = vpop.permute.xlu0 %400
    %402 = vrot.lane.b32.xlu0 %v383, 119
    %v403 = vpop.permute.xlu0 %402
    %404 = vrot.lane.b32.xlu0 %v383, 118
    %v405 = vpop.permute.xlu0 %404
    %407 = vset.pattern.permute.xlu0 0
    %408 = vperm.xlu0 %407, %v385
    %v409 = vpop.permute.xlu0 %408
    %vm411 = vcmask 719872
    %v413 = vsel %vm411, %v384, 0
    %415 = vmatprep.subr.mxu0 0.0
    %416 = vmatpush1.msra.mxu0 %v383
    %417 = vmatprep.subr.mxu0 0.0
    %418 = vmatpush1.msra.mxu0 %v387
    %419 = vmatprep.subr.mxu0 0.0
    %420 = vmatpush1.msra.mxu0 %v389
    %421 = vmatprep.subr.mxu0 0.0
    %422 = vmatpush1.msra.mxu0 %v391
    %423 = vmatprep.subr.mxu0 0.0
    %424 = vmatpush1.msra.mxu0 %v393
    %425 = vmatprep.subr.mxu0 0.0
    %426 = vmatpush1.msra.mxu0 %v395
    %427 = vmatprep.subr.mxu0 0.0
    %428 = vmatpush1.msra.mxu0 %v397
    %429 = vmatprep.subr.mxu0 0.0
    %430 = vmatpush1.msra.mxu0 %v399
    %431 = vmatprep.subr.mxu0 0.0
    %432 = vmatpush1.msra.mxu0 %v401
    %433 = vmatprep.subr.mxu0 0.0
    %434 = vmatpush1.msra.mxu0 %v403
    %435 = vmatprep.subr.mxu0 0.0
    %436 = vmatpush1.msra.mxu0 %v405
    %437 = vmatprep.subr.mxu0 0.0
    %438 = vmatpush1.msra.mxu0 0.0
    %439 = vmatprep.subr.mxu0 0.0
    %440 = vmatpush1.msra.mxu0 0.0
    %441 = vmatprep.subr.mxu0 0.0
    %442 = vmatpush1.msra.mxu0 0.0
    %443 = vmatprep.subr.mxu0 0.0
    %444 = vmatpush1.msra.mxu0 0.0
    %445 = vmatprep.subr.mxu0 0.0
    %446 = vmatpush1.msra.mxu0 0.0
    %447 = vmatprep.subr.mxu0 0.0
    %448 = vmatpush1.msra.mxu0 0.0
    %449 = vmatprep.subr.mxu0 0.0
    %450 = vmatpush1.msra.mxu0 0.0
    %451 = vmatprep.subr.mxu0 0.0
    %452 = vmatpush1.msra.mxu0 0.0
    %453 = vmatprep.subr.mxu0 0.0
    %454 = vmatpush1.msra.mxu0 0.0
    %455 = vmatprep.subr.mxu0 0.0
    %456 = vmatpush1.msra.mxu0 0.0
    %457 = vmatprep.subr.mxu0 0.0
    %458 = vmatpush1.msra.mxu0 0.0
    %459 = vmatprep.subr.mxu0 0.0
    %460 = vmatpush1.msra.mxu0 0.0
    %461 = vmatprep.subr.mxu0 0.0
    %462 = vmatpush1.msra.mxu0 0.0
    %463 = vmatprep.subr.mxu0 0.0
    %464 = vmatpush1.msra.mxu0 0.0
    %465 = vmatprep.subr.mxu0 0.0
    %466 = vmatpush1.msra.mxu0 0.0
    %467 = vmatprep.subr.mxu0 0.0
    %468 = vmatpush1.msra.mxu0 0.0
    %469 = vmatprep.subr.mxu0 0.0
    %470 = vmatpush1.msra.mxu0 0.0
    %471 = vmatprep.subr.mxu0 0.0
    %472 = vmatpush1.msra.mxu0 0.0
    %473 = vmatprep.subr.mxu0 0.0
    %474 = vmatpush1.msra.mxu0 0.0
    %475 = vmatprep.subr.mxu0 0.0
    %476 = vmatpush1.msra.mxu0 0.0
    %477 = vmatprep.subr.mxu0 0.0
    %478 = vmatpush1.msra.mxu0 0.0
    %479 = vmatprep.mubr.f32.mxu0 0.0
    %480 = vmatmul.mubr.f32.gmra.mrb[0].mxu0 %v413
    %v481 = vpop.f32.mrb[0].mxu0
    %v482 = vadd.f32 %v409, %v481
    %v483 = vpop.f32.mrb[0].mxu0
    %484 = vdwg.mxu0
    %vm485 = vcmp.ge.f32.partialorder %v482, 0.0
    %v486 = vmul.f32 %v482, 0.01
    %v487 = vsel %vm485, %v482, %v486
    %v488 = vld [vmem:[%s3] sm:$0xff]
    %v489 = vld [vmem:[%s3 + $0x8] sm:$0xff]
    %v490 = vld [vmem:[#allocation4] sm:$0xff]
    %v491 = vld [vmem:[#allocation4 + $0x8] sm:$0xff]
    %492 = vrot.lane.b32.xlu0 %v487, 127
    %v493 = vpop.permute.xlu0 %492
    %494 = vrot.lane.b32.xlu0 %v487, 126
    %v495 = vpop.permute.xlu0 %494
    %496 = vrot.lane.b32.xlu0 %v487, 125
    %v497 = vpop.permute.xlu0 %496
    %498 = vrot.lane.b32.xlu0 %v487, 124
    %v499 = vpop.permute.xlu0 %498
    %500 = vrot.lane.b32.xlu0 %v487, 123
    %v501 = vpop.permute.xlu0 %500
    %502 = vrot.lane.b32.xlu0 %v487, 122
    %v503 = vpop.permute.xlu0 %502
    %504 = vrot.lane.b32.xlu0 %v487, 121
    %v505 = vpop.permute.xlu0 %504
    %506 = vrot.lane.b32.xlu0 %v487, 120
    %v507 = vpop.permute.xlu0 %506
    %509 = vset.pattern.permute.xlu0 0
    %510 = vperm.xlu0 %509, %v490
    %v511 = vpop.permute.xlu0 %510
    %514 = vset.pattern.permute.xlu0 0
    %515 = vperm.xlu0 %514, %v491
    %v516 = vpop.permute.xlu0 %515
    %vm518 = vcmask 588800
    %v520 = vsel %vm518, %v488, 0
    %v523 = vsel %vm518, %v489, 0
    %525 = vmatprep.subr.mxu0 0.0
    %526 = vmatpush1.msra.mxu0 %v487
    %527 = vmatprep.subr.mxu0 0.0
    %528 = vmatpush1.msra.mxu0 %v493
    %529 = vmatprep.subr.mxu0 0.0
    %530 = vmatpush1.msra.mxu0 %v495
    %531 = vmatprep.subr.mxu0 0.0
    %532 = vmatpush1.msra.mxu0 %v497
    %533 = vmatprep.subr.mxu0 0.0
    %534 = vmatpush1.msra.mxu0 %v499
    %535 = vmatprep.subr.mxu0 0.0
    %536 = vmatpush1.msra.mxu0 %v501
    %537 = vmatprep.subr.mxu0 0.0
    %538 = vmatpush1.msra.mxu0 %v503
    %539 = vmatprep.subr.mxu0 0.0
    %540 = vmatpush1.msra.mxu0 %v505
    %541 = vmatprep.subr.mxu0 0.0
    %542 = vmatpush1.msra.mxu0 %v507
    %543 = vmatprep.subr.mxu0 0.0
    %544 = vmatpush1.msra.mxu0 0.0
    %545 = vmatprep.subr.mxu0 0.0
    %546 = vmatpush1.msra.mxu0 0.0
    %547 = vmatprep.subr.mxu0 0.0
    %548 = vmatpush1.msra.mxu0 0.0
    %549 = vmatprep.subr.mxu0 0.0
    %550 = vmatpush1.msra.mxu0 0.0
    %551 = vmatprep.subr.mxu0 0.0
    %552 = vmatpush1.msra.mxu0 0.0
    %553 = vmatprep.subr.mxu0 0.0
    %554 = vmatpush1.msra.mxu0 0.0
    %555 = vmatprep.subr.mxu0 0.0
    %556 = vmatpush1.msra.mxu0 0.0
    %557 = vmatprep.subr.mxu0 0.0
    %558 = vmatpush1.msra.mxu0 0.0
    %559 = vmatprep.subr.mxu0 0.0
    %560 = vmatpush1.msra.mxu0 0.0
    %561 = vmatprep.subr.mxu0 0.0
    %562 = vmatpush1.msra.mxu0 0.0
    %563 = vmatprep.subr.mxu0 0.0
    %564 = vmatpush1.msra.mxu0 0.0
    %565 = vmatprep.subr.mxu0 0.0
    %566 = vmatpush1.msra.mxu0 0.0
    %567 = vmatprep.subr.mxu0 0.0
    %568 = vmatpush1.msra.mxu0 0.0
    %569 = vmatprep.subr.mxu0 0.0
    %570 = vmatpush1.msra.mxu0 0.0
    %571 = vmatprep.subr.mxu0 0.0
    %572 = vmatpush1.msra.mxu0 0.0
    %573 = vmatprep.subr.mxu0 0.0
    %574 = vmatpush1.msra.mxu0 0.0
    %575 = vmatprep.subr.mxu0 0.0
    %576 = vmatpush1.msra.mxu0 0.0
    %577 = vmatprep.subr.mxu0 0.0
    %578 = vmatpush1.msra.mxu0 0.0
    %579 = vmatprep.subr.mxu0 0.0
    %580 = vmatpush1.msra.mxu0 0.0
    %581 = vmatprep.subr.mxu0 0.0
    %582 = vmatpush1.msra.mxu0 0.0
    %583 = vmatprep.subr.mxu0 0.0
    %584 = vmatpush1.msra.mxu0 0.0
    %585 = vmatprep.subr.mxu0 0.0
    %586 = vmatpush1.msra.mxu0 0.0
    %587 = vmatprep.subr.mxu0 0.0
    %588 = vmatpush1.msra.mxu0 0.0
    %589 = vmatprep.mubr.f32.mxu0 0.0
    %590 = vmatmul.mubr.f32.gmra.mrb[0].mxu0 %v520
    %v591 = vpop.f32.mrb[0].mxu0
    %v592 = vadd.f32 %v511, %v591
    %v593 = vpop.f32.mrb[0].mxu0
    %594 = vmatprep.mubr.f32.mxu0 0.0
    %595 = vmatmul.mubr.f32.gmra.mrb[0].mxu0 %v523
    %v596 = vpop.f32.mrb[0].mxu0
    %v597 = vadd.f32 %v516, %v596
    %v598 = vpop.f32.mrb[0].mxu0
    %599 = vdwg.mxu0
    %vm600 = vcmp.ge.f32.partialorder %v592, 0.0
    %vm601 = vcmp.ge.f32.partialorder %v597, 0.0
    %v602 = vmul.f32 %v592, 0.01
    %v603 = vmul.f32 %v597, 0.01
    %v604 = vsel %vm600, %v592, %v602
    %v605 = vsel %vm601, %v597, %v603
    %v606 = vld [vmem:[#allocation6] sm:$0xff]
    %v607 = vld [vmem:[#allocation6 + $0x8] sm:$0xff]
    %v608 = vld [vmem:[#allocation7] sm:$0xff]
    %v609 = vld [vmem:[#allocation7 + $0x8] sm:$0xff]
    %610 = vrot.lane.b32.xlu0 %v604, 127
    %v611 = vpop.permute.xlu0 %610
    %612 = vrot.lane.b32.xlu0 %v605, 127
    %v613 = vpop.permute.xlu0 %612
    %614 = vrot.lane.b32.xlu0 %v604, 126
    %v615 = vpop.permute.xlu0 %614
    %616 = vrot.lane.b32.xlu0 %v605, 126
    %v617 = vpop.permute.xlu0 %616
    %618 = vrot.lane.b32.xlu0 %v604, 125
    %v619 = vpop.permute.xlu0 %618
    %620 = vrot.lane.b32.xlu0 %v605, 125
    %v621 = vpop.permute.xlu0 %620
    %622 = vrot.lane.b32.xlu0 %v604, 124
    %v623 = vpop.permute.xlu0 %622
    %624 = vrot.lane.b32.xlu0 %v605, 124
    %v625 = vpop.permute.xlu0 %624
    %626 = vrot.lane.b32.xlu0 %v604, 123
    %v627 = vpop.permute.xlu0 %626
    %628 = vrot.lane.b32.xlu0 %v605, 123
    %v629 = vpop.permute.xlu0 %628
    %630 = vrot.lane.b32.xlu0 %v604, 122
    %v631 = vpop.permute.xlu0 %630
    %632 = vrot.lane.b32.xlu0 %v605, 122
    %v633 = vpop.permute.xlu0 %632
    %635 = vset.pattern.permute.xlu0 0
    %636 = vperm.xlu0 %635, %v608
    %v637 = vpop.permute.xlu0 %636
    %640 = vset.pattern.permute.xlu0 0
    %641 = vperm.xlu0 %640, %v609
    %v642 = vpop.permute.xlu0 %641
    %vm644 = vcmask 916480
    %v646 = vsel %vm644, %v606, 0
    %v649 = vsel %vm644, %v607, 0
    %651 = vmatprep.subr.mxu0 0.0
    %652 = vmatpush1.msra.mxu0 %v604
    %653 = vmatprep.subr.mxu0 0.0
    %654 = vmatpush1.msra.mxu0 %v605
    %655 = vmatprep.subr.mxu0 0.0
    %656 = vmatpush1.msra.mxu0 %v611
    %657 = vmatprep.subr.mxu0 0.0
    %658 = vmatpush1.msra.mxu0 %v613
    %659 = vmatprep.subr.mxu0 0.0
    %660 = vmatpush1.msra.mxu0 %v615
    %661 = vmatprep.subr.mxu0 0.0
    %662 = vmatpush1.msra.mxu0 %v617
    %663 = vmatprep.subr.mxu0 0.0
    %664 = vmatpush1.msra.mxu0 %v619
    %665 = vmatprep.subr.mxu0 0.0
    %666 = vmatpush1.msra.mxu0 %v621
    %667 = vmatprep.subr.mxu0 0.0
    %668 = vmatpush1.msra.mxu0 %v623
    %669 = vmatprep.subr.mxu0 0.0
    %670 = vmatpush1.msra.mxu0 %v625
    %671 = vmatprep.subr.mxu0 0.0
    %672 = vmatpush1.msra.mxu0 %v627
    %673 = vmatprep.subr.mxu0 0.0
    %674 = vmatpush1.msra.mxu0 %v629
    %675 = vmatprep.subr.mxu0 0.0
    %676 = vmatpush1.msra.mxu0 %v631
    %677 = vmatprep.subr.mxu0 0.0
    %678 = vmatpush1.msra.mxu0 %v633
    %679 = vmatprep.subr.mxu0 0.0
    %680 = vmatpush1.msra.mxu0 0.0
    %681 = vmatprep.subr.mxu0 0.0
    %682 = vmatpush1.msra.mxu0 0.0
    %683 = vmatprep.subr.mxu0 0.0
    %684 = vmatpush1.msra.mxu0 0.0
    %685 = vmatprep.subr.mxu0 0.0
    %686 = vmatpush1.msra.mxu0 0.0
    %687 = vmatprep.subr.mxu0 0.0
    %688 = vmatpush1.msra.mxu0 0.0
    %689 = vmatprep.subr.mxu0 0.0
    %690 = vmatpush1.msra.mxu0 0.0
    %691 = vmatprep.subr.mxu0 0.0
    %692 = vmatpush1.msra.mxu0 0.0
    %693 = vmatprep.subr.mxu0 0.0
    %694 = vmatpush1.msra.mxu0 0.0
    %695 = vmatprep.subr.mxu0 0.0
    %696 = vmatpush1.msra.mxu0 0.0
    %697 = vmatprep.subr.mxu0 0.0
    %698 = vmatpush1.msra.mxu0 0.0
    %699 = vmatprep.subr.mxu0 0.0
    %700 = vmatpush1.msra.mxu0 0.0
    %701 = vmatprep.subr.mxu0 0.0
    %702 = vmatpush1.msra.mxu0 0.0
    %703 = vmatprep.subr.mxu0 0.0
    %704 = vmatpush1.msra.mxu0 0.0
    %705 = vmatprep.subr.mxu0 0.0
    %706 = vmatpush1.msra.mxu0 0.0
    %707 = vmatprep.subr.mxu0 0.0
    %708 = vmatpush1.msra.mxu0 0.0
    %709 = vmatprep.subr.mxu0 0.0
    %710 = vmatpush1.msra.mxu0 0.0
    %711 = vmatprep.subr.mxu0 0.0
    %712 = vmatpush1.msra.mxu0 0.0
    %713 = vmatprep.subr.mxu0 0.0
    %714 = vmatpush1.msra.mxu0 0.0
    %715 = vmatprep.mubr.f32.mxu0 0.0
    %716 = vmatmul.mubr.f32.gmra.mrb[0].mxu0 %v646
    %v717 = vpop.f32.mrb[0].mxu0
    %v718 = vadd.f32 %v637, %v717
    %v719 = vpop.f32.mrb[0].mxu0
    %720 = vmatprep.mubr.f32.mxu0 0.0
    %721 = vmatmul.mubr.f32.gmra.mrb[0].mxu0 %v649
    %v722 = vpop.f32.mrb[0].mxu0
    %v723 = vadd.f32 %v642, %v722
    %v724 = vpop.f32.mrb[0].mxu0
    %725 = vdwg.mxu0
    %vm726 = vcmp.ge.f32.partialorder %v718, 0.0
    %vm727 = vcmp.ge.f32.partialorder %v723, 0.0
    %v728 = vmul.f32 %v718, 0.01
    %v729 = vmul.f32 %v723, 0.01
    %v730 = vsel %vm726, %v718, %v728
    %v731 = vsel %vm727, %v723, %v729
    %v732 = vld [vmem:[#allocation9] sm:$0xff]
    %v733 = vld [vmem:[#allocation9 + $0x8] sm:$0xff]
    %v734 = vld [vmem:[#allocation9 + $0x10] sm:$0xff]
    %v735 = vld [vmem:[#allocation9 + $0x18] sm:$0xff]
    %v736 = vld [vmem:[#allocation10] sm:$0xff]
    %v737 = vld [vmem:[#allocation10 + $0x8] sm:$0xff]
    %v738 = vld [vmem:[#allocation10 + $0x10] sm:$0xff]
    %v739 = vld [vmem:[#allocation10 + $0x18] sm:$0xff]
    %740 = vrot.lane.b32.xlu0 %v730, 127
    %v741 = vpop.permute.xlu0 %740
    %742 = vrot.lane.b32.xlu0 %v731, 127
    %v743 = vpop.permute.xlu0 %742
    %744 = vrot.lane.b32.xlu0 %v730, 126
    %v745 = vpop.permute.xlu0 %744
    %746 = vrot.lane.b32.xlu0 %v731, 126
    %v747 = vpop.permute.xlu0 %746
    %748 = vrot.lane.b32.xlu0 %v730, 125
    %v749 = vpop.permute.xlu0 %748
    %750 = vrot.lane.b32.xlu0 %v731, 125
    %v751 = vpop.permute.xlu0 %750
    %752 = vrot.lane.b32.xlu0 %v730, 124
    %v753 = vpop.permute.xlu0 %752
    %754 = vrot.lane.b32.xlu0 %v731, 124
    %v755 = vpop.permute.xlu0 %754
    %756 = vrot.lane.b32.xlu0 %v730, 123
    %v757 = vpop.permute.xlu0 %756
    %758 = vrot.lane.b32.xlu0 %v731, 123
    %v759 = vpop.permute.xlu0 %758
    %760 = vrot.lane.b32.xlu0 %v730, 122
    %v761 = vpop.permute.xlu0 %760
    %762 = vrot.lane.b32.xlu0 %v731, 122
    %v763 = vpop.permute.xlu0 %762
    %765 = vset.pattern.permute.xlu0 0
    %766 = vperm.xlu0 %765, %v736
    %v767 = vpop.permute.xlu0 %766
    %770 = vset.pattern.permute.xlu0 0
    %771 = vperm.xlu0 %770, %v737
    %v772 = vpop.permute.xlu0 %771
    %775 = vset.pattern.permute.xlu0 0
    %776 = vperm.xlu0 %775, %v738
    %v777 = vpop.permute.xlu0 %776
    %780 = vset.pattern.permute.xlu0 0
    %781 = vperm.xlu0 %780, %v739
    %v782 = vpop.permute.xlu0 %781
    %v785 = vsel %vm644, %v732, 0
    %v788 = vsel %vm644, %v733, 0
    %v791 = vsel %vm644, %v734, 0
    %v794 = vsel %vm644, %v735, 0
    %796 = vmatprep.subr.mxu0 0.0
    %797 = vmatpush1.msra.mxu0 %v730
    %798 = vmatprep.subr.mxu0 0.0
    %799 = vmatpush1.msra.mxu0 %v731
    %800 = vmatprep.subr.mxu0 0.0
    %801 = vmatpush1.msra.mxu0 %v741
    %802 = vmatprep.subr.mxu0 0.0
    %803 = vmatpush1.msra.mxu0 %v743
    %804 = vmatprep.subr.mxu0 0.0
    %805 = vmatpush1.msra.mxu0 %v745
    %806 = vmatprep.subr.mxu0 0.0
    %807 = vmatpush1.msra.mxu0 %v747
    %808 = vmatprep.subr.mxu0 0.0
    %809 = vmatpush1.msra.mxu0 %v749
    %810 = vmatprep.subr.mxu0 0.0
    %811 = vmatpush1.msra.mxu0 %v751
    %812 = vmatprep.subr.mxu0 0.0
    %813 = vmatpush1.msra.mxu0 %v753
    %814 = vmatprep.subr.mxu0 0.0
    %815 = vmatpush1.msra.mxu0 %v755
    %816 = vmatprep.subr.mxu0 0.0
    %817 = vmatpush1.msra.mxu0 %v757
    %818 = vmatprep.subr.mxu0 0.0
    %819 = vmatpush1.msra.mxu0 %v759
    %820 = vmatprep.subr.mxu0 0.0
    %821 = vmatpush1.msra.mxu0 %v761
    %822 = vmatprep.subr.mxu0 0.0
    %823 = vmatpush1.msra.mxu0 %v763
    %824 = vmatprep.subr.mxu0 0.0
    %825 = vmatpush1.msra.mxu0 0.0
    %826 = vmatprep.subr.mxu0 0.0
    %827 = vmatpush1.msra.mxu0 0.0
    %828 = vmatprep.subr.mxu0 0.0
    %829 = vmatpush1.msra.mxu0 0.0
    %830 = vmatprep.subr.mxu0 0.0
    %831 = vmatpush1.msra.mxu0 0.0
    %832 = vmatprep.subr.mxu0 0.0
    %833 = vmatpush1.msra.mxu0 0.0
    %834 = vmatprep.subr.mxu0 0.0
    %835 = vmatpush1.msra.mxu0 0.0
    %836 = vmatprep.subr.mxu0 0.0
    %837 = vmatpush1.msra.mxu0 0.0
    %838 = vmatprep.subr.mxu0 0.0
    %839 = vmatpush1.msra.mxu0 0.0
    %840 = vmatprep.subr.mxu0 0.0
    %841 = vmatpush1.msra.mxu0 0.0
    %842 = vmatprep.subr.mxu0 0.0
    %843 = vmatpush1.msra.mxu0 0.0
    %844 = vmatprep.subr.mxu0 0.0
    %845 = vmatpush1.msra.mxu0 0.0
    %846 = vmatprep.subr.mxu0 0.0
    %847 = vmatpush1.msra.mxu0 0.0
    %848 = vmatprep.subr.mxu0 0.0
    %849 = vmatpush1.msra.mxu0 0.0
    %850 = vmatprep.subr.mxu0 0.0
    %851 = vmatpush1.msra.mxu0 0.0
    %852 = vmatprep.subr.mxu0 0.0
    %853 = vmatpush1.msra.mxu0 0.0
    %854 = vmatprep.subr.mxu0 0.0
    %855 = vmatpush1.msra.mxu0 0.0
    %856 = vmatprep.subr.mxu0 0.0
    %857 = vmatpush1.msra.mxu0 0.0
    %858 = vmatprep.subr.mxu0 0.0
    %859 = vmatpush1.msra.mxu0 0.0
    %860 = vmatprep.mubr.f32.mxu0 0.0
    %861 = vmatmul.mubr.f32.gmra.mrb[0].mxu0 %v785
    %v862 = vpop.f32.mrb[0].mxu0
    %v863 = vadd.f32 %v767, %v862
    %v864 = vpop.f32.mrb[0].mxu0
    %865 = vmatprep.mubr.f32.mxu0 0.0
    %866 = vmatmul.mubr.f32.gmra.mrb[0].mxu0 %v788
    %v867 = vpop.f32.mrb[0].mxu0
    %v868 = vadd.f32 %v772, %v867
    %v869 = vpop.f32.mrb[0].mxu0
    %870 = vmatprep.mubr.f32.mxu0 0.0
    %871 = vmatmul.mubr.f32.gmra.mrb[0].mxu0 %v791
    %v872 = vpop.f32.mrb[0].mxu0
    %v873 = vadd.f32 %v777, %v872
    %v874 = vpop.f32.mrb[0].mxu0
    %875 = vmatprep.mubr.f32.mxu0 0.0
    %876 = vmatmul.mubr.f32.gmra.mrb[0].mxu0 %v794
    %v877 = vpop.f32.mrb[0].mxu0
    %v878 = vadd.f32 %v782, %v877
    %v879 = vpop.f32.mrb[0].mxu0
    %880 = vdwg.mxu0
    %vm881 = vcmp.ge.f32.partialorder %v863, 0.0
    %vm882 = vcmp.ge.f32.partialorder %v868, 0.0
    %vm883 = vcmp.ge.f32.partialorder %v873, 0.0
    %vm884 = vcmp.ge.f32.partialorder %v878, 0.0
    %v885 = vmul.f32 %v863, 0.01
    %v886 = vmul.f32 %v868, 0.01
    %v887 = vmul.f32 %v873, 0.01
    %v888 = vmul.f32 %v878, 0.01
    %v889 = vsel %vm881, %v863, %v885
    %v890 = vsel %vm882, %v868, %v886
    %v891 = vsel %vm883, %v873, %v887
    %v892 = vsel %vm884, %v878, %v888
    %v893 = vld [vmem:[#allocation12] sm:$0xff]
    %v894 = vld [vmem:[#allocation12 + $0x8] sm:$0xff]
    %v895 = vld [vmem:[#allocation12 + $0x10] sm:$0xff]
    %v896 = vld [vmem:[#allocation12 + $0x18] sm:$0xff]
    %v897 = vld [vmem:[#allocation12 + $0x20] sm:$0xff]
    %v898 = vld [vmem:[#allocation12 + $0x28] sm:$0xff]
    %v899 = vld [vmem:[#allocation12 + $0x30] sm:$0xff]
    %v900 = vld [vmem:[#allocation12 + $0x38] sm:$0xff]
    %v901 = vld [vmem:[#allocation13] sm:$0xff]
    %v902 = vld [vmem:[#allocation13 + $0x8] sm:$0xff]
    %v903 = vld [vmem:[#allocation13 + $0x10] sm:$0xff]
    %v904 = vld [vmem:[#allocation13 + $0x18] sm:$0xff]
    %905 = vrot.lane.b32.xlu0 %v889, 127
    %v906 = vpop.permute.xlu0 %905
    %907 = vrot.lane.b32.xlu0 %v890, 127
    %v908 = vpop.permute.xlu0 %907
    %909 = vrot.lane.b32.xlu0 %v891, 127
    %v910 = vpop.permute.xlu0 %909
    %911 = vrot.lane.b32.xlu0 %v892, 127
    %v912 = vpop.permute.xlu0 %911
    %913 = vrot.lane.b32.xlu0 %v889, 126
    %v914 = vpop.permute.xlu0 %913
    %915 = vrot.lane.b32.xlu0 %v890, 126
    %v916 = vpop.permute.xlu0 %915
    %917 = vrot.lane.b32.xlu0 %v891, 126
    %v918 = vpop.permute.xlu0 %917
    %919 = vrot.lane.b32.xlu0 %v892, 126
    %v920 = vpop.permute.xlu0 %919
    %921 = vrot.lane.b32.xlu0 %v889, 125
    %v922 = vpop.permute.xlu0 %921
    %923 = vrot.lane.b32.xlu0 %v890, 125
    %v924 = vpop.permute.xlu0 %923
    %925 = vrot.lane.b32.xlu0 %v891, 125
    %v926 = vpop.permute.xlu0 %925
    %927 = vrot.lane.b32.xlu0 %v892, 125
    %v928 = vpop.permute.xlu0 %927
    %929 = vrot.lane.b32.xlu0 %v889, 124
    %v930 = vpop.permute.xlu0 %929
    %931 = vrot.lane.b32.xlu0 %v890, 124
    %v932 = vpop.permute.xlu0 %931
    %933 = vrot.lane.b32.xlu0 %v891, 124
    %v934 = vpop.permute.xlu0 %933
    %935 = vrot.lane.b32.xlu0 %v892, 124
    %v936 = vpop.permute.xlu0 %935
    %938 = vset.pattern.permute.xlu0 0
    %939 = vperm.xlu0 %938, %v901
    %v940 = vpop.permute.xlu0 %939
    %943 = vset.pattern.permute.xlu0 0
    %944 = vperm.xlu0 %943, %v902
    %v945 = vpop.permute.xlu0 %944
    %948 = vset.pattern.permute.xlu0 0
    %949 = vperm.xlu0 %948, %v903
    %v950 = vpop.permute.xlu0 %949
    %953 = vset.pattern.permute.xlu0 0
    %954 = vperm.xlu0 %953, %v904
    %v955 = vpop.permute.xlu0 %954
    %vm957 = vcmask 261120
    %v959 = vsel %vm957, %v894, 0
    %v962 = vsel %vm957, %v896, 0
    %v965 = vsel %vm957, %v898, 0
    %v968 = vsel %vm957, %v900, 0
    %970 = vmatprep.subr.mxu0 0.0
    %971 = vmatpush1.msra.mxu0 %v889
    %972 = vmatprep.subr.mxu0 0.0
    %973 = vmatpush1.msra.mxu0 %v890
    %974 = vmatprep.subr.mxu0 0.0
    %975 = vmatpush1.msra.mxu0 %v891
    %976 = vmatprep.subr.mxu0 0.0
    %977 = vmatpush1.msra.mxu0 %v892
    %978 = vmatprep.subr.mxu0 0.0
    %979 = vmatpush1.msra.mxu0 %v906
    %980 = vmatprep.subr.mxu0 0.0
    %981 = vmatpush1.msra.mxu0 %v908
    %982 = vmatprep.subr.mxu0 0.0
    %983 = vmatpush1.msra.mxu0 %v910
    %984 = vmatprep.subr.mxu0 0.0
    %985 = vmatpush1.msra.mxu0 %v912
    %986 = vmatprep.subr.mxu0 0.0
    %987 = vmatpush1.msra.mxu0 %v914
    %988 = vmatprep.subr.mxu0 0.0
    %989 = vmatpush1.msra.mxu0 %v916
    %990 = vmatprep.subr.mxu0 0.0
    %991 = vmatpush1.msra.mxu0 %v918
    %992 = vmatprep.subr.mxu0 0.0
    %993 = vmatpush1.msra.mxu0 %v920
    %994 = vmatprep.subr.mxu0 0.0
    %995 = vmatpush1.msra.mxu0 %v922
    %996 = vmatprep.subr.mxu0 0.0
    %997 = vmatpush1.msra.mxu0 %v924
    %998 = vmatprep.subr.mxu0 0.0
    %999 = vmatpush1.msra.mxu0 %v926
    %1000 = vmatprep.subr.mxu0 0.0
    %1001 = vmatpush1.msra.mxu0 %v928
    %1002 = vmatprep.subr.mxu0 0.0
    %1003 = vmatpush1.msra.mxu0 %v930
    %1004 = vmatprep.subr.mxu0 0.0
    %1005 = vmatpush1.msra.mxu0 %v932
    %1006 = vmatprep.subr.mxu0 0.0
    %1007 = vmatpush1.msra.mxu0 %v934
    %1008 = vmatprep.subr.mxu0 0.0
    %1009 = vmatpush1.msra.mxu0 %v936
    %1010 = vmatprep.subr.mxu0 0.0
    %1011 = vmatpush1.msra.mxu0 0.0
    %1012 = vmatprep.subr.mxu0 0.0
    %1013 = vmatpush1.msra.mxu0 0.0
    %1014 = vmatprep.subr.mxu0 0.0
    %1015 = vmatpush1.msra.mxu0 0.0
    %1016 = vmatprep.subr.mxu0 0.0
    %1017 = vmatpush1.msra.mxu0 0.0
    %1018 = vmatprep.subr.mxu0 0.0
    %1019 = vmatpush1.msra.mxu0 0.0
    %1020 = vmatprep.subr.mxu0 0.0
    %1021 = vmatpush1.msra.mxu0 0.0
    %1022 = vmatprep.subr.mxu0 0.0
    %1023 = vmatpush1.msra.mxu0 0.0
    %1024 = vmatprep.subr.mxu0 0.0
    %1025 = vmatpush1.msra.mxu0 0.0
    %1026 = vmatprep.subr.mxu0 0.0
    %1027 = vmatpush1.msra.mxu0 0.0
    %1028 = vmatprep.subr.mxu0 0.0
    %1029 = vmatpush1.msra.mxu0 0.0
    %1030 = vmatprep.subr.mxu0 0.0
    %1031 = vmatpush1.msra.mxu0 0.0
    %1032 = vmatprep.subr.mxu0 0.0
    %1033 = vmatpush1.msra.mxu0 0.0
    %1034 = vmatprep.mubr.f32.mxu0 %v959
    %1035 = vmatmul.mubr.f32.gmra.mrb[0].mxu0 %v893
    %v1036 = vpop.f32.mrb[0].mxu0
    %v1037 = vadd.f32 %v940, %v1036
    %v1038 = vpop.f32.mrb[0].mxu0
    %1039 = vmatprep.mubr.f32.mxu0 %v962
    %1040 = vmatmul.mubr.f32.gmra.mrb[0].mxu0 %v895
    %v1041 = vpop.f32.mrb[0].mxu0
    %v1042 = vadd.f32 %v945, %v1041
    %v1043 = vpop.f32.mrb[0].mxu0
    %1044 = vmatprep.mubr.f32.mxu0 %v965
    %1045 = vmatmul.mubr.f32.gmra.mrb[0].mxu0 %v897
    %v1046 = vpop.f32.mrb[0].mxu0
    %v1047 = vadd.f32 %v950, %v1046
    %v1048 = vpop.f32.mrb[0].mxu0
    %1049 = vmatprep.mubr.f32.mxu0 %v968
    %1050 = vmatmul.mubr.f32.gmra.mrb[0].mxu0 %v899
    %v1051 = vpop.f32.mrb[0].mxu0
    %v1052 = vadd.f32 %v955, %v1051
    %v1053 = vpop.f32.mrb[0].mxu0
    %1054 = vdwg.mxu0
    %vm1055 = vcmp.ge.f32.partialorder %v1037, 0.0
    %vm1056 = vcmp.ge.f32.partialorder %v1042, 0.0
    %vm1057 = vcmp.ge.f32.partialorder %v1047, 0.0
    %vm1058 = vcmp.ge.f32.partialorder %v1052, 0.0
    %v1059 = vmul.f32 %v1037, 0.01
    %v1060 = vmul.f32 %v1042, 0.01
    %v1061 = vmul.f32 %v1047, 0.01
    %v1062 = vmul.f32 %v1052, 0.01
    %v1063 = vsel %vm1055, %v1037, %v1059
    %v1064 = vsel %vm1056, %v1042, %v1060
    %v1065 = vsel %vm1057, %v1047, %v1061
    %v1066 = vsel %vm1058, %v1052, %v1062
    %v1067 = vld [vmem:[#allocation15] sm:$0xff]
    %v1068 = vld [vmem:[#allocation15 + $0x8] sm:$0xff]
    %v1069 = vld [vmem:[#allocation15 + $0x10] sm:$0xff]
    %v1070 = vld [vmem:[#allocation15 + $0x18] sm:$0xff]
    %v1071 = vld [vmem:[#allocation15 + $0x20] sm:$0xff]
    %v1072 = vld [vmem:[#allocation15 + $0x28] sm:$0xff]
    %v1073 = vld [vmem:[#allocation15 + $0x30] sm:$0xff]
    %v1074 = vld [vmem:[#allocation15 + $0x38] sm:$0xff]
    %v1075 = vld [vmem:[#allocation15 + $0x40] sm:$0xff]
    %v1076 = vld [vmem:[#allocation15 + $0x48] sm:$0xff]
    %v1077 = vld [vmem:[#allocation15 + $0x50] sm:$0xff]
    %v1078 = vld [vmem:[#allocation15 + $0x58] sm:$0xff]
    %v1079 = vld [vmem:[#allocation15 + $0x60] sm:$0xff]
    %v1080 = vld [vmem:[#allocation15 + $0x68] sm:$0xff]
    %v1081 = vld [vmem:[#allocation15 + $0x70] sm:$0xff]
    %v1082 = vld [vmem:[#allocation15 + $0x78] sm:$0xff]
    %v1083 = vld [vmem:[#allocation16] sm:$0xff]
    %v1084 = vld [vmem:[#allocation16 + $0x8] sm:$0xff]
    %v1085 = vld [vmem:[#allocation16 + $0x10] sm:$0xff]
    %v1086 = vld [vmem:[#allocation16 + $0x18] sm:$0xff]
    %v1087 = vld [vmem:[#allocation16 + $0x20] sm:$0xff]
    %v1088 = vld [vmem:[#allocation16 + $0x28] sm:$0xff]
    %v1089 = vld [vmem:[#allocation16 + $0x30] sm:$0xff]
    %v1090 = vld [vmem:[#allocation16 + $0x38] sm:$0xff]
    %1091 = vrot.lane.b32.xlu0 %v1063, 127
    %v1092 = vpop.permute.xlu0 %1091
    %1093 = vrot.lane.b32.xlu0 %v1064, 127
    %v1094 = vpop.permute.xlu0 %1093
    %1095 = vrot.lane.b32.xlu0 %v1065, 127
    %v1096 = vpop.permute.xlu0 %1095
    %1097 = vrot.lane.b32.xlu0 %v1066, 127
    %v1098 = vpop.permute.xlu0 %1097
    %1099 = vrot.lane.b32.xlu0 %v1063, 126
    %v1100 = vpop.permute.xlu0 %1099
    %1101 = vrot.lane.b32.xlu0 %v1064, 126
    %v1102 = vpop.permute.xlu0 %1101
    %1103 = vrot.lane.b32.xlu0 %v1065, 126
    %v1104 = vpop.permute.xlu0 %1103
    %1105 = vrot.lane.b32.xlu0 %v1066, 126
    %v1106 = vpop.permute.xlu0 %1105
    %1107 = vrot.lane.b32.xlu0 %v1063, 125
    %v1108 = vpop.permute.xlu0 %1107
    %1109 = vrot.lane.b32.xlu0 %v1064, 125
    %v1110 = vpop.permute.xlu0 %1109
    %1111 = vrot.lane.b32.xlu0 %v1065, 125
    %v1112 = vpop.permute.xlu0 %1111
    %1113 = vrot.lane.b32.xlu0 %v1066, 125
    %v1114 = vpop.permute.xlu0 %1113
    %1115 = vrot.lane.b32.xlu0 %v1063, 124
    %v1116 = vpop.permute.xlu0 %1115
    %1117 = vrot.lane.b32.xlu0 %v1064, 124
    %v1118 = vpop.permute.xlu0 %1117
    %1119 = vrot.lane.b32.xlu0 %v1065, 124
    %v1120 = vpop.permute.xlu0 %1119
    %1121 = vrot.lane.b32.xlu0 %v1066, 124
    %v1122 = vpop.permute.xlu0 %1121
    %1124 = vset.pattern.permute.xlu0 0
    %1125 = vperm.xlu0 %1124, %v1083
    %v1126 = vpop.permute.xlu0 %1125
    %1129 = vset.pattern.permute.xlu0 0
    %1130 = vperm.xlu0 %1129, %v1084
    %v1131 = vpop.permute.xlu0 %1130
    %1134 = vset.pattern.permute.xlu0 0
    %1135 = vperm.xlu0 %1134, %v1085
    %v1136 = vpop.permute.xlu0 %1135
    %1139 = vset.pattern.permute.xlu0 0
    %1140 = vperm.xlu0 %1139, %v1086
    %v1141 = vpop.permute.xlu0 %1140
    %1144 = vset.pattern.permute.xlu0 0
    %1145 = vperm.xlu0 %1144, %v1087
    %v1146 = vpop.permute.xlu0 %1145
    %1149 = vset.pattern.permute.xlu0 0
    %1150 = vperm.xlu0 %1149, %v1088
    %v1151 = vpop.permute.xlu0 %1150
    %1154 = vset.pattern.permute.xlu0 0
    %1155 = vperm.xlu0 %1154, %v1089
    %v1156 = vpop.permute.xlu0 %1155
    %1159 = vset.pattern.permute.xlu0 0
    %1160 = vperm.xlu0 %1159, %v1090
    %v1161 = vpop.permute.xlu0 %1160
    %v1164 = vsel %vm957, %v1068, 0
    %v1167 = vsel %vm957, %v1070, 0
    %v1170 = vsel %vm957, %v1072, 0
    %v1173 = vsel %vm957, %v1074, 0
    %v1176 = vsel %vm957, %v1076, 0
    %v1179 = vsel %vm957, %v1078, 0
    %v1182 = vsel %vm957, %v1080, 0
    %v1185 = vsel %vm957, %v1082, 0
    %1187 = vmatprep.subr.mxu0 0.0
    %1188 = vmatpush1.msra.mxu0 %v1063
    %1189 = vmatprep.subr.mxu0 0.0
    %1190 = vmatpush1.msra.mxu0 %v1064
    %1191 = vmatprep.subr.mxu0 0.0
    %1192 = vmatpush1.msra.mxu0 %v1065
    %1193 = vmatprep.subr.mxu0 0.0
    %1194 = vmatpush1.msra.mxu0 %v1066
    %1195 = vmatprep.subr.mxu0 0.0
    %1196 = vmatpush1.msra.mxu0 %v1092
    %1197 = vmatprep.subr.mxu0 0.0
    %1198 = vmatpush1.msra.mxu0 %v1094
    %1199 = vmatprep.subr.mxu0 0.0
    %1200 = vmatpush1.msra.mxu0 %v1096
    %1201 = vmatprep.subr.mxu0 0.0
    %1202 = vmatpush1.msra.mxu0 %v1098
    %1203 = vmatprep.subr.mxu0 0.0
    %1204 = vmatpush1.msra.mxu0 %v1100
    %1205 = vmatprep.subr.mxu0 0.0
    %1206 = vmatpush1.msra.mxu0 %v1102
    %1207 = vmatprep.subr.mxu0 0.0
    %1208 = vmatpush1.msra.mxu0 %v1104
    %1209 = vmatprep.subr.mxu0 0.0
    %1210 = vmatpush1.msra.mxu0 %v1106
    %1211 = vmatprep.subr.mxu0 0.0
    %1212 = vmatpush1.msra.mxu0 %v1108
    %1213 = vmatprep.subr.mxu0 0.0
    %1214 = vmatpush1.msra.mxu0 %v1110
    %1215 = vmatprep.subr.mxu0 0.0
    %1216 = vmatpush1.msra.mxu0 %v1112
    %1217 = vmatprep.subr.mxu0 0.0
    %1218 = vmatpush1.msra.mxu0 %v1114
    %1219 = vmatprep.subr.mxu0 0.0
    %1220 = vmatpush1.msra.mxu0 %v1116
    %1221 = vmatprep.subr.mxu0 0.0
    %1222 = vmatpush1.msra.mxu0 %v1118
    %1223 = vmatprep.subr.mxu0 0.0
    %1224 = vmatpush1.msra.mxu0 %v1120
    %1225 = vmatprep.subr.mxu0 0.0
    %1226 = vmatpush1.msra.mxu0 %v1122
    %1227 = vmatprep.subr.mxu0 0.0
    %1228 = vmatpush1.msra.mxu0 0.0
    %1229 = vmatprep.subr.mxu0 0.0
    %1230 = vmatpush1.msra.mxu0 0.0
    %1231 = vmatprep.subr.mxu0 0.0
    %1232 = vmatpush1.msra.mxu0 0.0
    %1233 = vmatprep.subr.mxu0 0.0
    %1234 = vmatpush1.msra.mxu0 0.0
    %1235 = vmatprep.subr.mxu0 0.0
    %1236 = vmatpush1.msra.mxu0 0.0
    %1237 = vmatprep.subr.mxu0 0.0
    %1238 = vmatpush1.msra.mxu0 0.0
    %1239 = vmatprep.subr.mxu0 0.0
    %1240 = vmatpush1.msra.mxu0 0.0
    %1241 = vmatprep.subr.mxu0 0.0
    %1242 = vmatpush1.msra.mxu0 0.0
    %1243 = vmatprep.subr.mxu0 0.0
    %1244 = vmatpush1.msra.mxu0 0.0
    %1245 = vmatprep.subr.mxu0 0.0
    %1246 = vmatpush1.msra.mxu0 0.0
    %1247 = vmatprep.subr.mxu0 0.0
    %1248 = vmatpush1.msra.mxu0 0.0
    %1249 = vmatprep.subr.mxu0 0.0
    %1250 = vmatpush1.msra.mxu0 0.0
    %1251 = vmatprep.mubr.f32.mxu0 %v1164
    %1252 = vmatmul.mubr.f32.gmra.mrb[0].mxu0 %v1067
    %v1253 = vpop.f32.mrb[0].mxu0
    %v1254 = vadd.f32 %v1126, %v1253
    %v1255 = vpop.f32.mrb[0].mxu0
    %1256 = vmatprep.mubr.f32.mxu0 %v1167
    %1257 = vmatmul.mubr.f32.gmra.mrb[0].mxu0 %v1069
    %v1258 = vpop.f32.mrb[0].mxu0
    %v1259 = vadd.f32 %v1131, %v1258
    %v1260 = vpop.f32.mrb[0].mxu0
    %1261 = vmatprep.mubr.f32.mxu0 %v1170
    %1262 = vmatmul.mubr.f32.gmra.mrb[0].mxu0 %v1071
    %v1263 = vpop.f32.mrb[0].mxu0
    %v1264 = vadd.f32 %v1136, %v1263
    %v1265 = vpop.f32.mrb[0].mxu0
    %1266 = vmatprep.mubr.f32.mxu0 %v1173
    %1267 = vmatmul.mubr.f32.gmra.mrb[0].mxu0 %v1073
    %v1268 = vpop.f32.mrb[0].mxu0
    %v1269 = vadd.f32 %v1141, %v1268
    %v1270 = vpop.f32.mrb[0].mxu0
    %1271 = vmatprep.mubr.f32.mxu0 %v1176
    %1272 = vmatmul.mubr.f32.gmra.mrb[0].mxu0 %v1075
    %v1273 = vpop.f32.mrb[0].mxu0
    %v1274 = vadd.f32 %v1146, %v1273
    %v1275 = vpop.f32.mrb[0].mxu0
    %1276 = vmatprep.mubr.f32.mxu0 %v1179
    %1277 = vmatmul.mubr.f32.gmra.mrb[0].mxu0 %v1077
    %v1278 = vpop.f32.mrb[0].mxu0
    %v1279 = vadd.f32 %v1151, %v1278
    %v1280 = vpop.f32.mrb[0].mxu0
    %1281 = vmatprep.mubr.f32.mxu0 %v1182
    %1282 = vmatmul.mubr.f32.gmra.mrb[0].mxu0 %v1079
    %v1283 = vpop.f32.mrb[0].mxu0
    %v1284 = vadd.f32 %v1156, %v1283
    %v1285 = vpop.f32.mrb[0].mxu0
    %1286 = vmatprep.mubr.f32.mxu0 %v1185
    %1287 = vmatmul.mubr.f32.gmra.mrb[0].mxu0 %v1081
    %v1288 = vpop.f32.mrb[0].mxu0
    %v1289 = vadd.f32 %v1161, %v1288
    %v1290 = vpop.f32.mrb[0].mxu0
    %1291 = vdwg.mxu0
    %vm1292 = vcmp.ge.f32.partialorder %v1254, 0.0
    %vm1293 = vcmp.ge.f32.partialorder %v1259, 0.0
    %vm1294 = vcmp.ge.f32.partialorder %v1264, 0.0
    %vm1295 = vcmp.ge.f32.partialorder %v1269, 0.0
    %vm1296 = vcmp.ge.f32.partialorder %v1274, 0.0
    %vm1297 = vcmp.ge.f32.partialorder %v1279, 0.0
    %vm1298 = vcmp.ge.f32.partialorder %v1284, 0.0
    %vm1299 = vcmp.ge.f32.partialorder %v1289, 0.0
    %v1300 = vmul.f32 %v1254, 0.01
    %v1301 = vmul.f32 %v1259, 0.01
    %v1302 = vmul.f32 %v1264, 0.01
    %v1303 = vmul.f32 %v1269, 0.01
    %v1304 = vmul.f32 %v1274, 0.01
    %v1305 = vmul.f32 %v1279, 0.01
    %v1306 = vmul.f32 %v1284, 0.01
    %v1307 = vmul.f32 %v1289, 0.01
    %v1308 = vsel %vm1292, %v1254, %v1300
    %v1309 = vsel %vm1293, %v1259, %v1301
    %v1310 = vsel %vm1294, %v1264, %v1302
    %v1311 = vsel %vm1295, %v1269, %v1303
    %v1312 = vsel %vm1296, %v1274, %v1304
    %v1313 = vsel %vm1297, %v1279, %v1305
    %v1314 = vsel %vm1298, %v1284, %v1306
    %v1315 = vsel %vm1299, %v1289, %v1307
    %v1316 = vld [vmem:[#allocation18] sm:$0xff]
    %v1317 = vld [vmem:[#allocation18 + $0x8] sm:$0xff]
    %v1318 = vld [vmem:[#allocation18 + $0x10] sm:$0xff]
    %v1319 = vld [vmem:[#allocation18 + $0x18] sm:$0xff]
    %v1320 = vld [vmem:[#allocation18 + $0x20] sm:$0xff]
    %v1321 = vld [vmem:[#allocation18 + $0x28] sm:$0xff]
    %v1322 = vld [vmem:[#allocation18 + $0x30] sm:$0xff]
    %v1323 = vld [vmem:[#allocation18 + $0x38] sm:$0xff]
    %v1324 = vld [vmem:[#allocation18 + $0x40] sm:$0xff]
    %v1325 = vld [vmem:[#allocation18 + $0x48] sm:$0xff]
    %v1326 = vld [vmem:[#allocation18 + $0x50] sm:$0xff]
    %v1327 = vld [vmem:[#allocation18 + $0x58] sm:$0xff]
    %v1328 = vld [vmem:[#allocation18 + $0x60] sm:$0xff]
    %v1329 = vld [vmem:[#allocation18 + $0x68] sm:$0xff]
    %v1330 = vld [vmem:[#allocation18 + $0x70] sm:$0xff]
    %v1331 = vld [vmem:[#allocation18 + $0x78] sm:$0xff]
    %v1332 = vld [vmem:[#allocation19] sm:$0xff]
    %v1333 = vld [vmem:[#allocation19 + $0x8] sm:$0xff]
    %v1334 = vld [vmem:[#allocation19 + $0x10] sm:$0xff]
    %v1335 = vld [vmem:[#allocation19 + $0x18] sm:$0xff]
    %v1336 = vld [vmem:[#allocation19 + $0x20] sm:$0xff]
    %v1337 = vld [vmem:[#allocation19 + $0x28] sm:$0xff]
    %v1338 = vld [vmem:[#allocation19 + $0x30] sm:$0xff]
    %v1339 = vld [vmem:[#allocation19 + $0x38] sm:$0xff]
    %1340 = vrot.lane.b32.xlu0 %v1308, 127
    %v1341 = vpop.permute.xlu0 %1340
    %1342 = vrot.lane.b32.xlu0 %v1309, 127
    %v1343 = vpop.permute.xlu0 %1342
    %1344 = vrot.lane.b32.xlu0 %v1310, 127
    %v1345 = vpop.permute.xlu0 %1344
    %1346 = vrot.lane.b32.xlu0 %v1311, 127
    %v1347 = vpop.permute.xlu0 %1346
    %1348 = vrot.lane.b32.xlu0 %v1312, 127
    %v1349 = vpop.permute.xlu0 %1348
    %1350 = vrot.lane.b32.xlu0 %v1313, 127
    %v1351 = vpop.permute.xlu0 %1350
    %1352 = vrot.lane.b32.xlu0 %v1314, 127
    %v1353 = vpop.permute.xlu0 %1352
    %1354 = vrot.lane.b32.xlu0 %v1315, 127
    %v1355 = vpop.permute.xlu0 %1354
    %1356 = vrot.lane.b32.xlu0 %v1308, 126
    %v1357 = vpop.permute.xlu0 %1356
    %1358 = vrot.lane.b32.xlu0 %v1309, 126
    %v1359 = vpop.permute.xlu0 %1358
    %1360 = vrot.lane.b32.xlu0 %v1310, 126
    %v1361 = vpop.permute.xlu0 %1360
    %1362 = vrot.lane.b32.xlu0 %v1311, 126
    %v1363 = vpop.permute.xlu0 %1362
    %1364 = vrot.lane.b32.xlu0 %v1312, 126
    %v1365 = vpop.permute.xlu0 %1364
    %1366 = vrot.lane.b32.xlu0 %v1313, 126
    %v1367 = vpop.permute.xlu0 %1366
    %1368 = vrot.lane.b32.xlu0 %v1314, 126
    %v1369 = vpop.permute.xlu0 %1368
    %1370 = vrot.lane.b32.xlu0 %v1315, 126
    %v1371 = vpop.permute.xlu0 %1370
    %1373 = vset.pattern.permute.xlu0 0
    %1374 = vperm.xlu0 %1373, %v1332
    %v1375 = vpop.permute.xlu0 %1374
    %1378 = vset.pattern.permute.xlu0 0
    %1379 = vperm.xlu0 %1378, %v1333
    %v1380 = vpop.permute.xlu0 %1379
    %1383 = vset.pattern.permute.xlu0 0
    %1384 = vperm.xlu0 %1383, %v1334
    %v1385 = vpop.permute.xlu0 %1384
    %1388 = vset.pattern.permute.xlu0 0
    %1389 = vperm.xlu0 %1388, %v1335
    %v1390 = vpop.permute.xlu0 %1389
    %1393 = vset.pattern.permute.xlu0 0
    %1394 = vperm.xlu0 %1393, %v1336
    %v1395 = vpop.permute.xlu0 %1394
    %1398 = vset.pattern.permute.xlu0 0
    %1399 = vperm.xlu0 %1398, %v1337
    %v1400 = vpop.permute.xlu0 %1399
    %1403 = vset.pattern.permute.xlu0 0
    %1404 = vperm.xlu0 %1403, %v1338
    %v1405 = vpop.permute.xlu0 %1404
    %1408 = vset.pattern.permute.xlu0 0
    %1409 = vperm.xlu0 %1408, %v1339
    %v1410 = vpop.permute.xlu0 %1409
    %vm1412 = vcmask 523264
    %v1414 = vsel %vm1412, %v1317, 0
    %v1417 = vsel %vm1412, %v1319, 0
    %v1420 = vsel %vm1412, %v1321, 0
    %v1423 = vsel %vm1412, %v1323, 0
    %v1426 = vsel %vm1412, %v1325, 0
    %v1429 = vsel %vm1412, %v1327, 0
    %v1432 = vsel %vm1412, %v1329, 0
    %v1435 = vsel %vm1412, %v1331, 0
    %1437 = vmatprep.subr.mxu0 0.0
    %1438 = vmatpush1.msra.mxu0 %v1308
    %1439 = vmatprep.subr.mxu0 0.0
    %1440 = vmatpush1.msra.mxu0 %v1309
    %1441 = vmatprep.subr.mxu0 0.0
    %1442 = vmatpush1.msra.mxu0 %v1310
    %1443 = vmatprep.subr.mxu0 0.0
    %1444 = vmatpush1.msra.mxu0 %v1311
    %1445 = vmatprep.subr.mxu0 0.0
    %1446 = vmatpush1.msra.mxu0 %v1312
    %1447 = vmatprep.subr.mxu0 0.0
    %1448 = vmatpush1.msra.mxu0 %v1313
    %1449 = vmatprep.subr.mxu0 0.0
    %1450 = vmatpush1.msra.mxu0 %v1314
    %1451 = vmatprep.subr.mxu0 0.0
    %1452 = vmatpush1.msra.mxu0 %v1315
    %1453 = vmatprep.subr.mxu0 0.0
    %1454 = vmatpush1.msra.mxu0 %v1341
    %1455 = vmatprep.subr.mxu0 0.0
    %1456 = vmatpush1.msra.mxu0 %v1343
    %1457 = vmatprep.subr.mxu0 0.0
    %1458 = vmatpush1.msra.mxu0 %v1345
    %1459 = vmatprep.subr.mxu0 0.0
    %1460 = vmatpush1.msra.mxu0 %v1347
    %1461 = vmatprep.subr.mxu0 0.0
    %1462 = vmatpush1.msra.mxu0 %v1349
    %1463 = vmatprep.subr.mxu0 0.0
    %1464 = vmatpush1.msra.mxu0 %v1351
    %1465 = vmatprep.subr.mxu0 0.0
    %1466 = vmatpush1.msra.mxu0 %v1353
    %1467 = vmatprep.subr.mxu0 0.0
    %1468 = vmatpush1.msra.mxu0 %v1355
    %1469 = vmatprep.subr.mxu0 0.0
    %1470 = vmatpush1.msra.mxu0 %v1357
    %1471 = vmatprep.subr.mxu0 0.0
    %1472 = vmatpush1.msra.mxu0 %v1359
    %1473 = vmatprep.subr.mxu0 0.0
    %1474 = vmatpush1.msra.mxu0 %v1361
    %1475 = vmatprep.subr.mxu0 0.0
    %1476 = vmatpush1.msra.mxu0 %v1363
    %1477 = vmatprep.subr.mxu0 0.0
    %1478 = vmatpush1.msra.mxu0 %v1365
    %1479 = vmatprep.subr.mxu0 0.0
    %1480 = vmatpush1.msra.mxu0 %v1367
    %1481 = vmatprep.subr.mxu0 0.0
    %1482 = vmatpush1.msra.mxu0 %v1369
    %1483 = vmatprep.subr.mxu0 0.0
    %1484 = vmatpush1.msra.mxu0 %v1371
    %1485 = vmatprep.subr.mxu0 0.0
    %1486 = vmatpush1.msra.mxu0 0.0
    %1487 = vmatprep.subr.mxu0 0.0
    %1488 = vmatpush1.msra.mxu0 0.0
    %1489 = vmatprep.subr.mxu0 0.0
    %1490 = vmatpush1.msra.mxu0 0.0
    %1491 = vmatprep.subr.mxu0 0.0
    %1492 = vmatpush1.msra.mxu0 0.0
    %1493 = vmatprep.subr.mxu0 0.0
    %1494 = vmatpush1.msra.mxu0 0.0
    %1495 = vmatprep.subr.mxu0 0.0
    %1496 = vmatpush1.msra.mxu0 0.0
    %1497 = vmatprep.subr.mxu0 0.0
    %1498 = vmatpush1.msra.mxu0 0.0
    %1499 = vmatprep.subr.mxu0 0.0
    %1500 = vmatpush1.msra.mxu0 0.0
    %1501 = vmatprep.mubr.f32.mxu0 %v1414
    %1502 = vmatmul.mubr.f32.gmra.mrb[0].mxu0 %v1316
    %v1503 = vpop.f32.mrb[0].mxu0
    %v1504 = vadd.f32 %v1375, %v1503
    %v1505 = vpop.f32.mrb[0].mxu0
    %1506 = vmatprep.mubr.f32.mxu0 %v1417
    %1507 = vmatmul.mubr.f32.gmra.mrb[0].mxu0 %v1318
    %v1508 = vpop.f32.mrb[0].mxu0
    %v1509 = vadd.f32 %v1380, %v1508
    %v1510 = vpop.f32.mrb[0].mxu0
    %1511 = vmatprep.mubr.f32.mxu0 %v1420
    %1512 = vmatmul.mubr.f32.gmra.mrb[0].mxu0 %v1320
    %v1513 = vpop.f32.mrb[0].mxu0
    %v1514 = vadd.f32 %v1385, %v1513
    %v1515 = vpop.f32.mrb[0].mxu0
    %1516 = vmatprep.mubr.f32.mxu0 %v1423
    %1517 = vmatmul.mubr.f32.gmra.mrb[0].mxu0 %v1322
    %v1518 = vpop.f32.mrb[0].mxu0
    %v1519 = vadd.f32 %v1390, %v1518
    %v1520 = vpop.f32.mrb[0].mxu0
    %1521 = vmatprep.mubr.f32.mxu0 %v1426
    %1522 = vmatmul.mubr.f32.gmra.mrb[0].mxu0 %v1324
    %v1523 = vpop.f32.mrb[0].mxu0
    %v1524 = vadd.f32 %v1395, %v1523
    %v1525 = vpop.f32.mrb[0].mxu0
    %1526 = vmatprep.mubr.f32.mxu0 %v1429
    %1527 = vmatmul.mubr.f32.gmra.mrb[0].mxu0 %v1326
    %v1528 = vpop.f32.mrb[0].mxu0
    %v1529 = vadd.f32 %v1400, %v1528
    %v1530 = vpop.f32.mrb[0].mxu0
    %1531 = vmatprep.mubr.f32.mxu0 %v1432
    %1532 = vmatmul.mubr.f32.gmra.mrb[0].mxu0 %v1328
    %v1533 = vpop.f32.mrb[0].mxu0
    %v1534 = vadd.f32 %v1405, %v1533
    %v1535 = vpop.f32.mrb[0].mxu0
    %1536 = vmatprep.mubr.f32.mxu0 %v1435
    %1537 = vmatmul.mubr.f32.gmra.mrb[0].mxu0 %v1330
    %v1538 = vpop.f32.mrb[0].mxu0
    %v1539 = vadd.f32 %v1410, %v1538
    %v1540 = vpop.f32.mrb[0].mxu0
    %1541 = vdwg.mxu0
    %vm1542 = vcmp.ge.f32.partialorder %v1504, 0.0
    %vm1543 = vcmp.ge.f32.partialorder %v1509, 0.0
    %vm1544 = vcmp.ge.f32.partialorder %v1514, 0.0
    %vm1545 = vcmp.ge.f32.partialorder %v1519, 0.0
    %vm1546 = vcmp.ge.f32.partialorder %v1524, 0.0
    %vm1547 = vcmp.ge.f32.partialorder %v1529, 0.0
    %vm1548 = vcmp.ge.f32.partialorder %v1534, 0.0
    %vm1549 = vcmp.ge.f32.partialorder %v1539, 0.0
    %v1550 = vmul.f32 %v1504, 0.01
    %v1551 = vmul.f32 %v1509, 0.01
    %v1552 = vmul.f32 %v1514, 0.01
    %v1553 = vmul.f32 %v1519, 0.01
    %v1554 = vmul.f32 %v1524, 0.01
    %v1555 = vmul.f32 %v1529, 0.01
    %v1556 = vmul.f32 %v1534, 0.01
    %v1557 = vmul.f32 %v1539, 0.01
    %v1558 = vsel %vm1542, %v1504, %v1550
    %v1559 = vsel %vm1543, %v1509, %v1551
    %v1560 = vsel %vm1544, %v1514, %v1552
    %v1561 = vsel %vm1545, %v1519, %v1553
    %v1562 = vsel %vm1546, %v1524, %v1554
    %v1563 = vsel %vm1547, %v1529, %v1555
    %v1564 = vsel %vm1548, %v1534, %v1556
    %v1565 = vsel %vm1549, %v1539, %v1557
    %v1566 = vld [vmem:[#allocation21] sm:$0xff]
    %v1567 = vld [vmem:[#allocation21 + $0x8] sm:$0xff]
    %v1568 = vld [vmem:[#allocation21 + $0x10] sm:$0xff]
    %v1569 = vld [vmem:[#allocation21 + $0x18] sm:$0xff]
    %v1570 = vld [vmem:[#allocation21 + $0x20] sm:$0xff]
    %v1571 = vld [vmem:[#allocation21 + $0x28] sm:$0xff]
    %v1572 = vld [vmem:[#allocation21 + $0x30] sm:$0xff]
    %v1573 = vld [vmem:[#allocation21 + $0x38] sm:$0xff]
    %v1574 = vld [vmem:[#allocation21 + $0x40] sm:$0xff]
    %v1575 = vld [vmem:[#allocation21 + $0x48] sm:$0xff]
    %v1576 = vld [vmem:[#allocation21 + $0x50] sm:$0xff]
    %v1577 = vld [vmem:[#allocation21 + $0x58] sm:$0xff]
    %v1578 = vld [vmem:[#allocation21 + $0x60] sm:$0xff]
    %v1579 = vld [vmem:[#allocation21 + $0x68] sm:$0xff]
    %v1580 = vld [vmem:[#allocation21 + $0x70] sm:$0xff]
    %v1581 = vld [vmem:[#allocation21 + $0x78] sm:$0xff]
    %v1582 = vld [vmem:[#allocation21 + $0x80] sm:$0xff]
    %v1583 = vld [vmem:[#allocation21 + $0x88] sm:$0xff]
    %v1584 = vld [vmem:[#allocation21 + $0x90] sm:$0xff]
    %v1585 = vld [vmem:[#allocation21 + $0x98] sm:$0xff]
    %v1586 = vld [vmem:[#allocation21 + $0xa0] sm:$0xff]
    %v1587 = vld [vmem:[#allocation21 + $0xa8] sm:$0xff]
    %v1588 = vld [vmem:[#allocation21 + $0xb0] sm:$0xff]
    %v1589 = vld [vmem:[#allocation21 + $0xb8] sm:$0xff]
    %v1590 = vld [vmem:[#allocation21 + $0xc0] sm:$0xff]
    %v1591 = vld [vmem:[#allocation21 + $0xc8] sm:$0xff]
    %v1592 = vld [vmem:[#allocation21 + $0xd0] sm:$0xff]
    %v1593 = vld [vmem:[#allocation21 + $0xd8] sm:$0xff]
    %v1594 = vld [vmem:[#allocation21 + $0xe0] sm:$0xff]
    %v1595 = vld [vmem:[#allocation21 + $0xe8] sm:$0xff]
    %v1596 = vld [vmem:[#allocation21 + $0xf0] sm:$0xff]
    %v1597 = vld [vmem:[#allocation21 + $0xf8] sm:$0xff]
    %v1598 = vld [vmem:[#allocation22] sm:$0xff]
    %v1599 = vld [vmem:[#allocation22 + $0x8] sm:$0xff]
    %v1600 = vld [vmem:[#allocation22 + $0x10] sm:$0xff]
    %v1601 = vld [vmem:[#allocation22 + $0x18] sm:$0xff]
    %v1602 = vld [vmem:[#allocation22 + $0x20] sm:$0xff]
    %v1603 = vld [vmem:[#allocation22 + $0x28] sm:$0xff]
    %v1604 = vld [vmem:[#allocation22 + $0x30] sm:$0xff]
    %v1605 = vld [vmem:[#allocation22 + $0x38] sm:$0xff]
    %v1606 = vld [vmem:[#allocation22 + $0x40] sm:$0xff]
    %v1607 = vld [vmem:[#allocation22 + $0x48] sm:$0xff]
    %v1608 = vld [vmem:[#allocation22 + $0x50] sm:$0xff]
    %v1609 = vld [vmem:[#allocation22 + $0x58] sm:$0xff]
    %v1610 = vld [vmem:[#allocation22 + $0x60] sm:$0xff]
    %v1611 = vld [vmem:[#allocation22 + $0x68] sm:$0xff]
    %v1612 = vld [vmem:[#allocation22 + $0x70] sm:$0xff]
    %v1613 = vld [vmem:[#allocation22 + $0x78] sm:$0xff]
    %1614 = vrot.lane.b32.xlu0 %v1558, 127
    %v1615 = vpop.permute.xlu0 %1614
    %1616 = vrot.lane.b32.xlu0 %v1559, 127
    %v1617 = vpop.permute.xlu0 %1616
    %1618 = vrot.lane.b32.xlu0 %v1560, 127
    %v1619 = vpop.permute.xlu0 %1618
    %1620 = vrot.lane.b32.xlu0 %v1561, 127
    %v1621 = vpop.permute.xlu0 %1620
    %1622 = vrot.lane.b32.xlu0 %v1562, 127
    %v1623 = vpop.permute.xlu0 %1622
    %1624 = vrot.lane.b32.xlu0 %v1563, 127
    %v1625 = vpop.permute.xlu0 %1624
    %1626 = vrot.lane.b32.xlu0 %v1564, 127
    %v1627 = vpop.permute.xlu0 %1626
    %1628 = vrot.lane.b32.xlu0 %v1565, 127
    %v1629 = vpop.permute.xlu0 %1628
    %1630 = vrot.lane.b32.xlu0 %v1558, 126
    %v1631 = vpop.permute.xlu0 %1630
    %1632 = vrot.lane.b32.xlu0 %v1559, 126
    %v1633 = vpop.permute.xlu0 %1632
    %1634 = vrot.lane.b32.xlu0 %v1560, 126
    %v1635 = vpop.permute.xlu0 %1634
    %1636 = vrot.lane.b32.xlu0 %v1561, 126
    %v1637 = vpop.permute.xlu0 %1636
    %1638 = vrot.lane.b32.xlu0 %v1562, 126
    %v1639 = vpop.permute.xlu0 %1638
    %1640 = vrot.lane.b32.xlu0 %v1563, 126
    %v1641 = vpop.permute.xlu0 %1640
    %1642 = vrot.lane.b32.xlu0 %v1564, 126
    %v1643 = vpop.permute.xlu0 %1642
    %1644 = vrot.lane.b32.xlu0 %v1565, 126
    %v1645 = vpop.permute.xlu0 %1644
    %1647 = vset.pattern.permute.xlu0 0
    %1648 = vperm.xlu0 %1647, %v1598
    %v1649 = vpop.permute.xlu0 %1648
    %1652 = vset.pattern.permute.xlu0 0
    %1653 = vperm.xlu0 %1652, %v1599
    %v1654 = vpop.permute.xlu0 %1653
    %1657 = vset.pattern.permute.xlu0 0
    %1658 = vperm.xlu0 %1657, %v1600
    %v1659 = vpop.permute.xlu0 %1658
    %1662 = vset.pattern.permute.xlu0 0
    %1663 = vperm.xlu0 %1662, %v1601
    %v1664 = vpop.permute.xlu0 %1663
    %1667 = vset.pattern.permute.xlu0 0
    %1668 = vperm.xlu0 %1667, %v1602
    %v1669 = vpop.permute.xlu0 %1668
    %1672 = vset.pattern.permute.xlu0 0
    %1673 = vperm.xlu0 %1672, %v1603
    %v1674 = vpop.permute.xlu0 %1673
    %1677 = vset.pattern.permute.xlu0 0
    %1678 = vperm.xlu0 %1677, %v1604
    %v1679 = vpop.permute.xlu0 %1678
    %1682 = vset.pattern.permute.xlu0 0
    %1683 = vperm.xlu0 %1682, %v1605
    %v1684 = vpop.permute.xlu0 %1683
    %1687 = vset.pattern.permute.xlu0 0
    %1688 = vperm.xlu0 %1687, %v1606
    %v1689 = vpop.permute.xlu0 %1688
    %1692 = vset.pattern.permute.xlu0 0
    %1693 = vperm.xlu0 %1692, %v1607
    %v1694 = vpop.permute.xlu0 %1693
    %1697 = vset.pattern.permute.xlu0 0
    %1698 = vperm.xlu0 %1697, %v1608
    %v1699 = vpop.permute.xlu0 %1698
    %1702 = vset.pattern.permute.xlu0 0
    %1703 = vperm.xlu0 %1702, %v1609
    %v1704 = vpop.permute.xlu0 %1703
    %1707 = vset.pattern.permute.xlu0 0
    %1708 = vperm.xlu0 %1707, %v1610
    %v1709 = vpop.permute.xlu0 %1708
    %1712 = vset.pattern.permute.xlu0 0
    %1713 = vperm.xlu0 %1712, %v1611
    %v1714 = vpop.permute.xlu0 %1713
    %1717 = vset.pattern.permute.xlu0 0
    %1718 = vperm.xlu0 %1717, %v1612
    %v1719 = vpop.permute.xlu0 %1718
    %1722 = vset.pattern.permute.xlu0 0
    %1723 = vperm.xlu0 %1722, %v1613
    %v1724 = vpop.permute.xlu0 %1723
    %v1727 = vsel %vm1412, %v1567, 0
    %v1730 = vsel %vm1412, %v1569, 0
    %v1733 = vsel %vm1412, %v1571, 0
    %v1736 = vsel %vm1412, %v1573, 0
    %v1739 = vsel %vm1412, %v1575, 0
    %v1742 = vsel %vm1412, %v1577, 0
    %v1745 = vsel %vm1412, %v1579, 0
    %v1748 = vsel %vm1412, %v1581, 0
    %v1751 = vsel %vm1412, %v1583, 0
    %v1754 = vsel %vm1412, %v1585, 0
    %v1757 = vsel %vm1412, %v1587, 0
    %v1760 = vsel %vm1412, %v1589, 0
    %v1763 = vsel %vm1412, %v1591, 0
    %v1766 = vsel %vm1412, %v1593, 0
    %v1769 = vsel %vm1412, %v1595, 0
    %v1772 = vsel %vm1412, %v1597, 0
    %1774 = vmatprep.subr.mxu0 0.0
    %1775 = vmatpush1.msra.mxu0 %v1558
    %1776 = vmatprep.subr.mxu0 0.0
    %1777 = vmatpush1.msra.mxu0 %v1559
    %1778 = vmatprep.subr.mxu0 0.0
    %1779 = vmatpush1.msra.mxu0 %v1560
    %1780 = vmatprep.subr.mxu0 0.0
    %1781 = vmatpush1.msra.mxu0 %v1561
    %1782 = vmatprep.subr.mxu0 0.0
    %1783 = vmatpush1.msra.mxu0 %v1562
    %1784 = vmatprep.subr.mxu0 0.0
    %1785 = vmatpush1.msra.mxu0 %v1563
    %1786 = vmatprep.subr.mxu0 0.0
    %1787 = vmatpush1.msra.mxu0 %v1564
    %1788 = vmatprep.subr.mxu0 0.0
    %1789 = vmatpush1.msra.mxu0 %v1565
    %1790 = vmatprep.subr.mxu0 0.0
    %1791 = vmatpush1.msra.mxu0 %v1615
    %1792 = vmatprep.subr.mxu0 0.0
    %1793 = vmatpush1.msra.mxu0 %v1617
    %1794 = vmatprep.subr.mxu0 0.0
    %1795 = vmatpush1.msra.mxu0 %v1619
    %1796 = vmatprep.subr.mxu0 0.0
    %1797 = vmatpush1.msra.mxu0 %v1621
    %1798 = vmatprep.subr.mxu0 0.0
    %1799 = vmatpush1.msra.mxu0 %v1623
    %1800 = vmatprep.subr.mxu0 0.0
    %1801 = vmatpush1.msra.mxu0 %v1625
    %1802 = vmatprep.subr.mxu0 0.0
    %1803 = vmatpush1.msra.mxu0 %v1627
    %1804 = vmatprep.subr.mxu0 0.0
    %1805 = vmatpush1.msra.mxu0 %v1629
    %1806 = vmatprep.subr.mxu0 0.0
    %1807 = vmatpush1.msra.mxu0 %v1631
    %1808 = vmatprep.subr.mxu0 0.0
    %1809 = vmatpush1.msra.mxu0 %v1633
    %1810 = vmatprep.subr.mxu0 0.0
    %1811 = vmatpush1.msra.mxu0 %v1635
    %1812 = vmatprep.subr.mxu0 0.0
    %1813 = vmatpush1.msra.mxu0 %v1637
    %1814 = vmatprep.subr.mxu0 0.0
    %1815 = vmatpush1.msra.mxu0 %v1639
    %1816 = vmatprep.subr.mxu0 0.0
    %1817 = vmatpush1.msra.mxu0 %v1641
    %1818 = vmatprep.subr.mxu0 0.0
    %1819 = vmatpush1.msra.mxu0 %v1643
    %1820 = vmatprep.subr.mxu0 0.0
    %1821 = vmatpush1.msra.mxu0 %v1645
    %1822 = vmatprep.subr.mxu0 0.0
    %1823 = vmatpush1.msra.mxu0 0.0
    %1824 = vmatprep.subr.mxu0 0.0
    %1825 = vmatpush1.msra.mxu0 0.0
    %1826 = vmatprep.subr.mxu0 0.0
    %1827 = vmatpush1.msra.mxu0 0.0
    %1828 = vmatprep.subr.mxu0 0.0
    %1829 = vmatpush1.msra.mxu0 0.0
    %1830 = vmatprep.subr.mxu0 0.0
    %1831 = vmatpush1.msra.mxu0 0.0
    %1832 = vmatprep.subr.mxu0 0.0
    %1833 = vmatpush1.msra.mxu0 0.0
    %1834 = vmatprep.subr.mxu0 0.0
    %1835 = vmatpush1.msra.mxu0 0.0
    %1836 = vmatprep.subr.mxu0 0.0
    %1837 = vmatpush1.msra.mxu0 0.0
    %1838 = vmatprep.mubr.f32.mxu0 %v1727
    %1839 = vmatmul.mubr.f32.gmra.mrb[0].mxu0 %v1566
    %v1840 = vpop.f32.mrb[0].mxu0
    %v1841 = vadd.f32 %v1649, %v1840
    %v1842 = vpop.f32.mrb[0].mxu0
    %1843 = vmatprep.mubr.f32.mxu0 %v1730
    %1844 = vmatmul.mubr.f32.gmra.mrb[0].mxu0 %v1568
    %v1845 = vpop.f32.mrb[0].mxu0
    %v1846 = vadd.f32 %v1654, %v1845
    %v1847 = vpop.f32.mrb[0].mxu0
    %1848 = vmatprep.mubr.f32.mxu0 %v1733
    %1849 = vmatmul.mubr.f32.gmra.mrb[0].mxu0 %v1570
    %v1850 = vpop.f32.mrb[0].mxu0
    %v1851 = vadd.f32 %v1659, %v1850
    %v1852 = vpop.f32.mrb[0].mxu0
    %1853 = vmatprep.mubr.f32.mxu0 %v1736
    %1854 = vmatmul.mubr.f32.gmra.mrb[0].mxu0 %v1572
    %v1855 = vpop.f32.mrb[0].mxu0
    %v1856 = vadd.f32 %v1664, %v1855
    %v1857 = vpop.f32.mrb[0].mxu0
    %1858 = vmatprep.mubr.f32.mxu0 %v1739
    %1859 = vmatmul.mubr.f32.gmra.mrb[0].mxu0 %v1574
    %v1860 = vpop.f32.mrb[0].mxu0
    %v1861 = vadd.f32 %v1669, %v1860
    %v1862 = vpop.f32.mrb[0].mxu0
    %1863 = vmatprep.mubr.f32.mxu0 %v1742
    %1864 = vmatmul.mubr.f32.gmra.mrb[0].mxu0 %v1576
    %v1865 = vpop.f32.mrb[0].mxu0
    %v1866 = vadd.f32 %v1674, %v1865
    %v1867 = vpop.f32.mrb[0].mxu0
    %1868 = vmatprep.mubr.f32.mxu0 %v1745
    %1869 = vmatmul.mubr.f32.gmra.mrb[0].mxu0 %v1578
    %v1870 = vpop.f32.mrb[0].mxu0
    %v1871 = vadd.f32 %v1679, %v1870
    %v1872 = vpop.f32.mrb[0].mxu0
    %1873 = vmatprep.mubr.f32.mxu0 %v1748
    %1874 = vmatmul.mubr.f32.gmra.mrb[0].mxu0 %v1580
    %v1875 = vpop.f32.mrb[0].mxu0
    %v1876 = vadd.f32 %v1684, %v1875
    %v1877 = vpop.f32.mrb[0].mxu0
    %1878 = vmatprep.mubr.f32.mxu0 %v1751
    %1879 = vmatmul.mubr.f32.gmra.mrb[0].mxu0 %v1582
    %v1880 = vpop.f32.mrb[0].mxu0
    %v1881 = vadd.f32 %v1689, %v1880
    %v1882 = vpop.f32.mrb[0].mxu0
    %1883 = vmatprep.mubr.f32.mxu0 %v1754
    %1884 = vmatmul.mubr.f32.gmra.mrb[0].mxu0 %v1584
    %v1885 = vpop.f32.mrb[0].mxu0
    %v1886 = vadd.f32 %v1694, %v1885
    %v1887 = vpop.f32.mrb[0].mxu0
    %1888 = vmatprep.mubr.f32.mxu0 %v1757
    %1889 = vmatmul.mubr.f32.gmra.mrb[0].mxu0 %v1586
    %v1890 = vpop.f32.mrb[0].mxu0
    %v1891 = vadd.f32 %v1699, %v1890
    %v1892 = vpop.f32.mrb[0].mxu0
    %1893 = vmatprep.mubr.f32.mxu0 %v1760
    %1894 = vmatmul.mubr.f32.gmra.mrb[0].mxu0 %v1588
    %v1895 = vpop.f32.mrb[0].mxu0
    %v1896 = vadd.f32 %v1704, %v1895
    %v1897 = vpop.f32.mrb[0].mxu0
    %1898 = vmatprep.mubr.f32.mxu0 %v1763
    %1899 = vmatmul.mubr.f32.gmra.mrb[0].mxu0 %v1590
    %v1900 = vpop.f32.mrb[0].mxu0
    %v1901 = vadd.f32 %v1709, %v1900
    %v1902 = vpop.f32.mrb[0].mxu0
    %1903 = vmatprep.mubr.f32.mxu0 %v1766
    %1904 = vmatmul.mubr.f32.gmra.mrb[0].mxu0 %v1592
    %v1905 = vpop.f32.mrb[0].mxu0
    %v1906 = vadd.f32 %v1714, %v1905
    %v1907 = vpop.f32.mrb[0].mxu0
    %1908 = vmatprep.mubr.f32.mxu0 %v1769
    %1909 = vmatmul.mubr.f32.gmra.mrb[0].mxu0 %v1594
    %v1910 = vpop.f32.mrb[0].mxu0
    %v1911 = vadd.f32 %v1719, %v1910
    %v1912 = vpop.f32.mrb[0].mxu0
    %1913 = vmatprep.mubr.f32.mxu0 %v1772
    %1914 = vmatmul.mubr.f32.gmra.mrb[0].mxu0 %v1596
    %v1915 = vpop.f32.mrb[0].mxu0
    %v1916 = vadd.f32 %v1724, %v1915
    %v1917 = vpop.f32.mrb[0].mxu0
    %1918 = vdwg.mxu0
    %vm1919 = vcmp.ge.f32.partialorder %v1841, 0.0
    %vm1920 = vcmp.ge.f32.partialorder %v1846, 0.0
    %vm1921 = vcmp.ge.f32.partialorder %v1851, 0.0
    %vm1922 = vcmp.ge.f32.partialorder %v1856, 0.0
    %vm1923 = vcmp.ge.f32.partialorder %v1861, 0.0
    %vm1924 = vcmp.ge.f32.partialorder %v1866, 0.0
    %vm1925 = vcmp.ge.f32.partialorder %v1871, 0.0
    %vm1926 = vcmp.ge.f32.partialorder %v1876, 0.0
    %vm1927 = vcmp.ge.f32.partialorder %v1881, 0.0
    %vm1928 = vcmp.ge.f32.partialorder %v1886, 0.0
    %vm1929 = vcmp.ge.f32.partialorder %v1891, 0.0
    %vm1930 = vcmp.ge.f32.partialorder %v1896, 0.0
    %vm1931 = vcmp.ge.f32.partialorder %v1901, 0.0
    %vm1932 = vcmp.ge.f32.partialorder %v1906, 0.0
    %vm1933 = vcmp.ge.f32.partialorder %v1911, 0.0
    %vm1934 = vcmp.ge.f32.partialorder %v1916, 0.0
    %v1935 = vmul.f32 %v1841, 0.01
    %v1936 = vmul.f32 %v1846, 0.01
    %v1937 = vmul.f32 %v1851, 0.01
    %v1938 = vmul.f32 %v1856, 0.01
    %v1939 = vmul.f32 %v1861, 0.01
    %v1940 = vmul.f32 %v1866, 0.01
    %v1941 = vmul.f32 %v1871, 0.01
    %v1942 = vmul.f32 %v1876, 0.01
    %v1943 = vmul.f32 %v1881, 0.01
    %v1944 = vmul.f32 %v1886, 0.01
    %v1945 = vmul.f32 %v1891, 0.01
    %v1946 = vmul.f32 %v1896, 0.01
    %v1947 = vmul.f32 %v1901, 0.01
    %v1948 = vmul.f32 %v1906, 0.01
    %v1949 = vmul.f32 %v1911, 0.01
    %v1950 = vmul.f32 %v1916, 0.01
    %v1951 = vsel %vm1919, %v1841, %v1935
    %v1952 = vsel %vm1920, %v1846, %v1936
    %v1953 = vsel %vm1921, %v1851, %v1937
    %v1954 = vsel %vm1922, %v1856, %v1938
    %v1955 = vsel %vm1923, %v1861, %v1939
    %v1956 = vsel %vm1924, %v1866, %v1940
    %v1957 = vsel %vm1925, %v1871, %v1941
    %v1958 = vsel %vm1926, %v1876, %v1942
    %v1959 = vsel %vm1927, %v1881, %v1943
    %v1960 = vsel %vm1928, %v1886, %v1944
    %v1961 = vsel %vm1929, %v1891, %v1945
    %v1962 = vsel %vm1930, %v1896, %v1946
    %v1963 = vsel %vm1931, %v1901, %v1947
    %v1964 = vsel %vm1932, %v1906, %v1948
    %v1965 = vsel %vm1933, %v1911, %v1949
    %v1966 = vsel %vm1934, %v1916, %v1950
    %v1967 = vld [vmem:[#allocation24] sm:$0xff]
    %v1968 = vld [vmem:[#allocation24 + $0x8] sm:$0xff]
    %v1969 = vld [vmem:[#allocation24 + $0x10] sm:$0xff]
    %v1970 = vld [vmem:[#allocation24 + $0x18] sm:$0xff]
    %v1971 = vld [vmem:[#allocation24 + $0x20] sm:$0xff]
    %v1972 = vld [vmem:[#allocation24 + $0x28] sm:$0xff]
    %v1973 = vld [vmem:[#allocation24 + $0x30] sm:$0xff]
    %v1974 = vld [vmem:[#allocation24 + $0x38] sm:$0xff]
    %v1975 = vld [vmem:[#allocation24 + $0x40] sm:$0xff]
    %v1976 = vld [vmem:[#allocation24 + $0x48] sm:$0xff]
    %v1977 = vld [vmem:[#allocation24 + $0x50] sm:$0xff]
    %v1978 = vld [vmem:[#allocation24 + $0x58] sm:$0xff]
    %v1979 = vld [vmem:[#allocation24 + $0x60] sm:$0xff]
    %v1980 = vld [vmem:[#allocation24 + $0x68] sm:$0xff]
    %v1981 = vld [vmem:[#allocation24 + $0x70] sm:$0xff]
    %v1982 = vld [vmem:[#allocation24 + $0x78] sm:$0xff]
    %v1983 = vld [vmem:[#allocation24 + $0x80] sm:$0xff]
    %v1984 = vld [vmem:[#allocation24 + $0x88] sm:$0xff]
    %v1985 = vld [vmem:[#allocation24 + $0x90] sm:$0xff]
    %v1986 = vld [vmem:[#allocation24 + $0x98] sm:$0xff]
    %v1987 = vld [vmem:[#allocation24 + $0xa0] sm:$0xff]
    %v1988 = vld [vmem:[#allocation24 + $0xa8] sm:$0xff]
    %v1989 = vld [vmem:[#allocation24 + $0xb0] sm:$0xff]
    %v1990 = vld [vmem:[#allocation24 + $0xb8] sm:$0xff]
    %v1991 = vld [vmem:[#allocation24 + $0xc0] sm:$0xff]
    %v1992 = vld [vmem:[#allocation24 + $0xc8] sm:$0xff]
    %v1993 = vld [vmem:[#allocation24 + $0xd0] sm:$0xff]
    %v1994 = vld [vmem:[#allocation24 + $0xd8] sm:$0xff]
    %v1995 = vld [vmem:[#allocation24 + $0xe0] sm:$0xff]
    %v1996 = vld [vmem:[#allocation24 + $0xe8] sm:$0xff]
    %v1997 = vld [vmem:[#allocation24 + $0xf0] sm:$0xff]
    %v1998 = vld [vmem:[#allocation24 + $0xf8] sm:$0xff]
    %v1999 = vld [vmem:[#allocation24 + $0x100] sm:$0xff]
    %v2000 = vld [vmem:[#allocation24 + $0x108] sm:$0xff]
    %v2001 = vld [vmem:[#allocation24 + $0x110] sm:$0xff]
    %v2002 = vld [vmem:[#allocation24 + $0x118] sm:$0xff]
    %v2003 = vld [vmem:[#allocation24 + $0x120] sm:$0xff]
    %v2004 = vld [vmem:[#allocation24 + $0x128] sm:$0xff]
    %v2005 = vld [vmem:[#allocation24 + $0x130] sm:$0xff]
    %v2006 = vld [vmem:[#allocation24 + $0x138] sm:$0xff]
    %v2007 = vld [vmem:[#allocation24 + $0x140] sm:$0xff]
    %v2008 = vld [vmem:[#allocation24 + $0x148] sm:$0xff]
    %v2009 = vld [vmem:[#allocation24 + $0x150] sm:$0xff]
    %v2010 = vld [vmem:[#allocation24 + $0x158] sm:$0xff]
    %v2011 = vld [vmem:[#allocation24 + $0x160] sm:$0xff]
    %v2012 = vld [vmem:[#allocation24 + $0x168] sm:$0xff]
    %v2013 = vld [vmem:[#allocation24 + $0x170] sm:$0xff]
    %v2014 = vld [vmem:[#allocation24 + $0x178] sm:$0xff]
    %v2015 = vld [vmem:[#allocation25] sm:$0xff]
    %v2016 = vld [vmem:[#allocation25 + $0x8] sm:$0xff]
    %v2017 = vld [vmem:[#allocation25 + $0x10] sm:$0xff]
    %v2018 = vld [vmem:[#allocation25 + $0x18] sm:$0xff]
    %v2019 = vld [vmem:[#allocation25 + $0x20] sm:$0xff]
    %v2020 = vld [vmem:[#allocation25 + $0x28] sm:$0xff]
    %v2021 = vld [vmem:[#allocation25 + $0x30] sm:$0xff]
    %v2022 = vld [vmem:[#allocation25 + $0x38] sm:$0xff]
    %v2023 = vld [vmem:[#allocation25 + $0x40] sm:$0xff]
    %v2024 = vld [vmem:[#allocation25 + $0x48] sm:$0xff]
    %v2025 = vld [vmem:[#allocation25 + $0x50] sm:$0xff]
    %v2026 = vld [vmem:[#allocation25 + $0x58] sm:$0xff]
    %v2027 = vld [vmem:[#allocation25 + $0x60] sm:$0xff]
    %v2028 = vld [vmem:[#allocation25 + $0x68] sm:$0xff]
    %v2029 = vld [vmem:[#allocation25 + $0x70] sm:$0xff]
    %v2030 = vld [vmem:[#allocation25 + $0x78] sm:$0xff]
    %2031 = vrot.lane.b32.xlu0 %v1951, 127
    %v2032 = vpop.permute.xlu0 %2031
    %2033 = vrot.lane.b32.xlu0 %v1952, 127
    %v2034 = vpop.permute.xlu0 %2033
    %2035 = vrot.lane.b32.xlu0 %v1953, 127
    %v2036 = vpop.permute.xlu0 %2035
    %2037 = vrot.lane.b32.xlu0 %v1954, 127
    %v2038 = vpop.permute.xlu0 %2037
    %2039 = vrot.lane.b32.xlu0 %v1955, 127
    %v2040 = vpop.permute.xlu0 %2039
    %2041 = vrot.lane.b32.xlu0 %v1956, 127
    %v2042 = vpop.permute.xlu0 %2041
    %2043 = vrot.lane.b32.xlu0 %v1957, 127
    %v2044 = vpop.permute.xlu0 %2043
    %2045 = vrot.lane.b32.xlu0 %v1958, 127
    %v2046 = vpop.permute.xlu0 %2045
    %2047 = vrot.lane.b32.xlu0 %v1959, 127
    %v2048 = vpop.permute.xlu0 %2047
    %2049 = vrot.lane.b32.xlu0 %v1960, 127
    %v2050 = vpop.permute.xlu0 %2049
    %2051 = vrot.lane.b32.xlu0 %v1961, 127
    %v2052 = vpop.permute.xlu0 %2051
    %2053 = vrot.lane.b32.xlu0 %v1962, 127
    %v2054 = vpop.permute.xlu0 %2053
    %2055 = vrot.lane.b32.xlu0 %v1963, 127
    %v2056 = vpop.permute.xlu0 %2055
    %2057 = vrot.lane.b32.xlu0 %v1964, 127
    %v2058 = vpop.permute.xlu0 %2057
    %2059 = vrot.lane.b32.xlu0 %v1965, 127
    %v2060 = vpop.permute.xlu0 %2059
    %2061 = vrot.lane.b32.xlu0 %v1966, 127
    %v2062 = vpop.permute.xlu0 %2061
    %2063 = vrot.lane.b32.xlu0 %v1951, 126
    %v2064 = vpop.permute.xlu0 %2063
    %2065 = vrot.lane.b32.xlu0 %v1952, 126
    %v2066 = vpop.permute.xlu0 %2065
    %2067 = vrot.lane.b32.xlu0 %v1953, 126
    %v2068 = vpop.permute.xlu0 %2067
    %2069 = vrot.lane.b32.xlu0 %v1954, 126
    %v2070 = vpop.permute.xlu0 %2069
    %2071 = vrot.lane.b32.xlu0 %v1955, 126
    %v2072 = vpop.permute.xlu0 %2071
    %2073 = vrot.lane.b32.xlu0 %v1956, 126
    %v2074 = vpop.permute.xlu0 %2073
    %2075 = vrot.lane.b32.xlu0 %v1957, 126
    %v2076 = vpop.permute.xlu0 %2075
    %2077 = vrot.lane.b32.xlu0 %v1958, 126
    %v2078 = vpop.permute.xlu0 %2077
    %2079 = vrot.lane.b32.xlu0 %v1959, 126
    %v2080 = vpop.permute.xlu0 %2079
    %2081 = vrot.lane.b32.xlu0 %v1960, 126
    %v2082 = vpop.permute.xlu0 %2081
    %2083 = vrot.lane.b32.xlu0 %v1961, 126
    %v2084 = vpop.permute.xlu0 %2083
    %2085 = vrot.lane.b32.xlu0 %v1962, 126
    %v2086 = vpop.permute.xlu0 %2085
    %2087 = vrot.lane.b32.xlu0 %v1963, 126
    %v2088 = vpop.permute.xlu0 %2087
    %2089 = vrot.lane.b32.xlu0 %v1964, 126
    %v2090 = vpop.permute.xlu0 %2089
    %2091 = vrot.lane.b32.xlu0 %v1965, 126
    %v2092 = vpop.permute.xlu0 %2091
    %2093 = vrot.lane.b32.xlu0 %v1966, 126
    %v2094 = vpop.permute.xlu0 %2093
    %2096 = vset.pattern.permute.xlu0 0
    %2097 = vperm.xlu0 %2096, %v2015
    %v2098 = vpop.permute.xlu0 %2097
    %2101 = vset.pattern.permute.xlu0 0
    %2102 = vperm.xlu0 %2101, %v2016
    %v2103 = vpop.permute.xlu0 %2102
    %2106 = vset.pattern.permute.xlu0 0
    %2107 = vperm.xlu0 %2106, %v2017
    %v2108 = vpop.permute.xlu0 %2107
    %2111 = vset.pattern.permute.xlu0 0
    %2112 = vperm.xlu0 %2111, %v2018
    %v2113 = vpop.permute.xlu0 %2112
    %2116 = vset.pattern.permute.xlu0 0
    %2117 = vperm.xlu0 %2116, %v2019
    %v2118 = vpop.permute.xlu0 %2117
    %2121 = vset.pattern.permute.xlu0 0
    %2122 = vperm.xlu0 %2121, %v2020
    %v2123 = vpop.permute.xlu0 %2122
    %2126 = vset.pattern.permute.xlu0 0
    %2127 = vperm.xlu0 %2126, %v2021
    %v2128 = vpop.permute.xlu0 %2127
    %2131 = vset.pattern.permute.xlu0 0
    %2132 = vperm.xlu0 %2131, %v2022
    %v2133 = vpop.permute.xlu0 %2132
    %2136 = vset.pattern.permute.xlu0 0
    %2137 = vperm.xlu0 %2136, %v2023
    %v2138 = vpop.permute.xlu0 %2137
    %2141 = vset.pattern.permute.xlu0 0
    %2142 = vperm.xlu0 %2141, %v2024
    %v2143 = vpop.permute.xlu0 %2142
    %2146 = vset.pattern.permute.xlu0 0
    %2147 = vperm.xlu0 %2146, %v2025
    %v2148 = vpop.permute.xlu0 %2147
    %2151 = vset.pattern.permute.xlu0 0
    %2152 = vperm.xlu0 %2151, %v2026
    %v2153 = vpop.permute.xlu0 %2152
    %2156 = vset.pattern.permute.xlu0 0
    %2157 = vperm.xlu0 %2156, %v2027
    %v2158 = vpop.permute.xlu0 %2157
    %2161 = vset.pattern.permute.xlu0 0
    %2162 = vperm.xlu0 %2161, %v2028
    %v2163 = vpop.permute.xlu0 %2162
    %2166 = vset.pattern.permute.xlu0 0
    %2167 = vperm.xlu0 %2166, %v2029
    %v2168 = vpop.permute.xlu0 %2167
    %2171 = vset.pattern.permute.xlu0 0
    %2172 = vperm.xlu0 %2171, %v2030
    %v2173 = vpop.permute.xlu0 %2172
    %2175 = vmatprep.subr.mxu0 0.0
    %2176 = vmatpush1.msra.mxu0 %v1951
    %2177 = vmatprep.subr.mxu0 0.0
    %2178 = vmatpush1.msra.mxu0 %v1952
    %2179 = vmatprep.subr.mxu0 0.0
    %2180 = vmatpush1.msra.mxu0 %v1953
    %2181 = vmatprep.subr.mxu0 0.0
    %2182 = vmatpush1.msra.mxu0 %v1954
    %2183 = vmatprep.subr.mxu0 0.0
    %2184 = vmatpush1.msra.mxu0 %v1955
    %2185 = vmatprep.subr.mxu0 0.0
    %2186 = vmatpush1.msra.mxu0 %v1956
    %2187 = vmatprep.subr.mxu0 0.0
    %2188 = vmatpush1.msra.mxu0 %v1957
    %2189 = vmatprep.subr.mxu0 0.0
    %2190 = vmatpush1.msra.mxu0 %v1958
    %2191 = vmatprep.subr.mxu0 0.0
    %2192 = vmatpush1.msra.mxu0 %v1959
    %2193 = vmatprep.subr.mxu0 0.0
    %2194 = vmatpush1.msra.mxu0 %v1960
    %2195 = vmatprep.subr.mxu0 0.0
    %2196 = vmatpush1.msra.mxu0 %v1961
    %2197 = vmatprep.subr.mxu0 0.0
    %2198 = vmatpush1.msra.mxu0 %v1962
    %2199 = vmatprep.subr.mxu0 0.0
    %2200 = vmatpush1.msra.mxu0 %v1963
    %2201 = vmatprep.subr.mxu0 0.0
    %2202 = vmatpush1.msra.mxu0 %v1964
    %2203 = vmatprep.subr.mxu0 0.0
    %2204 = vmatpush1.msra.mxu0 %v1965
    %2205 = vmatprep.subr.mxu0 0.0
    %2206 = vmatpush1.msra.mxu0 %v1966
    %2207 = vmatprep.subr.mxu0 0.0
    %2208 = vmatpush1.msra.mxu0 %v2032
    %2209 = vmatprep.subr.mxu0 0.0
    %2210 = vmatpush1.msra.mxu0 %v2034
    %2211 = vmatprep.subr.mxu0 0.0
    %2212 = vmatpush1.msra.mxu0 %v2036
    %2213 = vmatprep.subr.mxu0 0.0
    %2214 = vmatpush1.msra.mxu0 %v2038
    %2215 = vmatprep.subr.mxu0 0.0
    %2216 = vmatpush1.msra.mxu0 %v2040
    %2217 = vmatprep.subr.mxu0 0.0
    %2218 = vmatpush1.msra.mxu0 %v2042
    %2219 = vmatprep.subr.mxu0 0.0
    %2220 = vmatpush1.msra.mxu0 %v2044
    %2221 = vmatprep.subr.mxu0 0.0
    %2222 = vmatpush1.msra.mxu0 %v2046
    %2223 = vmatprep.subr.mxu0 0.0
    %2224 = vmatpush1.msra.mxu0 %v2048
    %2225 = vmatprep.subr.mxu0 0.0
    %2226 = vmatpush1.msra.mxu0 %v2050
    %2227 = vmatprep.subr.mxu0 0.0
    %2228 = vmatpush1.msra.mxu0 %v2052
    %2229 = vmatprep.subr.mxu0 0.0
    %2230 = vmatpush1.msra.mxu0 %v2054
    %2231 = vmatprep.subr.mxu0 0.0
    %2232 = vmatpush1.msra.mxu0 %v2056
    %2233 = vmatprep.subr.mxu0 0.0
    %2234 = vmatpush1.msra.mxu0 %v2058
    %2235 = vmatprep.subr.mxu0 0.0
    %2236 = vmatpush1.msra.mxu0 %v2060
    %2237 = vmatprep.subr.mxu0 0.0
    %2238 = vmatpush1.msra.mxu0 %v2062
    %2239 = vmatprep.mubr.f32.mxu0 %v1968
    %2240 = vmatmul.mubr.f32.gmra.mrb[0].mxu0 %v1967
    %v2241 = vpop.f32.mrb[0].mxu0
    %v2242 = vadd.f32 %v2098, %v2241
    %v2243 = vpop.f32.mrb[0].mxu0
    %2244 = vmatprep.mubr.f32.mxu0 %v1971
    %2245 = vmatmul.mubr.f32.gmra.mrb[0].mxu0 %v1970
    %v2246 = vpop.f32.mrb[0].mxu0
    %v2247 = vadd.f32 %v2103, %v2246
    %v2248 = vpop.f32.mrb[0].mxu0
    %2249 = vmatprep.mubr.f32.mxu0 %v1974
    %2250 = vmatmul.mubr.f32.gmra.mrb[0].mxu0 %v1973
    %v2251 = vpop.f32.mrb[0].mxu0
    %v2252 = vadd.f32 %v2108, %v2251
    %v2253 = vpop.f32.mrb[0].mxu0
    %2254 = vmatprep.mubr.f32.mxu0 %v1977
    %2255 = vmatmul.mubr.f32.gmra.mrb[0].mxu0 %v1976
    %v2256 = vpop.f32.mrb[0].mxu0
    %v2257 = vadd.f32 %v2113, %v2256
    %v2258 = vpop.f32.mrb[0].mxu0
    %2259 = vmatprep.mubr.f32.mxu0 %v1980
    %2260 = vmatmul.mubr.f32.gmra.mrb[0].mxu0 %v1979
    %v2261 = vpop.f32.mrb[0].mxu0
    %v2262 = vadd.f32 %v2118, %v2261
    %v2263 = vpop.f32.mrb[0].mxu0
    %2264 = vmatprep.mubr.f32.mxu0 %v1983
    %2265 = vmatmul.mubr.f32.gmra.mrb[0].mxu0 %v1982
    %v2266 = vpop.f32.mrb[0].mxu0
    %v2267 = vadd.f32 %v2123, %v2266
    %v2268 = vpop.f32.mrb[0].mxu0
    %2269 = vmatprep.mubr.f32.mxu0 %v1986
    %2270 = vmatmul.mubr.f32.gmra.mrb[0].mxu0 %v1985
    %v2271 = vpop.f32.mrb[0].mxu0
    %v2272 = vadd.f32 %v2128, %v2271
    %v2273 = vpop.f32.mrb[0].mxu0
    %2274 = vmatprep.mubr.f32.mxu0 %v1989
    %2275 = vmatmul.mubr.f32.gmra.mrb[0].mxu0 %v1988
    %v2276 = vpop.f32.mrb[0].mxu0
    %v2277 = vadd.f32 %v2133, %v2276
    %v2278 = vpop.f32.mrb[0].mxu0
    %2279 = vmatprep.mubr.f32.mxu0 %v1992
    %2280 = vmatmul.mubr.f32.gmra.mrb[0].mxu0 %v1991
    %v2281 = vpop.f32.mrb[0].mxu0
    %v2282 = vadd.f32 %v2138, %v2281
    %v2283 = vpop.f32.mrb[0].mxu0
    %2284 = vmatprep.mubr.f32.mxu0 %v1995
    %2285 = vmatmul.mubr.f32.gmra.mrb[0].mxu0 %v1994
    %v2286 = vpop.f32.mrb[0].mxu0
    %v2287 = vadd.f32 %v2143, %v2286
    %v2288 = vpop.f32.mrb[0].mxu0
    %2289 = vmatprep.mubr.f32.mxu0 %v1998
    %2290 = vmatmul.mubr.f32.gmra.mrb[0].mxu0 %v1997
    %v2291 = vpop.f32.mrb[0].mxu0
    %v2292 = vadd.f32 %v2148, %v2291
    %v2293 = vpop.f32.mrb[0].mxu0
    %2294 = vmatprep.mubr.f32.mxu0 %v2001
    %2295 = vmatmul.mubr.f32.gmra.mrb[0].mxu0 %v2000
    %v2296 = vpop.f32.mrb[0].mxu0
    %v2297 = vadd.f32 %v2153, %v2296
    %v2298 = vpop.f32.mrb[0].mxu0
    %2299 = vmatprep.mubr.f32.mxu0 %v2004
    %2300 = vmatmul.mubr.f32.gmra.mrb[0].mxu0 %v2003
    %v2301 = vpop.f32.mrb[0].mxu0
    %v2302 = vadd.f32 %v2158, %v2301
    %v2303 = vpop.f32.mrb[0].mxu0
    %2304 = vmatprep.mubr.f32.mxu0 %v2007
    %2305 = vmatmul.mubr.f32.gmra.mrb[0].mxu0 %v2006
    %v2306 = vpop.f32.mrb[0].mxu0
    %v2307 = vadd.f32 %v2163, %v2306
    %v2308 = vpop.f32.mrb[0].mxu0
    %2309 = vmatprep.mubr.f32.mxu0 %v2010
    %2310 = vmatmul.mubr.f32.gmra.mrb[0].mxu0 %v2009
    %v2311 = vpop.f32.mrb[0].mxu0
    %v2312 = vadd.f32 %v2168, %v2311
    %v2313 = vpop.f32.mrb[0].mxu0
    %2314 = vmatprep.mubr.f32.mxu0 %v2013
    %2315 = vmatmul.mubr.f32.gmra.mrb[0].mxu0 %v2012
    %v2316 = vpop.f32.mrb[0].mxu0
    %v2317 = vadd.f32 %v2173, %v2316
    %v2318 = vpop.f32.mrb[0].mxu0
    %2319 = vdwg.mxu0
    %2320 = vmatprep.subr.mxu0 0.0
    %2321 = vmatpush1.msra.mxu0 %v2064
    %2322 = vmatprep.subr.mxu0 0.0
    %2323 = vmatpush1.msra.mxu0 %v2066
    %2324 = vmatprep.subr.mxu0 0.0
    %2325 = vmatpush1.msra.mxu0 %v2068
    %2326 = vmatprep.subr.mxu0 0.0
    %2327 = vmatpush1.msra.mxu0 %v2070
    %2328 = vmatprep.subr.mxu0 0.0
    %2329 = vmatpush1.msra.mxu0 %v2072
    %2330 = vmatprep.subr.mxu0 0.0
    %2331 = vmatpush1.msra.mxu0 %v2074
    %2332 = vmatprep.subr.mxu0 0.0
    %2333 = vmatpush1.msra.mxu0 %v2076
    %2334 = vmatprep.subr.mxu0 0.0
    %2335 = vmatpush1.msra.mxu0 %v2078
    %2336 = vmatprep.subr.mxu0 0.0
    %2337 = vmatpush1.msra.mxu0 %v2080
    %2338 = vmatprep.subr.mxu0 0.0
    %2339 = vmatpush1.msra.mxu0 %v2082
    %2340 = vmatprep.subr.mxu0 0.0
    %2341 = vmatpush1.msra.mxu0 %v2084
    %2342 = vmatprep.subr.mxu0 0.0
    %2343 = vmatpush1.msra.mxu0 %v2086
    %2344 = vmatprep.subr.mxu0 0.0
    %2345 = vmatpush1.msra.mxu0 %v2088
    %2346 = vmatprep.subr.mxu0 0.0
    %2347 = vmatpush1.msra.mxu0 %v2090
    %2348 = vmatprep.subr.mxu0 0.0
    %2349 = vmatpush1.msra.mxu0 %v2092
    %2350 = vmatprep.subr.mxu0 0.0
    %2351 = vmatpush1.msra.mxu0 %v2094
    %2352 = vmatprep.subr.mxu0 0.0
    %2353 = vmatpush1.msra.mxu0 0.0
    %2354 = vmatprep.subr.mxu0 0.0
    %2355 = vmatpush1.msra.mxu0 0.0
    %2356 = vmatprep.subr.mxu0 0.0
    %2357 = vmatpush1.msra.mxu0 0.0
    %2358 = vmatprep.subr.mxu0 0.0
    %2359 = vmatpush1.msra.mxu0 0.0
    %2360 = vmatprep.subr.mxu0 0.0
    %2361 = vmatpush1.msra.mxu0 0.0
    %2362 = vmatprep.subr.mxu0 0.0
    %2363 = vmatpush1.msra.mxu0 0.0
    %2364 = vmatprep.subr.mxu0 0.0
    %2365 = vmatpush1.msra.mxu0 0.0
    %2366 = vmatprep.subr.mxu0 0.0
    %2367 = vmatpush1.msra.mxu0 0.0
    %2368 = vmatprep.subr.mxu0 0.0
    %2369 = vmatpush1.msra.mxu0 0.0
    %2370 = vmatprep.subr.mxu0 0.0
    %2371 = vmatpush1.msra.mxu0 0.0
    %2372 = vmatprep.subr.mxu0 0.0
    %2373 = vmatpush1.msra.mxu0 0.0
    %2374 = vmatprep.subr.mxu0 0.0
    %2375 = vmatpush1.msra.mxu0 0.0
    %2376 = vmatprep.subr.mxu0 0.0
    %2377 = vmatpush1.msra.mxu0 0.0
    %2378 = vmatprep.subr.mxu0 0.0
    %2379 = vmatpush1.msra.mxu0 0.0
    %2380 = vmatprep.subr.mxu0 0.0
    %2381 = vmatpush1.msra.mxu0 0.0
    %2382 = vmatprep.subr.mxu0 0.0
    %2383 = vmatpush1.msra.mxu0 0.0
    %2384 = vmatprep.mubr.f32.mxu0 0.0
    %2385 = vmatmul.mubr.f32.gmra.mrb[0].mxu0 %v1969
    %v2386 = vpop.f32.mrb[0].mxu0
    %v2387 = vadd.f32 %v2242, %v2386
    %v2388 = vpop.f32.mrb[0].mxu0
    %2389 = vmatprep.mubr.f32.mxu0 0.0
    %2390 = vmatmul.mubr.f32.gmra.mrb[0].mxu0 %v1972
    %v2391 = vpop.f32.mrb[0].mxu0
    %v2392 = vadd.f32 %v2247, %v2391
    %v2393 = vpop.f32.mrb[0].mxu0
    %2394 = vmatprep.mubr.f32.mxu0 0.0
    %2395 = vmatmul.mubr.f32.gmra.mrb[0].mxu0 %v1975
    %v2396 = vpop.f32.mrb[0].mxu0
    %v2397 = vadd.f32 %v2252, %v2396
    %v2398 = vpop.f32.mrb[0].mxu0
    %2399 = vmatprep.mubr.f32.mxu0 0.0
    %2400 = vmatmul.mubr.f32.gmra.mrb[0].mxu0 %v1978
    %v2401 = vpop.f32.mrb[0].mxu0
    %v2402 = vadd.f32 %v2257, %v2401
    %v2403 = vpop.f32.mrb[0].mxu0
    %2404 = vmatprep.mubr.f32.mxu0 0.0
    %2405 = vmatmul.mubr.f32.gmra.mrb[0].mxu0 %v1981
    %v2406 = vpop.f32.mrb[0].mxu0
    %v2407 = vadd.f32 %v2262, %v2406
    %v2408 = vpop.f32.mrb[0].mxu0
    %2409 = vmatprep.mubr.f32.mxu0 0.0
    %2410 = vmatmul.mubr.f32.gmra.mrb[0].mxu0 %v1984
    %v2411 = vpop.f32.mrb[0].mxu0
    %v2412 = vadd.f32 %v2267, %v2411
    %v2413 = vpop.f32.mrb[0].mxu0
    %2414 = vmatprep.mubr.f32.mxu0 0.0
    %2415 = vmatmul.mubr.f32.gmra.mrb[0].mxu0 %v1987
    %v2416 = vpop.f32.mrb[0].mxu0
    %v2417 = vadd.f32 %v2272, %v2416
    %v2418 = vpop.f32.mrb[0].mxu0
    %2419 = vmatprep.mubr.f32.mxu0 0.0
    %2420 = vmatmul.mubr.f32.gmra.mrb[0].mxu0 %v1990
    %v2421 = vpop.f32.mrb[0].mxu0
    %v2422 = vadd.f32 %v2277, %v2421
    %v2423 = vpop.f32.mrb[0].mxu0
    %2424 = vmatprep.mubr.f32.mxu0 0.0
    %2425 = vmatmul.mubr.f32.gmra.mrb[0].mxu0 %v1993
    %v2426 = vpop.f32.mrb[0].mxu0
    %v2427 = vadd.f32 %v2282, %v2426
    %v2428 = vpop.f32.mrb[0].mxu0
    %2429 = vmatprep.mubr.f32.mxu0 0.0
    %2430 = vmatmul.mubr.f32.gmra.mrb[0].mxu0 %v1996
    %v2431 = vpop.f32.mrb[0].mxu0
    %v2432 = vadd.f32 %v2287, %v2431
    %v2433 = vpop.f32.mrb[0].mxu0
    %2434 = vmatprep.mubr.f32.mxu0 0.0
    %2435 = vmatmul.mubr.f32.gmra.mrb[0].mxu0 %v1999
    %v2436 = vpop.f32.mrb[0].mxu0
    %v2437 = vadd.f32 %v2292, %v2436
    %v2438 = vpop.f32.mrb[0].mxu0
    %2439 = vmatprep.mubr.f32.mxu0 0.0
    %2440 = vmatmul.mubr.f32.gmra.mrb[0].mxu0 %v2002
    %v2441 = vpop.f32.mrb[0].mxu0
    %v2442 = vadd.f32 %v2297, %v2441
    %v2443 = vpop.f32.mrb[0].mxu0
    %2444 = vmatprep.mubr.f32.mxu0 0.0
    %2445 = vmatmul.mubr.f32.gmra.mrb[0].mxu0 %v2005
    %v2446 = vpop.f32.mrb[0].mxu0
    %v2447 = vadd.f32 %v2302, %v2446
    %v2448 = vpop.f32.mrb[0].mxu0
    %2449 = vmatprep.mubr.f32.mxu0 0.0
    %2450 = vmatmul.mubr.f32.gmra.mrb[0].mxu0 %v2008
    %v2451 = vpop.f32.mrb[0].mxu0
    %v2452 = vadd.f32 %v2307, %v2451
    %v2453 = vpop.f32.mrb[0].mxu0
    %2454 = vmatprep.mubr.f32.mxu0 0.0
    %2455 = vmatmul.mubr.f32.gmra.mrb[0].mxu0 %v2011
    %v2456 = vpop.f32.mrb[0].mxu0
    %v2457 = vadd.f32 %v2312, %v2456
    %v2458 = vpop.f32.mrb[0].mxu0
    %2459 = vmatprep.mubr.f32.mxu0 0.0
    %2460 = vmatmul.mubr.f32.gmra.mrb[0].mxu0 %v2014
    %v2461 = vpop.f32.mrb[0].mxu0
    %v2462 = vadd.f32 %v2317, %v2461
    %v2463 = vpop.f32.mrb[0].mxu0
    %2464 = vdwg.mxu0
    %vm2465 = vcmp.ge.f32.partialorder %v2387, 0.0
    %vm2466 = vcmp.ge.f32.partialorder %v2392, 0.0
    %vm2467 = vcmp.ge.f32.partialorder %v2397, 0.0
    %vm2468 = vcmp.ge.f32.partialorder %v2402, 0.0
    %vm2469 = vcmp.ge.f32.partialorder %v2407, 0.0
    %vm2470 = vcmp.ge.f32.partialorder %v2412, 0.0
    %vm2471 = vcmp.ge.f32.partialorder %v2417, 0.0
    %vm2472 = vcmp.ge.f32.partialorder %v2422, 0.0
    %vm2473 = vcmp.ge.f32.partialorder %v2427, 0.0
    %vm2474 = vcmp.ge.f32.partialorder %v2432, 0.0
    %vm2475 = vcmp.ge.f32.partialorder %v2437, 0.0
    %vm2476 = vcmp.ge.f32.partialorder %v2442, 0.0
    %vm2477 = vcmp.ge.f32.partialorder %v2447, 0.0
    %vm2478 = vcmp.ge.f32.partialorder %v2452, 0.0
    %vm2479 = vcmp.ge.f32.partialorder %v2457, 0.0
    %vm2480 = vcmp.ge.f32.partialorder %v2462, 0.0
    %v2481 = vmul.f32 %v2387, 0.01
    %v2482 = vmul.f32 %v2392, 0.01
    %v2483 = vmul.f32 %v2397, 0.01
    %v2484 = vmul.f32 %v2402, 0.01
    %v2485 = vmul.f32 %v2407, 0.01
    %v2486 = vmul.f32 %v2412, 0.01
    %v2487 = vmul.f32 %v2417, 0.01
    %v2488 = vmul.f32 %v2422, 0.01
    %v2489 = vmul.f32 %v2427, 0.01
    %v2490 = vmul.f32 %v2432, 0.01
    %v2491 = vmul.f32 %v2437, 0.01
    %v2492 = vmul.f32 %v2442, 0.01
    %v2493 = vmul.f32 %v2447, 0.01
    %v2494 = vmul.f32 %v2452, 0.01
    %v2495 = vmul.f32 %v2457, 0.01
    %v2496 = vmul.f32 %v2462, 0.01
    %v2497 = vsel %vm2465, %v2387, %v2481
    %v2498 = vsel %vm2466, %v2392, %v2482
    %v2499 = vsel %vm2467, %v2397, %v2483
    %v2500 = vsel %vm2468, %v2402, %v2484
    %v2501 = vsel %vm2469, %v2407, %v2485
    %v2502 = vsel %vm2470, %v2412, %v2486
    %v2503 = vsel %vm2471, %v2417, %v2487
    %v2504 = vsel %vm2472, %v2422, %v2488
    %v2505 = vsel %vm2473, %v2427, %v2489
    %v2506 = vsel %vm2474, %v2432, %v2490
    %v2507 = vsel %vm2475, %v2437, %v2491
    %v2508 = vsel %vm2476, %v2442, %v2492
    %v2509 = vsel %vm2477, %v2447, %v2493
    %v2510 = vsel %vm2478, %v2452, %v2494
    %v2511 = vsel %vm2479, %v2457, %v2495
    %v2512 = vsel %vm2480, %v2462, %v2496
    %v2513 = vld [vmem:[#allocation27] sm:$0xff]
    %v2514 = vld [vmem:[#allocation27 + $0x8] sm:$0xff]
    %v2515 = vld [vmem:[#allocation27 + $0x10] sm:$0xff]
    %v2516 = vld [vmem:[#allocation27 + $0x18] sm:$0xff]
    %v2517 = vld [vmem:[#allocation27 + $0x20] sm:$0xff]
    %v2518 = vld [vmem:[#allocation27 + $0x28] sm:$0xff]
    %v2519 = vld [vmem:[#allocation27 + $0x30] sm:$0xff]
    %v2520 = vld [vmem:[#allocation27 + $0x38] sm:$0xff]
    %v2521 = vld [vmem:[#allocation27 + $0x40] sm:$0xff]
    %v2522 = vld [vmem:[#allocation27 + $0x48] sm:$0xff]
    %v2523 = vld [vmem:[#allocation27 + $0x50] sm:$0xff]
    %v2524 = vld [vmem:[#allocation27 + $0x58] sm:$0xff]
    %v2525 = vld [vmem:[#allocation27 + $0x60] sm:$0xff]
    %v2526 = vld [vmem:[#allocation27 + $0x68] sm:$0xff]
    %v2527 = vld [vmem:[#allocation27 + $0x70] sm:$0xff]
    %v2528 = vld [vmem:[#allocation27 + $0x78] sm:$0xff]
    %2529 = vmatprep.subr.mxu0 0.0
    %2530 = vmatpush1.msra.mxu0 %v2513
    %2531 = vmatprep.subr.mxu0 0.0
    %2532 = vmatpush1.msra.mxu0 %v2514
    %2533 = vmatprep.subr.mxu0 0.0
    %2534 = vmatpush1.msra.mxu0 %v2515
    %2535 = vmatprep.subr.mxu0 0.0
    %2536 = vmatpush1.msra.mxu0 %v2516
    %2537 = vmatprep.subr.mxu0 0.0
    %2538 = vmatpush1.msra.mxu0 %v2517
    %2539 = vmatprep.subr.mxu0 0.0
    %2540 = vmatpush1.msra.mxu0 %v2518
    %2541 = vmatprep.subr.mxu0 0.0
    %2542 = vmatpush1.msra.mxu0 %v2519
    %2543 = vmatprep.subr.mxu0 0.0
    %2544 = vmatpush1.msra.mxu0 %v2520
    %2545 = vmatprep.subr.mxu0 0.0
    %2546 = vmatpush1.msra.mxu0 %v2521
    %2547 = vmatprep.subr.mxu0 0.0
    %2548 = vmatpush1.msra.mxu0 %v2522
    %2549 = vmatprep.subr.mxu0 0.0
    %2550 = vmatpush1.msra.mxu0 %v2523
    %2551 = vmatprep.subr.mxu0 0.0
    %2552 = vmatpush1.msra.mxu0 %v2524
    %2553 = vmatprep.subr.mxu0 0.0
    %2554 = vmatpush1.msra.mxu0 %v2525
    %2555 = vmatprep.subr.mxu0 0.0
    %2556 = vmatpush1.msra.mxu0 %v2526
    %2557 = vmatprep.subr.mxu0 0.0
    %2558 = vmatpush1.msra.mxu0 %v2527
    %2559 = vmatprep.subr.mxu0 0.0
    %2560 = vmatpush1.msra.mxu0 %v2528
    %2561 = vmatprep.subr.mxu0 0.0
    %2562 = vmatpush1.msra.mxu0 0.0
    %2563 = vmatprep.subr.mxu0 0.0
    %2564 = vmatpush1.msra.mxu0 0.0
    %2565 = vmatprep.subr.mxu0 0.0
    %2566 = vmatpush1.msra.mxu0 0.0
    %2567 = vmatprep.subr.mxu0 0.0
    %2568 = vmatpush1.msra.mxu0 0.0
    %2569 = vmatprep.subr.mxu0 0.0
    %2570 = vmatpush1.msra.mxu0 0.0
    %2571 = vmatprep.subr.mxu0 0.0
    %2572 = vmatpush1.msra.mxu0 0.0
    %2573 = vmatprep.subr.mxu0 0.0
    %2574 = vmatpush1.msra.mxu0 0.0
    %2575 = vmatprep.subr.mxu0 0.0
    %2576 = vmatpush1.msra.mxu0 0.0
    %2577 = vmatprep.subr.mxu0 0.0
    %2578 = vmatpush1.msra.mxu0 0.0
    %2579 = vmatprep.subr.mxu0 0.0
    %2580 = vmatpush1.msra.mxu0 0.0
    %2581 = vmatprep.subr.mxu0 0.0
    %2582 = vmatpush1.msra.mxu0 0.0
    %2583 = vmatprep.subr.mxu0 0.0
    %2584 = vmatpush1.msra.mxu0 0.0
    %2585 = vmatprep.subr.mxu0 0.0
    %2586 = vmatpush1.msra.mxu0 0.0
    %2587 = vmatprep.subr.mxu0 0.0
    %2588 = vmatpush1.msra.mxu0 0.0
    %2589 = vmatprep.subr.mxu0 0.0
    %2590 = vmatpush1.msra.mxu0 0.0
    %2591 = vmatprep.subr.mxu0 0.0
    %2592 = vmatpush1.msra.mxu0 0.0
    %2593 = vmatprep.mubr.f32.mxu0 0.0
    %2594 = vmatmul.mubr.f32.gmra.mrb[0].mxu0 %v2497
    %v2595 = vpop.f32.mrb[0].mxu0
    %v2596 = vadd.f32 0.0, %v2595
    %v2597 = vpop.f32.mrb[0].mxu0
    %2598 = vmatprep.mubr.f32.mxu0 0.0
    %2599 = vmatmul.mubr.f32.gmra.mrb[0].mxu0 %v2498
    %v2600 = vpop.f32.mrb[0].mxu0
    %v2601 = vadd.f32 0.0, %v2600
    %v2602 = vpop.f32.mrb[0].mxu0
    %2603 = vmatprep.mubr.f32.mxu0 0.0
    %2604 = vmatmul.mubr.f32.gmra.mrb[0].mxu0 %v2499
    %v2605 = vpop.f32.mrb[0].mxu0
    %v2606 = vadd.f32 0.0, %v2605
    %v2607 = vpop.f32.mrb[0].mxu0
    %2608 = vmatprep.mubr.f32.mxu0 0.0
    %2609 = vmatmul.mubr.f32.gmra.mrb[0].mxu0 %v2500
    %v2610 = vpop.f32.mrb[0].mxu0
    %v2611 = vadd.f32 0.0, %v2610
    %v2612 = vpop.f32.mrb[0].mxu0
    %2613 = vmatprep.mubr.f32.mxu0 0.0
    %2614 = vmatmul.mubr.f32.gmra.mrb[0].mxu0 %v2501
    %v2615 = vpop.f32.mrb[0].mxu0
    %v2616 = vadd.f32 0.0, %v2615
    %v2617 = vpop.f32.mrb[0].mxu0
    %2618 = vmatprep.mubr.f32.mxu0 0.0
    %2619 = vmatmul.mubr.f32.gmra.mrb[0].mxu0 %v2502
    %v2620 = vpop.f32.mrb[0].mxu0
    %v2621 = vadd.f32 0.0, %v2620
    %v2622 = vpop.f32.mrb[0].mxu0
    %2623 = vmatprep.mubr.f32.mxu0 0.0
    %2624 = vmatmul.mubr.f32.gmra.mrb[0].mxu0 %v2503
    %v2625 = vpop.f32.mrb[0].mxu0
    %v2626 = vadd.f32 0.0, %v2625
    %v2627 = vpop.f32.mrb[0].mxu0
    %2628 = vmatprep.mubr.f32.mxu0 0.0
    %2629 = vmatmul.mubr.f32.gmra.mrb[0].mxu0 %v2504
    %v2630 = vpop.f32.mrb[0].mxu0
    %v2631 = vadd.f32 0.0, %v2630
    %v2632 = vpop.f32.mrb[0].mxu0
    %2633 = vmatprep.mubr.f32.mxu0 0.0
    %2634 = vmatmul.mubr.f32.gmra.mrb[0].mxu0 %v2505
    %v2635 = vpop.f32.mrb[0].mxu0
    %v2636 = vadd.f32 0.0, %v2635
    %v2637 = vpop.f32.mrb[0].mxu0
    %2638 = vmatprep.mubr.f32.mxu0 0.0
    %2639 = vmatmul.mubr.f32.gmra.mrb[0].mxu0 %v2506
    %v2640 = vpop.f32.mrb[0].mxu0
    %v2641 = vadd.f32 0.0, %v2640
    %v2642 = vpop.f32.mrb[0].mxu0
    %2643 = vmatprep.mubr.f32.mxu0 0.0
    %2644 = vmatmul.mubr.f32.gmra.mrb[0].mxu0 %v2507
    %v2645 = vpop.f32.mrb[0].mxu0
    %v2646 = vadd.f32 0.0, %v2645
    %v2647 = vpop.f32.mrb[0].mxu0
    %2648 = vmatprep.mubr.f32.mxu0 0.0
    %2649 = vmatmul.mubr.f32.gmra.mrb[0].mxu0 %v2508
    %v2650 = vpop.f32.mrb[0].mxu0
    %v2651 = vadd.f32 0.0, %v2650
    %v2652 = vpop.f32.mrb[0].mxu0
    %2653 = vmatprep.mubr.f32.mxu0 0.0
    %2654 = vmatmul.mubr.f32.gmra.mrb[0].mxu0 %v2509
    %v2655 = vpop.f32.mrb[0].mxu0
    %v2656 = vadd.f32 0.0, %v2655
    %v2657 = vpop.f32.mrb[0].mxu0
    %2658 = vmatprep.mubr.f32.mxu0 0.0
    %2659 = vmatmul.mubr.f32.gmra.mrb[0].mxu0 %v2510
    %v2660 = vpop.f32.mrb[0].mxu0
    %v2661 = vadd.f32 0.0, %v2660
    %v2662 = vpop.f32.mrb[0].mxu0
    %2663 = vmatprep.mubr.f32.mxu0 0.0
    %2664 = vmatmul.mubr.f32.gmra.mrb[0].mxu0 %v2511
    %v2665 = vpop.f32.mrb[0].mxu0
    %v2666 = vadd.f32 0.0, %v2665
    %v2667 = vpop.f32.mrb[0].mxu0
    %2668 = vmatprep.mubr.f32.mxu0 0.0
    %2669 = vmatmul.mubr.f32.gmra.mrb[0].mxu0 %v2512
    %v2670 = vpop.f32.mrb[0].mxu0
    %v2671 = vadd.f32 0.0, %v2670
    %v2672 = vpop.f32.mrb[0].mxu0
    %2673 = vdwg.mxu0
    %v2674 = vld [vmem:[#allocation28] sm:$0xff]
    %v2675 = vld [vmem:[#allocation28 + $0x8] sm:$0xff]
    %v2676 = vld [vmem:[#allocation28 + $0x10] sm:$0xff]
    %v2677 = vld [vmem:[#allocation28 + $0x18] sm:$0xff]
    %v2678 = vld [vmem:[#allocation28 + $0x20] sm:$0xff]
    %v2679 = vld [vmem:[#allocation28 + $0x28] sm:$0xff]
    %v2680 = vld [vmem:[#allocation28 + $0x30] sm:$0xff]
    %v2681 = vld [vmem:[#allocation28 + $0x38] sm:$0xff]
    %v2682 = vld [vmem:[#allocation28 + $0x40] sm:$0xff]
    %v2683 = vld [vmem:[#allocation28 + $0x48] sm:$0xff]
    %v2684 = vld [vmem:[#allocation28 + $0x50] sm:$0xff]
    %v2685 = vld [vmem:[#allocation28 + $0x58] sm:$0xff]
    %v2686 = vld [vmem:[#allocation28 + $0x60] sm:$0xff]
    %v2687 = vld [vmem:[#allocation28 + $0x68] sm:$0xff]
    %v2688 = vld [vmem:[#allocation28 + $0x70] sm:$0xff]
    %v2689 = vld [vmem:[#allocation28 + $0x78] sm:$0xff]
    %v2690 = vld [vmem:[#allocation30] sm:$0xff]
    %v2691 = vld [vmem:[#allocation30 + $0x8] sm:$0xff]
    %v2692 = vld [vmem:[#allocation30 + $0x10] sm:$0xff]
    %v2693 = vld [vmem:[#allocation30 + $0x18] sm:$0xff]
    %v2694 = vld [vmem:[#allocation30 + $0x20] sm:$0xff]
    %v2695 = vld [vmem:[#allocation30 + $0x28] sm:$0xff]
    %v2696 = vld [vmem:[#allocation30 + $0x30] sm:$0xff]
    %v2697 = vld [vmem:[#allocation30 + $0x38] sm:$0xff]
    %v2698 = vld [vmem:[#allocation30 + $0x40] sm:$0xff]
    %v2699 = vld [vmem:[#allocation30 + $0x48] sm:$0xff]
    %v2700 = vld [vmem:[#allocation30 + $0x50] sm:$0xff]
    %v2701 = vld [vmem:[#allocation30 + $0x58] sm:$0xff]
    %v2702 = vld [vmem:[#allocation30 + $0x60] sm:$0xff]
    %v2703 = vld [vmem:[#allocation30 + $0x68] sm:$0xff]
    %v2704 = vld [vmem:[#allocation30 + $0x70] sm:$0xff]
    %v2705 = vld [vmem:[#allocation30 + $0x78] sm:$0xff]
    %2707 = vset.pattern.permute.xlu0 0
    %2708 = vperm.xlu0 %2707, %v2690
    %v2709 = vpop.permute.xlu0 %2708
    %2712 = vset.pattern.permute.xlu0 0
    %2713 = vperm.xlu0 %2712, %v2691
    %v2714 = vpop.permute.xlu0 %2713
    %2717 = vset.pattern.permute.xlu0 0
    %2718 = vperm.xlu0 %2717, %v2692
    %v2719 = vpop.permute.xlu0 %2718
    %2722 = vset.pattern.permute.xlu0 0
    %2723 = vperm.xlu0 %2722, %v2693
    %v2724 = vpop.permute.xlu0 %2723
    %2727 = vset.pattern.permute.xlu0 0
    %2728 = vperm.xlu0 %2727, %v2694
    %v2729 = vpop.permute.xlu0 %2728
    %2732 = vset.pattern.permute.xlu0 0
    %2733 = vperm.xlu0 %2732, %v2695
    %v2734 = vpop.permute.xlu0 %2733
    %2737 = vset.pattern.permute.xlu0 0
    %2738 = vperm.xlu0 %2737, %v2696
    %v2739 = vpop.permute.xlu0 %2738
    %2742 = vset.pattern.permute.xlu0 0
    %2743 = vperm.xlu0 %2742, %v2697
    %v2744 = vpop.permute.xlu0 %2743
    %2747 = vset.pattern.permute.xlu0 0
    %2748 = vperm.xlu0 %2747, %v2698
    %v2749 = vpop.permute.xlu0 %2748
    %2752 = vset.pattern.permute.xlu0 0
    %2753 = vperm.xlu0 %2752, %v2699
    %v2754 = vpop.permute.xlu0 %2753
    %2757 = vset.pattern.permute.xlu0 0
    %2758 = vperm.xlu0 %2757, %v2700
    %v2759 = vpop.permute.xlu0 %2758
    %2762 = vset.pattern.permute.xlu0 0
    %2763 = vperm.xlu0 %2762, %v2701
    %v2764 = vpop.permute.xlu0 %2763
    %2767 = vset.pattern.permute.xlu0 0
    %2768 = vperm.xlu0 %2767, %v2702
    %v2769 = vpop.permute.xlu0 %2768
    %2772 = vset.pattern.permute.xlu0 0
    %2773 = vperm.xlu0 %2772, %v2703
    %v2774 = vpop.permute.xlu0 %2773
    %2777 = vset.pattern.permute.xlu0 0
    %2778 = vperm.xlu0 %2777, %v2704
    %v2779 = vpop.permute.xlu0 %2778
    %2782 = vset.pattern.permute.xlu0 0
    %2783 = vperm.xlu0 %2782, %v2705
    %v2784 = vpop.permute.xlu0 %2783
    %2786 = vmatprep.subr.mxu0 0.0
    %2787 = vmatpush1.msra.mxu0 %v2596
    %2788 = vmatprep.subr.mxu0 0.0
    %2789 = vmatpush1.msra.mxu0 %v2601
    %2790 = vmatprep.subr.mxu0 0.0
    %2791 = vmatpush1.msra.mxu0 %v2606
    %2792 = vmatprep.subr.mxu0 0.0
    %2793 = vmatpush1.msra.mxu0 %v2611
    %2794 = vmatprep.subr.mxu0 0.0
    %2795 = vmatpush1.msra.mxu0 %v2616
    %2796 = vmatprep.subr.mxu0 0.0
    %2797 = vmatpush1.msra.mxu0 %v2621
    %2798 = vmatprep.subr.mxu0 0.0
    %2799 = vmatpush1.msra.mxu0 %v2626
    %2800 = vmatprep.subr.mxu0 0.0
    %2801 = vmatpush1.msra.mxu0 %v2631
    %2802 = vmatprep.subr.mxu0 0.0
    %2803 = vmatpush1.msra.mxu0 %v2636
    %2804 = vmatprep.subr.mxu0 0.0
    %2805 = vmatpush1.msra.mxu0 %v2641
    %2806 = vmatprep.subr.mxu0 0.0
    %2807 = vmatpush1.msra.mxu0 %v2646
    %2808 = vmatprep.subr.mxu0 0.0
    %2809 = vmatpush1.msra.mxu0 %v2651
    %2810 = vmatprep.subr.mxu0 0.0
    %2811 = vmatpush1.msra.mxu0 %v2656
    %2812 = vmatprep.subr.mxu0 0.0
    %2813 = vmatpush1.msra.mxu0 %v2661
    %2814 = vmatprep.subr.mxu0 0.0
    %2815 = vmatpush1.msra.mxu0 %v2666
    %2816 = vmatprep.subr.mxu0 0.0
    %2817 = vmatpush1.msra.mxu0 %v2671
    %2818 = vmatprep.subr.mxu0 0.0
    %2819 = vmatpush1.msra.mxu0 0.0
    %2820 = vmatprep.subr.mxu0 0.0
    %2821 = vmatpush1.msra.mxu0 0.0
    %2822 = vmatprep.subr.mxu0 0.0
    %2823 = vmatpush1.msra.mxu0 0.0
    %2824 = vmatprep.subr.mxu0 0.0
    %2825 = vmatpush1.msra.mxu0 0.0
    %2826 = vmatprep.subr.mxu0 0.0
    %2827 = vmatpush1.msra.mxu0 0.0
    %2828 = vmatprep.subr.mxu0 0.0
    %2829 = vmatpush1.msra.mxu0 0.0
    %2830 = vmatprep.subr.mxu0 0.0
    %2831 = vmatpush1.msra.mxu0 0.0
    %2832 = vmatprep.subr.mxu0 0.0
    %2833 = vmatpush1.msra.mxu0 0.0
    %2834 = vmatprep.subr.mxu0 0.0
    %2835 = vmatpush1.msra.mxu0 0.0
    %2836 = vmatprep.subr.mxu0 0.0
    %2837 = vmatpush1.msra.mxu0 0.0
    %2838 = vmatprep.subr.mxu0 0.0
    %2839 = vmatpush1.msra.mxu0 0.0
    %2840 = vmatprep.subr.mxu0 0.0
    %2841 = vmatpush1.msra.mxu0 0.0
    %2842 = vmatprep.subr.mxu0 0.0
    %2843 = vmatpush1.msra.mxu0 0.0
    %2844 = vmatprep.subr.mxu0 0.0
    %2845 = vmatpush1.msra.mxu0 0.0
    %2846 = vmatprep.subr.mxu0 0.0
    %2847 = vmatpush1.msra.mxu0 0.0
    %2848 = vmatprep.subr.mxu0 0.0
    %2849 = vmatpush1.msra.mxu0 0.0
    %2850 = vmatprep.mubr.f32.mxu0 0.0
    %2851 = vmatmul.mubr.f32.gmra.mrb[0].mxu0 %v2674
    %v2852 = vpop.f32.mrb[0].mxu0
    %v2853 = vadd.f32 %v2709, %v2852
    %v2854 = vpop.f32.mrb[0].mxu0
    %2855 = vmatprep.mubr.f32.mxu0 0.0
    %2856 = vmatmul.mubr.f32.gmra.mrb[0].mxu0 %v2675
    %v2857 = vpop.f32.mrb[0].mxu0
    %v2858 = vadd.f32 %v2714, %v2857
    %v2859 = vpop.f32.mrb[0].mxu0
    %2860 = vmatprep.mubr.f32.mxu0 0.0
    %2861 = vmatmul.mubr.f32.gmra.mrb[0].mxu0 %v2676
    %v2862 = vpop.f32.mrb[0].mxu0
    %v2863 = vadd.f32 %v2719, %v2862
    %v2864 = vpop.f32.mrb[0].mxu0
    %2865 = vmatprep.mubr.f32.mxu0 0.0
    %2866 = vmatmul.mubr.f32.gmra.mrb[0].mxu0 %v2677
    %v2867 = vpop.f32.mrb[0].mxu0
    %v2868 = vadd.f32 %v2724, %v2867
    %v2869 = vpop.f32.mrb[0].mxu0
    %2870 = vmatprep.mubr.f32.mxu0 0.0
    %2871 = vmatmul.mubr.f32.gmra.mrb[0].mxu0 %v2678
    %v2872 = vpop.f32.mrb[0].mxu0
    %v2873 = vadd.f32 %v2729, %v2872
    %v2874 = vpop.f32.mrb[0].mxu0
    %2875 = vmatprep.mubr.f32.mxu0 0.0
    %2876 = vmatmul.mubr.f32.gmra.mrb[0].mxu0 %v2679
    %v2877 = vpop.f32.mrb[0].mxu0
    %v2878 = vadd.f32 %v2734, %v2877
    %v2879 = vpop.f32.mrb[0].mxu0
    %2880 = vmatprep.mubr.f32.mxu0 0.0
    %2881 = vmatmul.mubr.f32.gmra.mrb[0].mxu0 %v2680
    %v2882 = vpop.f32.mrb[0].mxu0
    %v2883 = vadd.f32 %v2739, %v2882
    %v2884 = vpop.f32.mrb[0].mxu0
    %2885 = vmatprep.mubr.f32.mxu0 0.0
    %2886 = vmatmul.mubr.f32.gmra.mrb[0].mxu0 %v2681
    %v2887 = vpop.f32.mrb[0].mxu0
    %v2888 = vadd.f32 %v2744, %v2887
    %v2889 = vpop.f32.mrb[0].mxu0
    %2890 = vmatprep.mubr.f32.mxu0 0.0
    %2891 = vmatmul.mubr.f32.gmra.mrb[0].mxu0 %v2682
    %v2892 = vpop.f32.mrb[0].mxu0
    %v2893 = vadd.f32 %v2749, %v2892
    %v2894 = vpop.f32.mrb[0].mxu0
    %2895 = vmatprep.mubr.f32.mxu0 0.0
    %2896 = vmatmul.mubr.f32.gmra.mrb[0].mxu0 %v2683
    %v2897 = vpop.f32.mrb[0].mxu0
    %v2898 = vadd.f32 %v2754, %v2897
    %v2899 = vpop.f32.mrb[0].mxu0
    %2900 = vmatprep.mubr.f32.mxu0 0.0
    %2901 = vmatmul.mubr.f32.gmra.mrb[0].mxu0 %v2684
    %v2902 = vpop.f32.mrb[0].mxu0
    %v2903 = vadd.f32 %v2759, %v2902
    %v2904 = vpop.f32.mrb[0].mxu0
    %2905 = vmatprep.mubr.f32.mxu0 0.0
    %2906 = vmatmul.mubr.f32.gmra.mrb[0].mxu0 %v2685
    %v2907 = vpop.f32.mrb[0].mxu0
    %v2908 = vadd.f32 %v2764, %v2907
    %v2909 = vpop.f32.mrb[0].mxu0
    %2910 = vmatprep.mubr.f32.mxu0 0.0
    %2911 = vmatmul.mubr.f32.gmra.mrb[0].mxu0 %v2686
    %v2912 = vpop.f32.mrb[0].mxu0
    %v2913 = vadd.f32 %v2769, %v2912
    %v2914 = vpop.f32.mrb[0].mxu0
    %2915 = vmatprep.mubr.f32.mxu0 0.0
    %2916 = vmatmul.mubr.f32.gmra.mrb[0].mxu0 %v2687
    %v2917 = vpop.f32.mrb[0].mxu0
    %v2918 = vadd.f32 %v2774, %v2917
    %v2919 = vpop.f32.mrb[0].mxu0
    %2920 = vmatprep.mubr.f32.mxu0 0.0
    %2921 = vmatmul.mubr.f32.gmra.mrb[0].mxu0 %v2688
    %v2922 = vpop.f32.mrb[0].mxu0
    %v2923 = vadd.f32 %v2779, %v2922
    %v2924 = vpop.f32.mrb[0].mxu0
    %2925 = vmatprep.mubr.f32.mxu0 0.0
    %2926 = vmatmul.mubr.f32.gmra.mrb[0].mxu0 %v2689
    %v2927 = vpop.f32.mrb[0].mxu0
    %v2928 = vadd.f32 %v2784, %v2927
    %v2929 = vpop.f32.mrb[0].mxu0
    %2930 = vdwg.mxu0
    %vm2931 = vcmp.ge.f32.partialorder %v2853, 0.0
    %vm2932 = vcmp.ge.f32.partialorder %v2858, 0.0
    %vm2933 = vcmp.ge.f32.partialorder %v2863, 0.0
    %vm2934 = vcmp.ge.f32.partialorder %v2868, 0.0
    %vm2935 = vcmp.ge.f32.partialorder %v2873, 0.0
    %vm2936 = vcmp.ge.f32.partialorder %v2878, 0.0
    %vm2937 = vcmp.ge.f32.partialorder %v2883, 0.0
    %vm2938 = vcmp.ge.f32.partialorder %v2888, 0.0
    %vm2939 = vcmp.ge.f32.partialorder %v2893, 0.0
    %vm2940 = vcmp.ge.f32.partialorder %v2898, 0.0
    %vm2941 = vcmp.ge.f32.partialorder %v2903, 0.0
    %vm2942 = vcmp.ge.f32.partialorder %v2908, 0.0
    %vm2943 = vcmp.ge.f32.partialorder %v2913, 0.0
    %vm2944 = vcmp.ge.f32.partialorder %v2918, 0.0
    %vm2945 = vcmp.ge.f32.partialorder %v2923, 0.0
    %vm2946 = vcmp.ge.f32.partialorder %v2928, 0.0
    %v2947 = vmul.f32 %v2853, 0.01
    %v2948 = vmul.f32 %v2858, 0.01
    %v2949 = vmul.f32 %v2863, 0.01
    %v2950 = vmul.f32 %v2868, 0.01
    %v2951 = vmul.f32 %v2873, 0.01
    %v2952 = vmul.f32 %v2878, 0.01
    %v2953 = vmul.f32 %v2883, 0.01
    %v2954 = vmul.f32 %v2888, 0.01
    %v2955 = vmul.f32 %v2893, 0.01
    %v2956 = vmul.f32 %v2898, 0.01
    %v2957 = vmul.f32 %v2903, 0.01
    %v2958 = vmul.f32 %v2908, 0.01
    %v2959 = vmul.f32 %v2913, 0.01
    %v2960 = vmul.f32 %v2918, 0.01
    %v2961 = vmul.f32 %v2923, 0.01
    %v2962 = vmul.f32 %v2928, 0.01
    %v2963 = vsel %vm2931, %v2853, %v2947
    %v2964 = vsel %vm2932, %v2858, %v2948
    %v2965 = vsel %vm2933, %v2863, %v2949
    %v2966 = vsel %vm2934, %v2868, %v2950
    %v2967 = vsel %vm2935, %v2873, %v2951
    %v2968 = vsel %vm2936, %v2878, %v2952
    %v2969 = vsel %vm2937, %v2883, %v2953
    %v2970 = vsel %vm2938, %v2888, %v2954
    %v2971 = vsel %vm2939, %v2893, %v2955
    %v2972 = vsel %vm2940, %v2898, %v2956
    %v2973 = vsel %vm2941, %v2903, %v2957
    %v2974 = vsel %vm2942, %v2908, %v2958
    %v2975 = vsel %vm2943, %v2913, %v2959
    %v2976 = vsel %vm2944, %v2918, %v2960
    %v2977 = vsel %vm2945, %v2923, %v2961
    %v2978 = vsel %vm2946, %v2928, %v2962
    %v2979 = vld [vmem:[%s22] sm:$0xff]
    %v2980 = vld [vmem:[%s22 + $0x8] sm:$0xff]
    %v2981 = vld [vmem:[%s22 + $0x10] sm:$0xff]
    %v2982 = vld [vmem:[%s22 + $0x18] sm:$0xff]
    %v2983 = vld [vmem:[%s22 + $0x20] sm:$0xff]
    %v2984 = vld [vmem:[%s22 + $0x28] sm:$0xff]
    %v2985 = vld [vmem:[%s22 + $0x30] sm:$0xff]
    %v2986 = vld [vmem:[%s22 + $0x38] sm:$0xff]
    %v2987 = vld [vmem:[#allocation31] sm:$0xff]
    %v2988 = vld [vmem:[#allocation31 + $0x8] sm:$0xff]
    %v2989 = vld [vmem:[#allocation31 + $0x10] sm:$0xff]
    %v2990 = vld [vmem:[#allocation31 + $0x18] sm:$0xff]
    %v2991 = vld [vmem:[#allocation31 + $0x20] sm:$0xff]
    %v2992 = vld [vmem:[#allocation31 + $0x28] sm:$0xff]
    %v2993 = vld [vmem:[#allocation31 + $0x30] sm:$0xff]
    %v2994 = vld [vmem:[#allocation31 + $0x38] sm:$0xff]
    %2996 = vset.pattern.permute.xlu0 0
    %2997 = vperm.xlu0 %2996, %v2987
    %v2998 = vpop.permute.xlu0 %2997
    %3001 = vset.pattern.permute.xlu0 0
    %3002 = vperm.xlu0 %3001, %v2988
    %v3003 = vpop.permute.xlu0 %3002
    %3006 = vset.pattern.permute.xlu0 0
    %3007 = vperm.xlu0 %3006, %v2989
    %v3008 = vpop.permute.xlu0 %3007
    %3011 = vset.pattern.permute.xlu0 0
    %3012 = vperm.xlu0 %3011, %v2990
    %v3013 = vpop.permute.xlu0 %3012
    %3016 = vset.pattern.permute.xlu0 0
    %3017 = vperm.xlu0 %3016, %v2991
    %v3018 = vpop.permute.xlu0 %3017
    %3021 = vset.pattern.permute.xlu0 0
    %3022 = vperm.xlu0 %3021, %v2992
    %v3023 = vpop.permute.xlu0 %3022
    %3026 = vset.pattern.permute.xlu0 0
    %3027 = vperm.xlu0 %3026, %v2993
    %v3028 = vpop.permute.xlu0 %3027
    %3031 = vset.pattern.permute.xlu0 0
    %3032 = vperm.xlu0 %3031, %v2994
    %v3033 = vpop.permute.xlu0 %3032
    %3035 = vmatprep.subr.mxu0 0.0
    %3036 = vmatpush1.msra.mxu0 %v2963
    %3037 = vmatprep.subr.mxu0 0.0
    %3038 = vmatpush1.msra.mxu0 %v2964
    %3039 = vmatprep.subr.mxu0 0.0
    %3040 = vmatpush1.msra.mxu0 %v2965
    %3041 = vmatprep.subr.mxu0 0.0
    %3042 = vmatpush1.msra.mxu0 %v2966
    %3043 = vmatprep.subr.mxu0 0.0
    %3044 = vmatpush1.msra.mxu0 %v2967
    %3045 = vmatprep.subr.mxu0 0.0
    %3046 = vmatpush1.msra.mxu0 %v2968
    %3047 = vmatprep.subr.mxu0 0.0
    %3048 = vmatpush1.msra.mxu0 %v2969
    %3049 = vmatprep.subr.mxu0 0.0
    %3050 = vmatpush1.msra.mxu0 %v2970
    %3051 = vmatprep.subr.mxu0 0.0
    %3052 = vmatpush1.msra.mxu0 %v2971
    %3053 = vmatprep.subr.mxu0 0.0
    %3054 = vmatpush1.msra.mxu0 %v2972
    %3055 = vmatprep.subr.mxu0 0.0
    %3056 = vmatpush1.msra.mxu0 %v2973
    %3057 = vmatprep.subr.mxu0 0.0
    %3058 = vmatpush1.msra.mxu0 %v2974
    %3059 = vmatprep.subr.mxu0 0.0
    %3060 = vmatpush1.msra.mxu0 %v2975
    %3061 = vmatprep.subr.mxu0 0.0
    %3062 = vmatpush1.msra.mxu0 %v2976
    %3063 = vmatprep.subr.mxu0 0.0
    %3064 = vmatpush1.msra.mxu0 %v2977
    %3065 = vmatprep.subr.mxu0 0.0
    %3066 = vmatpush1.msra.mxu0 %v2978
    %3067 = vmatprep.subr.mxu0 0.0
    %3068 = vmatpush1.msra.mxu0 0.0
    %3069 = vmatprep.subr.mxu0 0.0
    %3070 = vmatpush1.msra.mxu0 0.0
    %3071 = vmatprep.subr.mxu0 0.0
    %3072 = vmatpush1.msra.mxu0 0.0
    %3073 = vmatprep.subr.mxu0 0.0
    %3074 = vmatpush1.msra.mxu0 0.0
    %3075 = vmatprep.subr.mxu0 0.0
    %3076 = vmatpush1.msra.mxu0 0.0
    %3077 = vmatprep.subr.mxu0 0.0
    %3078 = vmatpush1.msra.mxu0 0.0
    %3079 = vmatprep.subr.mxu0 0.0
    %3080 = vmatpush1.msra.mxu0 0.0
    %3081 = vmatprep.subr.mxu0 0.0
    %3082 = vmatpush1.msra.mxu0 0.0
    %3083 = vmatprep.subr.mxu0 0.0
    %3084 = vmatpush1.msra.mxu0 0.0
    %3085 = vmatprep.subr.mxu0 0.0
    %3086 = vmatpush1.msra.mxu0 0.0
    %3087 = vmatprep.subr.mxu0 0.0
    %3088 = vmatpush1.msra.mxu0 0.0
    %3089 = vmatprep.subr.mxu0 0.0
    %3090 = vmatpush1.msra.mxu0 0.0
    %3091 = vmatprep.subr.mxu0 0.0
    %3092 = vmatpush1.msra.mxu0 0.0
    %3093 = vmatprep.subr.mxu0 0.0
    %3094 = vmatpush1.msra.mxu0 0.0
    %3095 = vmatprep.subr.mxu0 0.0
    %3096 = vmatpush1.msra.mxu0 0.0
    %3097 = vmatprep.subr.mxu0 0.0
    %3098 = vmatpush1.msra.mxu0 0.0
    %3099 = vmatprep.mubr.f32.mxu0 0.0
    %3100 = vmatmul.mubr.f32.gmra.mrb[0].mxu0 %v2979
    %v3101 = vpop.f32.mrb[0].mxu0
    %v3102 = vadd.f32 %v2998, %v3101
    %v3103 = vpop.f32.mrb[0].mxu0
    %3104 = vmatprep.mubr.f32.mxu0 0.0
    %3105 = vmatmul.mubr.f32.gmra.mrb[0].mxu0 %v2980
    %v3106 = vpop.f32.mrb[0].mxu0
    %v3107 = vadd.f32 %v3003, %v3106
    %v3108 = vpop.f32.mrb[0].mxu0
    %3109 = vmatprep.mubr.f32.mxu0 0.0
    %3110 = vmatmul.mubr.f32.gmra.mrb[0].mxu0 %v2981
    %v3111 = vpop.f32.mrb[0].mxu0
    %v3112 = vadd.f32 %v3008, %v3111
    %v3113 = vpop.f32.mrb[0].mxu0
    %3114 = vmatprep.mubr.f32.mxu0 0.0
    %3115 = vmatmul.mubr.f32.gmra.mrb[0].mxu0 %v2982
    %v3116 = vpop.f32.mrb[0].mxu0
    %v3117 = vadd.f32 %v3013, %v3116
    %v3118 = vpop.f32.mrb[0].mxu0
    %3119 = vmatprep.mubr.f32.mxu0 0.0
    %3120 = vmatmul.mubr.f32.gmra.mrb[0].mxu0 %v2983
    %v3121 = vpop.f32.mrb[0].mxu0
    %v3122 = vadd.f32 %v3018, %v3121
    %v3123 = vpop.f32.mrb[0].mxu0
    %3124 = vmatprep.mubr.f32.mxu0 0.0
    %3125 = vmatmul.mubr.f32.gmra.mrb[0].mxu0 %v2984
    %v3126 = vpop.f32.mrb[0].mxu0
    %v3127 = vadd.f32 %v3023, %v3126
    %v3128 = vpop.f32.mrb[0].mxu0
    %3129 = vmatprep.mubr.f32.mxu0 0.0
    %3130 = vmatmul.mubr.f32.gmra.mrb[0].mxu0 %v2985
    %v3131 = vpop.f32.mrb[0].mxu0
    %v3132 = vadd.f32 %v3028, %v3131
    %v3133 = vpop.f32.mrb[0].mxu0
    %3134 = vmatprep.mubr.f32.mxu0 0.0
    %3135 = vmatmul.mubr.f32.gmra.mrb[0].mxu0 %v2986
    %v3136 = vpop.f32.mrb[0].mxu0
    %v3137 = vadd.f32 %v3033, %v3136
    %v3138 = vpop.f32.mrb[0].mxu0
    %3139 = vdwg.mxu0
    %vm3140 = vcmp.ge.f32.partialorder %v3102, 0.0
    %vm3141 = vcmp.ge.f32.partialorder %v3107, 0.0
    %vm3142 = vcmp.ge.f32.partialorder %v3112, 0.0
    %vm3143 = vcmp.ge.f32.partialorder %v3117, 0.0
    %vm3144 = vcmp.ge.f32.partialorder %v3122, 0.0
    %vm3145 = vcmp.ge.f32.partialorder %v3127, 0.0
    %vm3146 = vcmp.ge.f32.partialorder %v3132, 0.0
    %vm3147 = vcmp.ge.f32.partialorder %v3137, 0.0
    %v3148 = vmul.f32 %v3102, 0.01
    %v3149 = vmul.f32 %v3107, 0.01
    %v3150 = vmul.f32 %v3112, 0.01
    %v3151 = vmul.f32 %v3117, 0.01
    %v3152 = vmul.f32 %v3122, 0.01
    %v3153 = vmul.f32 %v3127, 0.01
    %v3154 = vmul.f32 %v3132, 0.01
    %v3155 = vmul.f32 %v3137, 0.01
    %v3156 = vsel %vm3140, %v3102, %v3148
    %v3157 = vsel %vm3141, %v3107, %v3149
    %v3158 = vsel %vm3142, %v3112, %v3150
    %v3159 = vsel %vm3143, %v3117, %v3151
    %v3160 = vsel %vm3144, %v3122, %v3152
    %v3161 = vsel %vm3145, %v3127, %v3153
    %v3162 = vsel %vm3146, %v3132, %v3154
    %v3163 = vsel %vm3147, %v3137, %v3155
    %v3164 = vld [vmem:[%s24] sm:$0xff]
    %v3165 = vld [vmem:[%s24 + $0x8] sm:$0xff]
    %v3166 = vld [vmem:[%s24 + $0x10] sm:$0xff]
    %v3167 = vld [vmem:[%s24 + $0x18] sm:$0xff]
    %v3168 = vld [vmem:[#allocation33] sm:$0xff]
    %v3169 = vld [vmem:[#allocation33 + $0x8] sm:$0xff]
    %v3170 = vld [vmem:[#allocation33 + $0x10] sm:$0xff]
    %v3171 = vld [vmem:[#allocation33 + $0x18] sm:$0xff]
    %3173 = vset.pattern.permute.xlu0 0
    %3174 = vperm.xlu0 %3173, %v3168
    %v3175 = vpop.permute.xlu0 %3174
    %3178 = vset.pattern.permute.xlu0 0
    %3179 = vperm.xlu0 %3178, %v3169
    %v3180 = vpop.permute.xlu0 %3179
    %3183 = vset.pattern.permute.xlu0 0
    %3184 = vperm.xlu0 %3183, %v3170
    %v3185 = vpop.permute.xlu0 %3184
    %3188 = vset.pattern.permute.xlu0 0
    %3189 = vperm.xlu0 %3188, %v3171
    %v3190 = vpop.permute.xlu0 %3189
    %v3193 = vsel %vm1412, %v3164, 0
    %v3196 = vsel %vm1412, %v3165, 0
    %v3199 = vsel %vm1412, %v3166, 0
    %v3202 = vsel %vm1412, %v3167, 0
    %3204 = vmatprep.subr.mxu0 0.0
    %3205 = vmatpush1.msra.mxu0 %v3156
    %3206 = vmatprep.subr.mxu0 0.0
    %3207 = vmatpush1.msra.mxu0 %v3157
    %3208 = vmatprep.subr.mxu0 0.0
    %3209 = vmatpush1.msra.mxu0 %v3158
    %3210 = vmatprep.subr.mxu0 0.0
    %3211 = vmatpush1.msra.mxu0 %v3159
    %3212 = vmatprep.subr.mxu0 0.0
    %3213 = vmatpush1.msra.mxu0 %v3160
    %3214 = vmatprep.subr.mxu0 0.0
    %3215 = vmatpush1.msra.mxu0 %v3161
    %3216 = vmatprep.subr.mxu0 0.0
    %3217 = vmatpush1.msra.mxu0 %v3162
    %3218 = vmatprep.subr.mxu0 0.0
    %3219 = vmatpush1.msra.mxu0 %v3163
    %3220 = vmatprep.subr.mxu0 0.0
    %3221 = vmatpush1.msra.mxu0 0.0
    %3222 = vmatprep.subr.mxu0 0.0
    %3223 = vmatpush1.msra.mxu0 0.0
    %3224 = vmatprep.subr.mxu0 0.0
    %3225 = vmatpush1.msra.mxu0 0.0
    %3226 = vmatprep.subr.mxu0 0.0
    %3227 = vmatpush1.msra.mxu0 0.0
    %3228 = vmatprep.subr.mxu0 0.0
    %3229 = vmatpush1.msra.mxu0 0.0
    %3230 = vmatprep.subr.mxu0 0.0
    %3231 = vmatpush1.msra.mxu0 0.0
    %3232 = vmatprep.subr.mxu0 0.0
    %3233 = vmatpush1.msra.mxu0 0.0
    %3234 = vmatprep.subr.mxu0 0.0
    %3235 = vmatpush1.msra.mxu0 0.0
    %3236 = vmatprep.subr.mxu0 0.0
    %3237 = vmatpush1.msra.mxu0 0.0
    %3238 = vmatprep.subr.mxu0 0.0
    %3239 = vmatpush1.msra.mxu0 0.0
    %3240 = vmatprep.subr.mxu0 0.0
    %3241 = vmatpush1.msra.mxu0 0.0
    %3242 = vmatprep.subr.mxu0 0.0
    %3243 = vmatpush1.msra.mxu0 0.0
    %3244 = vmatprep.subr.mxu0 0.0
    %3245 = vmatpush1.msra.mxu0 0.0
    %3246 = vmatprep.subr.mxu0 0.0
    %3247 = vmatpush1.msra.mxu0 0.0
    %3248 = vmatprep.subr.mxu0 0.0
    %3249 = vmatpush1.msra.mxu0 0.0
    %3250 = vmatprep.subr.mxu0 0.0
    %3251 = vmatpush1.msra.mxu0 0.0
    %3252 = vmatprep.subr.mxu0 0.0
    %3253 = vmatpush1.msra.mxu0 0.0
    %3254 = vmatprep.subr.mxu0 0.0
    %3255 = vmatpush1.msra.mxu0 0.0
    %3256 = vmatprep.subr.mxu0 0.0
    %3257 = vmatpush1.msra.mxu0 0.0
    %3258 = vmatprep.subr.mxu0 0.0
    %3259 = vmatpush1.msra.mxu0 0.0
    %3260 = vmatprep.subr.mxu0 0.0
    %3261 = vmatpush1.msra.mxu0 0.0
    %3262 = vmatprep.subr.mxu0 0.0
    %3263 = vmatpush1.msra.mxu0 0.0
    %3264 = vmatprep.subr.mxu0 0.0
    %3265 = vmatpush1.msra.mxu0 0.0
    %3266 = vmatprep.subr.mxu0 0.0
    %3267 = vmatpush1.msra.mxu0 0.0
    %3268 = vmatprep.mubr.f32.mxu0 0.0
    %3269 = vmatmul.mubr.f32.gmra.mrb[0].mxu0 %v3193
    %v3270 = vpop.f32.mrb[0].mxu0
    %v3271 = vadd.f32 %v3175, %v3270
    %v3272 = vpop.f32.mrb[0].mxu0
    %3273 = vmatprep.mubr.f32.mxu0 0.0
    %3274 = vmatmul.mubr.f32.gmra.mrb[0].mxu0 %v3196
    %v3275 = vpop.f32.mrb[0].mxu0
    %v3276 = vadd.f32 %v3180, %v3275
    %v3277 = vpop.f32.mrb[0].mxu0
    %3278 = vmatprep.mubr.f32.mxu0 0.0
    %3279 = vmatmul.mubr.f32.gmra.mrb[0].mxu0 %v3199
    %v3280 = vpop.f32.mrb[0].mxu0
    %v3281 = vadd.f32 %v3185, %v3280
    %v3282 = vpop.f32.mrb[0].mxu0
    %3283 = vmatprep.mubr.f32.mxu0 0.0
    %3284 = vmatmul.mubr.f32.gmra.mrb[0].mxu0 %v3202
    %v3285 = vpop.f32.mrb[0].mxu0
    %v3286 = vadd.f32 %v3190, %v3285
    %v3287 = vpop.f32.mrb[0].mxu0
    %3288 = vdwg.mxu0
    %vm3289 = vcmp.ge.f32.partialorder %v3271, 0.0
    %vm3290 = vcmp.ge.f32.partialorder %v3276, 0.0
    %vm3291 = vcmp.ge.f32.partialorder %v3281, 0.0
    %vm3292 = vcmp.ge.f32.partialorder %v3286, 0.0
    %v3293 = vmul.f32 %v3271, 0.01
    %v3294 = vmul.f32 %v3276, 0.01
    %v3295 = vmul.f32 %v3281, 0.01
    %v3296 = vmul.f32 %v3286, 0.01
    %v3297 = vsel %vm3289, %v3271, %v3293
    %v3298 = vsel %vm3290, %v3276, %v3294
    %v3299 = vsel %vm3291, %v3281, %v3295
    %v3300 = vsel %vm3292, %v3286, %v3296
    %v3301 = vld [vmem:[%s26] sm:$0x3]
    %v3302 = vld [vmem:[#allocation34] sm:$0x3]
    %3304 = vset.pattern.permute.xlu0 0
    %3305 = vperm.xlu0 %3304, %v3302
    %v3306 = vpop.permute.xlu0 %3305
    %v3309 = vsel %vm957, %v3301, 0
    %3311 = vmatprep.subr.mxu0 0.0
    %3312 = vmatpush1.msra.mxu0 %v3297
    %3313 = vmatprep.subr.mxu0 0.0
    %3314 = vmatpush1.msra.mxu0 %v3298
    %3315 = vmatprep.subr.mxu0 0.0
    %3316 = vmatpush1.msra.mxu0 %v3299
    %3317 = vmatprep.subr.mxu0 0.0
    %3318 = vmatpush1.msra.mxu0 %v3300
    %3319 = vmatprep.subr.mxu0 0.0
    %3320 = vmatpush1.msra.mxu0 0.0
    %3321 = vmatprep.subr.mxu0 0.0
    %3322 = vmatpush1.msra.mxu0 0.0
    %3323 = vmatprep.subr.mxu0 0.0
    %3324 = vmatpush1.msra.mxu0 0.0
    %3325 = vmatprep.subr.mxu0 0.0
    %3326 = vmatpush1.msra.mxu0 0.0
    %3327 = vmatprep.subr.mxu0 0.0
    %3328 = vmatpush1.msra.mxu0 0.0
    %3329 = vmatprep.subr.mxu0 0.0
    %3330 = vmatpush1.msra.mxu0 0.0
    %3331 = vmatprep.subr.mxu0 0.0
    %3332 = vmatpush1.msra.mxu0 0.0
    %3333 = vmatprep.subr.mxu0 0.0
    %3334 = vmatpush1.msra.mxu0 0.0
    %3335 = vmatprep.subr.mxu0 0.0
    %3336 = vmatpush1.msra.mxu0 0.0
    %3337 = vmatprep.subr.mxu0 0.0
    %3338 = vmatpush1.msra.mxu0 0.0
    %3339 = vmatprep.subr.mxu0 0.0
    %3340 = vmatpush1.msra.mxu0 0.0
    %3341 = vmatprep.subr.mxu0 0.0
    %3342 = vmatpush1.msra.mxu0 0.0
    %3343 = vmatprep.subr.mxu0 0.0
    %3344 = vmatpush1.msra.mxu0 0.0
    %3345 = vmatprep.subr.mxu0 0.0
    %3346 = vmatpush1.msra.mxu0 0.0
    %3347 = vmatprep.subr.mxu0 0.0
    %3348 = vmatpush1.msra.mxu0 0.0
    %3349 = vmatprep.subr.mxu0 0.0
    %3350 = vmatpush1.msra.mxu0 0.0
    %3351 = vmatprep.subr.mxu0 0.0
    %3352 = vmatpush1.msra.mxu0 0.0
    %3353 = vmatprep.subr.mxu0 0.0
    %3354 = vmatpush1.msra.mxu0 0.0
    %3355 = vmatprep.subr.mxu0 0.0
    %3356 = vmatpush1.msra.mxu0 0.0
    %3357 = vmatprep.subr.mxu0 0.0
    %3358 = vmatpush1.msra.mxu0 0.0
    %3359 = vmatprep.subr.mxu0 0.0
    %3360 = vmatpush1.msra.mxu0 0.0
    %3361 = vmatprep.subr.mxu0 0.0
    %3362 = vmatpush1.msra.mxu0 0.0
    %3363 = vmatprep.subr.mxu0 0.0
    %3364 = vmatpush1.msra.mxu0 0.0
    %3365 = vmatprep.subr.mxu0 0.0
    %3366 = vmatpush1.msra.mxu0 0.0
    %3367 = vmatprep.subr.mxu0 0.0
    %3368 = vmatpush1.msra.mxu0 0.0
    %3369 = vmatprep.subr.mxu0 0.0
    %3370 = vmatpush1.msra.mxu0 0.0
    %3371 = vmatprep.subr.mxu0 0.0
    %3372 = vmatpush1.msra.mxu0 0.0
    %3373 = vmatprep.subr.mxu0 0.0
    %3374 = vmatpush1.msra.mxu0 0.0
    %3375 = vmatprep.mubr.f32.mxu0 0.0
    %3376 = vmatmul.mubr.f32.gmra.mrb[0].mxu0 %v3309
    %v3377 = vpop.f32.mrb[0].mxu0
    %v3378 = vadd.f32 %v3306, %v3377
    %v3379 = vpop.f32.mrb[0].mxu0
    %3380 = vdwg.mxu0
    %vm3381 = vcmp.ge.f32.partialorder %v3378, 0.0
    %v3382 = vmul.f32 %v3378, 0.01
    %v3383 = vsel %vm3381, %v3378, %v3382
    %vm3384 = vcmask 9216
    %3385 = vst.msk [vmem:[%s28] sm:$0x3] %vm3384, %v3383
    // Predicated region
    $region202: #{_lambda_.1} parent=1 // pred_check
      _
    $region203: #{_lambda_.1} parent=1 // pred_check_branch
      %3387 = sbr.rel (0) target = $region205
    $region204: #{_lambda_.1} parent=1 // pred_region
      _
    $region205: #{_lambda_.1} parent=1 // pred_fallthru
      _
    // Predicated region
    $region206: #{_lambda_.1} parent=1 // pred_check
      _
    $region207: #{_lambda_.1} parent=1 // pred_check_branch
      %3389 = sbr.rel (0) target = $region209
    $region208: #{_lambda_.1} parent=1 // pred_region
      _
    $region209: #{_lambda_.1} parent=1 // pred_fallthru
      _
    %3390 = vsyncpa [#allocation3], 1
    %3391 = vsyncpa [#allocation5], 1
    %3392 = vsyncpa [#allocation8], 1
    %3393 = vsyncpa [#allocation11], 1
    %3394 = vsyncpa [#allocation14], 1
    %3395 = vsyncpa [#allocation17], 1
    %3396 = vsyncpa [#allocation20], 1
    %3397 = vsyncpa [#allocation23], 1
    %3398 = vsyncpa [#allocation26], 1
    %3399 = vsyncpa [#allocation29], 1
    %3400 = vsyncpa [#allocation32], 1
    %3401 = vsyncpa [#allocation35], 1

</llo_original>
